<compile_context>
chip_gen: v6e
topology: v6e:2x2x1
jax: 0.10.0
libtpu: 0.0.40
codegen_flags: <defaults>
</compile_context>

<pallas_src>
import functools

import jax
import jax.numpy as jnp
from jax.experimental import pallas as pl
from jax.experimental.pallas import tpu as pltpu

_BN_EPS = 1e-5
_TM_ACT = 1024          # row tile for the tiled (no-BN) tanh layer
_LANE = 128


def _round_up(x, m):
    return (x + m - 1) // m * m


# ----------------------------------------------------------------------------
# Pallas kernels
# ----------------------------------------------------------------------------
def _matmul_bn_relu_kernel(x_ref, w_ref, g_ref, gamma_ref, beta_ref, o_ref, *,
                           inv_count, eps):
    """Fused: X(M,K)bf16 @ W(K,N)bf16 -> f32 acc; batch-norm (batch stats) + ReLU.

    g_ref is a 0/1 (N,N) matrix mapping per-column sums to per-channel sums
    broadcast back to every column of that channel (handles phase-packed N and
    zero-padded columns).  Whole layer is resident -> single grid step.
    """
    acc = jnp.dot(x_ref[...], w_ref[...], preferred_element_type=jnp.float32)
    s = jnp.sum(acc, axis=0, keepdims=True)                       # (1, N)
    ss = jnp.sum(acc * acc, axis=0, keepdims=True)                # (1, N)
    stats = jnp.concatenate([s, ss], axis=0)                      # (2, N)
    stats = jnp.dot(stats, g_ref[...], preferred_element_type=jnp.float32)
    mean = stats[0:1, :] * inv_count
    ex2 = stats[1:2, :] * inv_count
    var = ex2 - mean * mean                                       # biased (BN train mode)
    scale = gamma_ref[...] * jax.lax.rsqrt(var + eps)
    shift = beta_ref[...] - mean * scale
    y = acc * scale + shift
    o_ref[...] = jnp.maximum(y, 0.0).astype(o_ref.dtype)


def _matmul_tanh_kernel(x_ref, w_ref, o_ref):
    """Final layer: matmul + tanh fused, no statistics, lane-dense output tile."""
    acc = jnp.dot(x_ref[...], w_ref[...], preferred_element_type=jnp.float32)
    o_ref[...] = jnp.tanh(acc).astype(o_ref.dtype)


# ----------------------------------------------------------------------------
# Pallas wrappers
# ----------------------------------------------------------------------------
def _fused_matmul_bn_relu(x, w, g, gamma_col, beta_col, m_true, group):
    mp, k = x.shape
    npad = w.shape[1]
    # Whole layer resident in VMEM (inputs are tiny here). Guard loudly if scaled up.
    vmem_est = 2 * mp * k * 2 + 2 * k * npad * 2 + npad * npad * 4 \
        + 2 * mp * npad * 2 + 3 * mp * npad * 4
    assert vmem_est < 48 * 2 ** 20, (
        "layer too large for the single-block fused BN kernel; "
        "tile M with two-pass (per-tile partial) statistics instead")
    kern = functools.partial(_matmul_bn_relu_kernel,
                             inv_count=1.0 / float(m_true * group), eps=_BN_EPS)
    return pl.pallas_call(
        kern,
        out_shape=jax.ShapeDtypeStruct((mp, npad), jnp.bfloat16),
        grid_spec=pltpu.PrefetchScalarGridSpec(
            num_scalar_prefetch=0,
            grid=(1,),
            in_specs=[pl.BlockSpec((mp, k), lambda i: (0, 0)),
                      pl.BlockSpec((k, npad), lambda i: (0, 0)),
                      pl.BlockSpec((npad, npad), lambda i: (0, 0)),
                      pl.BlockSpec((1, npad), lambda i: (0, 0)),
                      pl.BlockSpec((1, npad), lambda i: (0, 0))],
            out_specs=pl.BlockSpec((mp, npad), lambda i: (0, 0))),
        compiler_params=pltpu.CompilerParams(
            dimension_semantics=("arbitrary",)),
    )(x, w, g, gamma_col, beta_col)


def _tiled_matmul_tanh(x, w, tm):
    mp, k = x.shape
    npad = w.shape[1]
    return pl.pallas_call(
        _matmul_tanh_kernel,
        out_shape=jax.ShapeDtypeStruct((mp, npad), jnp.float32),
        grid_spec=pltpu.PrefetchScalarGridSpec(
            num_scalar_prefetch=0,
            grid=(mp // tm,),
            in_specs=[pl.BlockSpec((tm, k), lambda m: (m, 0)),
                      pl.BlockSpec((k, npad), lambda m: (0, 0))],
            out_specs=pl.BlockSpec((tm, npad), lambda m: (m, 0))),
        compiler_params=pltpu.CompilerParams(
            dimension_semantics=("parallel",)),
    )(x, w)


# ----------------------------------------------------------------------------
# Layer lowering helpers (thin JAX layout glue around the Pallas kernels)
# ----------------------------------------------------------------------------
def _window3x3_patches(x):
    """x: (B,H,W,C) bf16 -> (B*H*W, 9*C) bf16 (3x3 neighborhood, zero-padded)."""
    B, H, W, C = x.shape
    xp = jnp.pad(x, ((0, 0), (1, 1), (1, 1), (0, 0)))
    cols = [xp[:, i:i + H, j:j + W, :] for i in range(3) for j in range(3)]
    return jnp.stack(cols, axis=3).reshape(B * H * W, 9 * C)


def _phase_weight(w):
    """PyTorch ConvTranspose2d weight (Cin,Cout,4,4) -> phase-combined (9*Cin, 4*Cout).

    For stride 2, k=4, pad 1:  out[2i+rh, 2j+rw, co] =
        sum_{dh,dw in {-1,0,1}} xpad[i+1+dh, j+1+dw, ci] * W[ci,co,kh(rh,dh),kw(rw,dw)]
    with kh(0,-1)=3, kh(0,0)=1, kh(1,0)=2, kh(1,+1)=0 and zero otherwise.
    """
    cin, cout = w.shape[0], w.shape[1]
    kmap = ((3, 1, None), (None, 2, 0))          # [phase][d+1] -> kernel index
    wc = jnp.zeros((3, 3, cin, 2, 2, cout), jnp.float32)
    for rh in range(2):
        for di, kh in enumerate(kmap[rh]):
            if kh is None:
                continue
            for rw in range(2):
                for dj, kw in enumerate(kmap[rw]):
                    if kw is None:
                        continue
                    wc = wc.at[di, dj, :, rh, rw, :].set(w[:, :, kh, kw])
    return wc.reshape(9 * cin, 4 * cout)


def _group_matrix(n_real, cout, npad):
    """0/1 (npad,npad): connects columns of the same channel (col % cout), real cols only."""
    idx = jnp.arange(npad)
    valid = idx < n_real
    same = (idx[:, None] % cout) == (idx[None, :] % cout)
    return (same & valid[:, None] & valid[None, :]).astype(jnp.float32)


def _col(v, reps, npad):
    t = jnp.tile(v.astype(jnp.float32), reps)
    return jnp.pad(t, (0, npad - t.shape[0])).reshape(1, npad)


def _pixel_shuffle(r, m, B, H, W, cout):
    """(Mp, Npad) phase-packed matmul output -> (B, 2H, 2W, cout)."""
    y = r[:m, :4 * cout].reshape(B, H, W, 2, 2, cout)
    y = jnp.transpose(y, (0, 1, 3, 2, 4, 5))
    return y.reshape(B, 2 * H, 2 * W, cout)


def _deconv_s2_bn_relu(x_nhwc, w, gamma, beta):
    """ConvTranspose2d(4,4 s2 p1, bias=False) + BatchNorm2d(train stats) + ReLU."""
    B, H, W, _ = x_nhwc.shape
    cout = w.shape[1]
    n_real = 4 * cout
    npad = _round_up(n_real, _LANE)

    patches = _window3x3_patches(x_nhwc.astype(jnp.bfloat16))
    m = patches.shape[0]
    mp = _round_up(m, 8)
    if mp != m:
        patches = jnp.pad(patches, ((0, mp - m), (0, 0)))   # zero rows: inert for stats

    wmat = _phase_weight(w)
    wmat = jnp.pad(wmat, ((0, 0), (0, npad - n_real))).astype(jnp.bfloat16)
    g = _group_matrix(n_real, cout, npad)
    r = _fused_matmul_bn_relu(patches, wmat, g,
                              _col(gamma, 4, npad), _col(beta, 4, npad), m, 4)
    return _pixel_shuffle(r, m, B, H, W, cout)


def _deconv_s2_tanh(x_nhwc, w):
    """Final layer: ConvTranspose2d(4,4 s2 p1, bias=False) + tanh (no BN, no stats)."""
    B, H, W, _ = x_nhwc.shape
    cout = w.shape[1]
    n_real = 4 * cout
    npad = _round_up(n_real, _LANE)

    patches = _window3x3_patches(x_nhwc.astype(jnp.bfloat16))
    m = patches.shape[0]
    tm = min(_TM_ACT, _round_up(m, 8))
    mp = _round_up(m, tm)
    if mp != m:
        patches = jnp.pad(patches, ((0, mp - m), (0, 0)))

    wmat = _phase_weight(w)
    wmat = jnp.pad(wmat, ((0, 0), (0, npad - n_real))).astype(jnp.bfloat16)
    r = _tiled_matmul_tanh(patches, wmat, tm)
    return _pixel_shuffle(r, m, B, H, W, cout)


def _input_deconv_bn_relu(z2d, l2d, wi, wl, gi, bi, gl, bl):
    """Merged noise/label branch: two ConvTranspose2d(1x1 -> 4x4) + BN + ReLU + concat,
    lowered to ONE block-diagonal matmul with M = B*16 output pixels, N = 2*Cout."""
    B = z2d.shape[0]
    nz, c1 = wi.shape[0], wi.shape[1]
    nl = wl.shape[0]
    cin = nz + nl
    ctot = 2 * c1
    npad = _round_up(ctot, _LANE)

    # block-diagonal merged weight, kernel-position-major rows: row = (kh*4+kw)*cin + ci
    wm = jnp.zeros((cin, ctot, 4, 4), jnp.float32)
    wm = wm.at[:nz, :c1].set(wi)
    wm = wm.at[nz:, c1:].set(wl)
    wmat = jnp.transpose(wm, (2, 3, 0, 1)).reshape(16 * cin, ctot)
    wmat = jnp.pad(wmat, ((0, 0), (0, npad - ctot))).astype(jnp.bfloat16)

    # one-hot spatial "patches": row (b, t) holds the input vector in block t
    xcat = jnp.concatenate([z2d, l2d], axis=-1).astype(jnp.bfloat16)          # (B, cin)
    eye = jnp.eye(16, dtype=jnp.bfloat16)
    x1 = (eye[None, :, :, None] * xcat[:, None, None, :]).reshape(B * 16, 16 * cin)
    m = B * 16
    mp = _round_up(m, 8)
    if mp != m:
        x1 = jnp.pad(x1, ((0, mp - m), (0, 0)))

    g = _group_matrix(ctot, ctot, npad)            # identity on the real channels
    gcol = _col(jnp.concatenate([gi, gl]), 1, npad)
    bcol = _col(jnp.concatenate([bi, bl]), 1, npad)
    r = _fused_matmul_bn_relu(x1, wmat, g, gcol, bcol, m, 1)
    return r[:m, :ctot].reshape(B, 4, 4, ctot)     # row = b*16 + (kh*4+kw) -> NHWC


# ----------------------------------------------------------------------------
# Generator parameters + forward
# ----------------------------------------------------------------------------
def init_generator_params(key, nz, nl, ngf, nc):
    ks = jax.random.split(key, 11)

    def w(k, cin, cout):
        return 0.05 * jax.random.normal(k, (cin, cout, 4, 4), jnp.float32)

    def bn(k, c):
        k1, k2 = jax.random.split(k)
        return (1.0 + 0.1 * jax.random.normal(k1, (c,), jnp.float32),
                0.1 * jax.random.normal(k2, (c,), jnp.float32))

    p = {}
    p["w1i"] = w(ks[0], nz, ngf * 4); p["g1i"], p["b1i"] = bn(ks[1], ngf * 4)
    p["w1l"] = w(ks[2], nl, ngf * 4); p["g1l"], p["b1l"] = bn(ks[3], ngf * 4)
    p["w2"] = w(ks[4], ngf * 8, ngf * 4); p["g2"], p["b2"] = bn(ks[5], ngf * 4)
    p["w3"] = w(ks[6], ngf * 4, ngf * 2); p["g3"], p["b3"] = bn(ks[7], ngf * 2)
    p["w4"] = w(ks[8], ngf * 2, ngf); p["g4"], p["b4"] = bn(ks[9], ngf)
    p["w5"] = w(ks[10], ngf, nc)
    return p


@jax.jit
def generator_forward(params, noise_nchw, label_nchw):
    # inputs are (B, C, 1, 1) NCHW -> flat channel vectors; output back to NCHW.
    B = noise_nchw.shape[0]
    z = noise_nchw.reshape(B, -1).astype(jnp.float32)
    l = label_nchw.reshape(B, -1).astype(jnp.float32)
    x = _input_deconv_bn_relu(z, l, params["w1i"], params["w1l"],
                              params["g1i"], params["b1i"],
                              params["g1l"], params["b1l"])          # (B,4,4,64)
    x = _deconv_s2_bn_relu(x, params["w2"], params["g2"], params["b2"])   # 4  -> 8
    x = _deconv_s2_bn_relu(x, params["w3"], params["g3"], params["b3"])   # 8  -> 16
    x = _deconv_s2_bn_relu(x, params["w4"], params["g4"], params["b4"])   # 16 -> 32
    x = _deconv_s2_tanh(x, params["w5"])                                  # 32 -> 64
    return jnp.transpose(x, (0, 3, 1, 2))


# ----------------------------------------------------------------------------
# Pure-JAX reference (same bf16 operand / f32 accumulate discipline) for self-check
# ----------------------------------------------------------------------------
def _ref_deconv(x, w, stride, pad):
    wf = jnp.transpose(w[:, :, ::-1, ::-1], (2, 3, 0, 1)).astype(jnp.bfloat16)
    return jax.lax.conv_general_dilated(
        x.astype(jnp.bfloat16), wf, (1, 1),
        [(3 - pad, 3 - pad)] * 2, lhs_dilation=(stride, stride),
        dimension_numbers=("NHWC", "HWIO", "NHWC"),
        preferred_element_type=jnp.float32)


def _ref_bn_relu(y, gamma, beta):
    m = jnp.mean(y, axis=(0, 1, 2))
    v = jnp.mean(jnp.square(y - m), axis=(0, 1, 2))
    scale = gamma * jax.lax.rsqrt(v + _BN_EPS)
    return jnp.maximum((y - m) * scale + beta, 0.0).astype(jnp.bfloat16)


@jax.jit
def reference_forward(params, noise_nchw, label_nchw):
    z = jnp.transpose(noise_nchw, (0, 2, 3, 1)).astype(jnp.float32)
    l = jnp.transpose(label_nchw, (0, 2, 3, 1)).astype(jnp.float32)
    x = _ref_bn_relu(_ref_deconv(z, params["w1i"], 1, 0), params["g1i"], params["b1i"])
    y = _ref_bn_relu(_ref_deconv(l, params["w1l"], 1, 0), params["g1l"], params["b1l"])
    x = jnp.concatenate([x, y], axis=-1)
    x = _ref_bn_relu(_ref_deconv(x, params["w2"], 2, 1), params["g2"], params["b2"])
    x = _ref_bn_relu(_ref_deconv(x, params["w3"], 2, 1), params["g3"], params["b3"])
    x = _ref_bn_relu(_ref_deconv(x, params["w4"], 2, 1), params["g4"], params["b4"])
    x = jnp.tanh(_ref_deconv(x, params["w5"], 2, 1))
    return jnp.transpose(x, (0, 3, 1, 2)).astype(jnp.float32)


if __name__ == "__main__":
    B = 2
    num_noise_vec_channels = 16
    num_feature_vec_channels = 4
    base_num_out_channels = 8
    num_img_channels = 3

    key = jax.random.PRNGKey(0)
    kp, kz, kl = jax.random.split(key, 3)
    params = init_generator_params(kp, num_noise_vec_channels, num_feature_vec_channels,
                                   base_num_out_channels, num_img_channels)
    noise = jax.random.normal(kz, (B, num_noise_vec_channels, 1, 1), jnp.float32)
    label = jax.random.normal(kl, (B, num_feature_vec_channels, 1, 1), jnp.float32)

    out = jax.block_until_ready(generator_forward(params, noise, label))
    assert out.shape == (B, num_img_channels, 64, 64), out.shape
    assert bool(jnp.all(jnp.isfinite(out)))
    assert bool(jnp.all(jnp.abs(out) <= 1.0))  # tanh range

    ref = jax.block_until_ready(reference_forward(params, noise, label))
    max_err = float(jnp.max(jnp.abs(out - ref)))
    assert max_err < 5e-2, f"mismatch vs reference: max abs diff = {max_err}"

    print("KERNEL_OK")
</pallas_src>

<mosaic_0001>
module attributes {stable_mosaic.version = 11 : i64} {
  func.func @_matmul_bn_relu_kernel(%arg0: i32, %arg1: memref<32x320xbf16, #tpu.memory_space<vmem>>, %arg2: memref<320x128xbf16, #tpu.memory_space<vmem>>, %arg3: memref<128x128xf32, #tpu.memory_space<vmem>>, %arg4: memref<1x128xf32, #tpu.memory_space<vmem>>, %arg5: memref<1x128xf32, #tpu.memory_space<vmem>>, %arg6: memref<32x128xbf16, #tpu.memory_space<vmem>>) attributes {dimension_semantics = [#tpu.dimension_semantics<arbitrary>], iteration_bounds = array<i64: 1>, scalar_prefetch = 0 : i64, scratch_operands = 0 : i64, tpu.core_type = #tpu.core_type<tc>, window_params = [{pipeline_mode = #tpu.pipeline_mode<synchronous>, transform_indices = @transform_0, window_bounds = array<i64: 32, 320>}, {pipeline_mode = #tpu.pipeline_mode<synchronous>, transform_indices = @transform_1, window_bounds = array<i64: 320, 128>}, {pipeline_mode = #tpu.pipeline_mode<synchronous>, transform_indices = @transform_2, window_bounds = array<i64: 128, 128>}, {pipeline_mode = #tpu.pipeline_mode<synchronous>, transform_indices = @transform_3, window_bounds = array<i64: 1, 128>}, {pipeline_mode = #tpu.pipeline_mode<synchronous>, transform_indices = @transform_4, window_bounds = array<i64: 1, 128>}, {pipeline_mode = #tpu.pipeline_mode<synchronous>, transform_indices = @transform_5, window_bounds = array<i64: 32, 128>}]} {
    %c0 = arith.constant 0 : index
    %c0_0 = arith.constant 0 : index
    %0 = vector.load %arg1[%c0, %c0_0] : memref<32x320xbf16, #tpu.memory_space<vmem>>, vector<32x320xbf16>
    %c0_1 = arith.constant 0 : index
    %c0_2 = arith.constant 0 : index
    %1 = vector.load %arg2[%c0_1, %c0_2] : memref<320x128xbf16, #tpu.memory_space<vmem>>, vector<320x128xbf16>
    %cst = arith.constant dense<0.000000e+00> : vector<32x128xf32>
    %2 = tpu.matmul %0, %1, %cst {dimension_numbers = #tpu.dot_dimension_numbers<[1], [0], [0], [1], [0, 0, 1, 1], [], []>} : vector<32x320xbf16>, vector<320x128xbf16>, vector<32x128xf32> -> vector<32x128xf32>
    %cst_3 = arith.constant dense<0.000000e+00> : vector<128xf32>
    %3 = vector.multi_reduction <add>, %2, %cst_3 [0] : vector<32x128xf32> to vector<128xf32>
    %4 = vector.shape_cast %3 : vector<128xf32> to vector<1x128xf32>
    %5 = arith.mulf %2, %2 : vector<32x128xf32>
    %cst_4 = arith.constant dense<0.000000e+00> : vector<128xf32>
    %6 = vector.multi_reduction <add>, %5, %cst_4 [0] : vector<32x128xf32> to vector<128xf32>
    %7 = vector.shape_cast %6 : vector<128xf32> to vector<1x128xf32>
    %8 = tpu.concatenate %4, %7 in 0 : vector<1x128xf32>, vector<1x128xf32> -> vector<2x128xf32>
    %c0_5 = arith.constant 0 : index
    %c0_6 = arith.constant 0 : index
    %9 = vector.load %arg3[%c0_5, %c0_6] : memref<128x128xf32, #tpu.memory_space<vmem>>, vector<128x128xf32>
    %cst_7 = arith.constant dense<0.000000e+00> : vector<2x128xf32>
    %10 = tpu.matmul %8, %9, %cst_7 {dimension_numbers = #tpu.dot_dimension_numbers<[1], [0], [0], [1], [0, 0, 1, 1], [], []>} : vector<2x128xf32>, vector<128x128xf32>, vector<2x128xf32> -> vector<2x128xf32>
    %11 = vector.extract_strided_slice %10 {offsets = [0, 0], sizes = [1, 128], strides = [1, 1]} : vector<2x128xf32> to vector<1x128xf32>
    %cst_8 = arith.constant 3.125000e-02 : f32
    %12 = vector.broadcast %cst_8 : f32 to vector<1x128xf32>
    %13 = arith.mulf %11, %12 : vector<1x128xf32>
    %14 = vector.extract_strided_slice %10 {offsets = [1, 0], sizes = [1, 128], strides = [1, 1]} : vector<2x128xf32> to vector<1x128xf32>
    %cst_9 = arith.constant 3.125000e-02 : f32
    %15 = vector.broadcast %cst_9 : f32 to vector<1x128xf32>
    %16 = arith.mulf %14, %15 : vector<1x128xf32>
    %17 = arith.mulf %13, %13 : vector<1x128xf32>
    %18 = arith.subf %16, %17 : vector<1x128xf32>
    %c0_10 = arith.constant 0 : index
    %c0_11 = arith.constant 0 : index
    %19 = vector.load %arg4[%c0_10, %c0_11] : memref<1x128xf32, #tpu.memory_space<vmem>>, vector<1x128xf32>
    %cst_12 = arith.constant 9.99999974E-6 : f32
    %20 = vector.broadcast %cst_12 : f32 to vector<1x128xf32>
    %21 = arith.addf %18, %20 : vector<1x128xf32>
    %22 = math.rsqrt %21 : vector<1x128xf32>
    %23 = arith.mulf %19, %22 : vector<1x128xf32>
    %c0_13 = arith.constant 0 : index
    %c0_14 = arith.constant 0 : index
    %24 = vector.load %arg5[%c0_13, %c0_14] : memref<1x128xf32, #tpu.memory_space<vmem>>, vector<1x128xf32>
    %25 = arith.mulf %13, %23 : vector<1x128xf32>
    %26 = arith.subf %24, %25 : vector<1x128xf32>
    %27 = vector.broadcast %23 : vector<1x128xf32> to vector<32x128xf32>
    %28 = arith.mulf %2, %27 : vector<32x128xf32>
    %29 = vector.broadcast %26 : vector<1x128xf32> to vector<32x128xf32>
    %30 = arith.addf %28, %29 : vector<32x128xf32>
    %cst_15 = arith.constant 0.000000e+00 : f32
    %31 = vector.broadcast %cst_15 : f32 to vector<32x128xf32>
    %32 = arith.maximumf %30, %31 : vector<32x128xf32>
    %33 = arith.truncf %32 : vector<32x128xf32> to vector<32x128xbf16>
    %c0_16 = arith.constant 0 : index
    %c0_17 = arith.constant 0 : index
    %34 = vector.load %arg6[%c0_16, %c0_17] : memref<32x128xbf16, #tpu.memory_space<vmem>>, vector<32x128xbf16>
    tpu.vector_store %arg6[%c0_16, %c0_17], %33 {strides = array<i32>} : memref<32x128xbf16, #tpu.memory_space<vmem>>, vector<32x128xbf16>,
    return
  }
  func.func @transform_0(%arg0: i32) -> (i32, i32) {
    %c0_i32 = arith.constant 0 : i32
    %c0_i32_0 = arith.constant 0 : i32
    %c0_i32_1 = arith.constant 0 : i32
    return %c0_i32, %c0_i32_0 : i32, i32
  }
  func.func @transform_1(%arg0: i32) -> (i32, i32) {
    %c0_i32 = arith.constant 0 : i32
    %c0_i32_0 = arith.constant 0 : i32
    %c0_i32_1 = arith.constant 0 : i32
    return %c0_i32, %c0_i32_0 : i32, i32
  }
  func.func @transform_2(%arg0: i32) -> (i32, i32) {
    %c0_i32 = arith.constant 0 : i32
    %c0_i32_0 = arith.constant 0 : i32
    %c0_i32_1 = arith.constant 0 : i32
    return %c0_i32, %c0_i32_0 : i32, i32
  }
  func.func @transform_3(%arg0: i32) -> (i32, i32) {
    %c0_i32 = arith.constant 0 : i32
    %c0_i32_0 = arith.constant 0 : i32
    %c0_i32_1 = arith.constant 0 : i32
    return %c0_i32, %c0_i32_0 : i32, i32
  }
  func.func @transform_4(%arg0: i32) -> (i32, i32) {
    %c0_i32 = arith.constant 0 : i32
    %c0_i32_0 = arith.constant 0 : i32
    %c0_i32_1 = arith.constant 0 : i32
    return %c0_i32, %c0_i32_0 : i32, i32
  }
  func.func @transform_5(%arg0: i32) -> (i32, i32) {
    %c0_i32 = arith.constant 0 : i32
    %c0_i32_0 = arith.constant 0 : i32
    %c0_i32_1 = arith.constant 0 : i32
    return %c0_i32, %c0_i32_0 : i32, i32
  }
}

module attributes {stable_mosaic.version = 11 : i64} {
  func.func @_matmul_bn_relu_kernel(%arg0: i32, %arg1: memref<32x576xbf16, #tpu.memory_space<vmem>>, %arg2: memref<576x128xbf16, #tpu.memory_space<vmem>>, %arg3: memref<128x128xf32, #tpu.memory_space<vmem>>, %arg4: memref<1x128xf32, #tpu.memory_space<vmem>>, %arg5: memref<1x128xf32, #tpu.memory_space<vmem>>, %arg6: memref<32x128xbf16, #tpu.memory_space<vmem>>) attributes {dimension_semantics = [#tpu.dimension_semantics<arbitrary>], iteration_bounds = array<i64: 1>, scalar_prefetch = 0 : i64, scratch_operands = 0 : i64, tpu.core_type = #tpu.core_type<tc>, window_params = [{pipeline_mode = #tpu.pipeline_mode<synchronous>, transform_indices = @transform_0, window_bounds = array<i64: 32, 576>}, {pipeline_mode = #tpu.pipeline_mode<synchronous>, transform_indices = @transform_1, window_bounds = array<i64: 576, 128>}, {pipeline_mode = #tpu.pipeline_mode<synchronous>, transform_indices = @transform_2, window_bounds = array<i64: 128, 128>}, {pipeline_mode = #tpu.pipeline_mode<synchronous>, transform_indices = @transform_3, window_bounds = array<i64: 1, 128>}, {pipeline_mode = #tpu.pipeline_mode<synchronous>, transform_indices = @transform_4, window_bounds = array<i64: 1, 128>}, {pipeline_mode = #tpu.pipeline_mode<synchronous>, transform_indices = @transform_5, window_bounds = array<i64: 32, 128>}]} {
    %c0 = arith.constant 0 : index
    %c0_0 = arith.constant 0 : index
    %0 = vector.load %arg1[%c0, %c0_0] : memref<32x576xbf16, #tpu.memory_space<vmem>>, vector<32x576xbf16>
    %c0_1 = arith.constant 0 : index
    %c0_2 = arith.constant 0 : index
    %1 = vector.load %arg2[%c0_1, %c0_2] : memref<576x128xbf16, #tpu.memory_space<vmem>>, vector<576x128xbf16>
    %cst = arith.constant dense<0.000000e+00> : vector<32x128xf32>
    %2 = tpu.matmul %0, %1, %cst {dimension_numbers = #tpu.dot_dimension_numbers<[1], [0], [0], [1], [0, 0, 1, 1], [], []>} : vector<32x576xbf16>, vector<576x128xbf16>, vector<32x128xf32> -> vector<32x128xf32>
    %cst_3 = arith.constant dense<0.000000e+00> : vector<128xf32>
    %3 = vector.multi_reduction <add>, %2, %cst_3 [0] : vector<32x128xf32> to vector<128xf32>
    %4 = vector.shape_cast %3 : vector<128xf32> to vector<1x128xf32>
    %5 = arith.mulf %2, %2 : vector<32x128xf32>
    %cst_4 = arith.constant dense<0.000000e+00> : vector<128xf32>
    %6 = vector.multi_reduction <add>, %5, %cst_4 [0] : vector<32x128xf32> to vector<128xf32>
    %7 = vector.shape_cast %6 : vector<128xf32> to vector<1x128xf32>
    %8 = tpu.concatenate %4, %7 in 0 : vector<1x128xf32>, vector<1x128xf32> -> vector<2x128xf32>
    %c0_5 = arith.constant 0 : index
    %c0_6 = arith.constant 0 : index
    %9 = vector.load %arg3[%c0_5, %c0_6] : memref<128x128xf32, #tpu.memory_space<vmem>>, vector<128x128xf32>
    %cst_7 = arith.constant dense<0.000000e+00> : vector<2x128xf32>
    %10 = tpu.matmul %8, %9, %cst_7 {dimension_numbers = #tpu.dot_dimension_numbers<[1], [0], [0], [1], [0, 0, 1, 1], [], []>} : vector<2x128xf32>, vector<128x128xf32>, vector<2x128xf32> -> vector<2x128xf32>
    %11 = vector.extract_strided_slice %10 {offsets = [0, 0], sizes = [1, 128], strides = [1, 1]} : vector<2x128xf32> to vector<1x128xf32>
    %cst_8 = arith.constant 7.812500e-03 : f32
    %12 = vector.broadcast %cst_8 : f32 to vector<1x128xf32>
    %13 = arith.mulf %11, %12 : vector<1x128xf32>
    %14 = vector.extract_strided_slice %10 {offsets = [1, 0], sizes = [1, 128], strides = [1, 1]} : vector<2x128xf32> to vector<1x128xf32>
    %cst_9 = arith.constant 7.812500e-03 : f32
    %15 = vector.broadcast %cst_9 : f32 to vector<1x128xf32>
    %16 = arith.mulf %14, %15 : vector<1x128xf32>
    %17 = arith.mulf %13, %13 : vector<1x128xf32>
    %18 = arith.subf %16, %17 : vector<1x128xf32>
    %c0_10 = arith.constant 0 : index
    %c0_11 = arith.constant 0 : index
    %19 = vector.load %arg4[%c0_10, %c0_11] : memref<1x128xf32, #tpu.memory_space<vmem>>, vector<1x128xf32>
    %cst_12 = arith.constant 9.99999974E-6 : f32
    %20 = vector.broadcast %cst_12 : f32 to vector<1x128xf32>
    %21 = arith.addf %18, %20 : vector<1x128xf32>
    %22 = math.rsqrt %21 : vector<1x128xf32>
    %23 = arith.mulf %19, %22 : vector<1x128xf32>
    %c0_13 = arith.constant 0 : index
    %c0_14 = arith.constant 0 : index
    %24 = vector.load %arg5[%c0_13, %c0_14] : memref<1x128xf32, #tpu.memory_space<vmem>>, vector<1x128xf32>
    %25 = arith.mulf %13, %23 : vector<1x128xf32>
    %26 = arith.subf %24, %25 : vector<1x128xf32>
    %27 = vector.broadcast %23 : vector<1x128xf32> to vector<32x128xf32>
    %28 = arith.mulf %2, %27 : vector<32x128xf32>
    %29 = vector.broadcast %26 : vector<1x128xf32> to vector<32x128xf32>
    %30 = arith.addf %28, %29 : vector<32x128xf32>
    %cst_15 = arith.constant 0.000000e+00 : f32
    %31 = vector.broadcast %cst_15 : f32 to vector<32x128xf32>
    %32 = arith.maximumf %30, %31 : vector<32x128xf32>
    %33 = arith.truncf %32 : vector<32x128xf32> to vector<32x128xbf16>
    %c0_16 = arith.constant 0 : index
    %c0_17 = arith.constant 0 : index
    %34 = vector.load %arg6[%c0_16, %c0_17] : memref<32x128xbf16, #tpu.memory_space<vmem>>, vector<32x128xbf16>
    tpu.vector_store %arg6[%c0_16, %c0_17], %33 {strides = array<i32>} : memref<32x128xbf16, #tpu.memory_space<vmem>>, vector<32x128xbf16>,
    return
  }
  func.func @transform_0(%arg0: i32) -> (i32, i32) {
    %c0_i32 = arith.constant 0 : i32
    %c0_i32_0 = arith.constant 0 : i32
    %c0_i32_1 = arith.constant 0 : i32
    return %c0_i32, %c0_i32_0 : i32, i32
  }
  func.func @transform_1(%arg0: i32) -> (i32, i32) {
    %c0_i32 = arith.constant 0 : i32
    %c0_i32_0 = arith.constant 0 : i32
    %c0_i32_1 = arith.constant 0 : i32
    return %c0_i32, %c0_i32_0 : i32, i32
  }
  func.func @transform_2(%arg0: i32) -> (i32, i32) {
    %c0_i32 = arith.constant 0 : i32
    %c0_i32_0 = arith.constant 0 : i32
    %c0_i32_1 = arith.constant 0 : i32
    return %c0_i32, %c0_i32_0 : i32, i32
  }
  func.func @transform_3(%arg0: i32) -> (i32, i32) {
    %c0_i32 = arith.constant 0 : i32
    %c0_i32_0 = arith.constant 0 : i32
    %c0_i32_1 = arith.constant 0 : i32
    return %c0_i32, %c0_i32_0 : i32, i32
  }
  func.func @transform_4(%arg0: i32) -> (i32, i32) {
    %c0_i32 = arith.constant 0 : i32
    %c0_i32_0 = arith.constant 0 : i32
    %c0_i32_1 = arith.constant 0 : i32
    return %c0_i32, %c0_i32_0 : i32, i32
  }
  func.func @transform_5(%arg0: i32) -> (i32, i32) {
    %c0_i32 = arith.constant 0 : i32
    %c0_i32_0 = arith.constant 0 : i32
    %c0_i32_1 = arith.constant 0 : i32
    return %c0_i32, %c0_i32_0 : i32, i32
  }
}

module attributes {stable_mosaic.version = 11 : i64} {
  func.func @_matmul_bn_relu_kernel(%arg0: i32, %arg1: memref<128x288xbf16, #tpu.memory_space<vmem>>, %arg2: memref<288x128xbf16, #tpu.memory_space<vmem>>, %arg3: memref<128x128xf32, #tpu.memory_space<vmem>>, %arg4: memref<1x128xf32, #tpu.memory_space<vmem>>, %arg5: memref<1x128xf32, #tpu.memory_space<vmem>>, %arg6: memref<128x128xbf16, #tpu.memory_space<vmem>>) attributes {dimension_semantics = [#tpu.dimension_semantics<arbitrary>], iteration_bounds = array<i64: 1>, scalar_prefetch = 0 : i64, scratch_operands = 0 : i64, tpu.core_type = #tpu.core_type<tc>, window_params = [{pipeline_mode = #tpu.pipeline_mode<synchronous>, transform_indices = @transform_0, window_bounds = array<i64: 128, 288>}, {pipeline_mode = #tpu.pipeline_mode<synchronous>, transform_indices = @transform_1, window_bounds = array<i64: 288, 128>}, {pipeline_mode = #tpu.pipeline_mode<synchronous>, transform_indices = @transform_2, window_bounds = array<i64: 128, 128>}, {pipeline_mode = #tpu.pipeline_mode<synchronous>, transform_indices = @transform_3, window_bounds = array<i64: 1, 128>}, {pipeline_mode = #tpu.pipeline_mode<synchronous>, transform_indices = @transform_4, window_bounds = array<i64: 1, 128>}, {pipeline_mode = #tpu.pipeline_mode<synchronous>, transform_indices = @transform_5, window_bounds = array<i64: 128, 128>}]} {
    %c0 = arith.constant 0 : index
    %c0_0 = arith.constant 0 : index
    %0 = vector.load %arg1[%c0, %c0_0] : memref<128x288xbf16, #tpu.memory_space<vmem>>, vector<128x288xbf16>
    %c0_1 = arith.constant 0 : index
    %c0_2 = arith.constant 0 : index
    %1 = vector.load %arg2[%c0_1, %c0_2] : memref<288x128xbf16, #tpu.memory_space<vmem>>, vector<288x128xbf16>
    %cst = arith.constant dense<0.000000e+00> : vector<128x128xf32>
    %2 = tpu.matmul %0, %1, %cst {dimension_numbers = #tpu.dot_dimension_numbers<[1], [0], [0], [1], [0, 0, 1, 1], [], []>} : vector<128x288xbf16>, vector<288x128xbf16>, vector<128x128xf32> -> vector<128x128xf32>
    %cst_3 = arith.constant dense<0.000000e+00> : vector<128xf32>
    %3 = vector.multi_reduction <add>, %2, %cst_3 [0] : vector<128x128xf32> to vector<128xf32>
    %4 = vector.shape_cast %3 : vector<128xf32> to vector<1x128xf32>
    %5 = arith.mulf %2, %2 : vector<128x128xf32>
    %cst_4 = arith.constant dense<0.000000e+00> : vector<128xf32>
    %6 = vector.multi_reduction <add>, %5, %cst_4 [0] : vector<128x128xf32> to vector<128xf32>
    %7 = vector.shape_cast %6 : vector<128xf32> to vector<1x128xf32>
    %8 = tpu.concatenate %4, %7 in 0 : vector<1x128xf32>, vector<1x128xf32> -> vector<2x128xf32>
    %c0_5 = arith.constant 0 : index
    %c0_6 = arith.constant 0 : index
    %9 = vector.load %arg3[%c0_5, %c0_6] : memref<128x128xf32, #tpu.memory_space<vmem>>, vector<128x128xf32>
    %cst_7 = arith.constant dense<0.000000e+00> : vector<2x128xf32>
    %10 = tpu.matmul %8, %9, %cst_7 {dimension_numbers = #tpu.dot_dimension_numbers<[1], [0], [0], [1], [0, 0, 1, 1], [], []>} : vector<2x128xf32>, vector<128x128xf32>, vector<2x128xf32> -> vector<2x128xf32>
    %11 = vector.extract_strided_slice %10 {offsets = [0, 0], sizes = [1, 128], strides = [1, 1]} : vector<2x128xf32> to vector<1x128xf32>
    %cst_8 = arith.constant 0.001953125 : f32
    %12 = vector.broadcast %cst_8 : f32 to vector<1x128xf32>
    %13 = arith.mulf %11, %12 : vector<1x128xf32>
    %14 = vector.extract_strided_slice %10 {offsets = [1, 0], sizes = [1, 128], strides = [1, 1]} : vector<2x128xf32> to vector<1x128xf32>
    %cst_9 = arith.constant 0.001953125 : f32
    %15 = vector.broadcast %cst_9 : f32 to vector<1x128xf32>
    %16 = arith.mulf %14, %15 : vector<1x128xf32>
    %17 = arith.mulf %13, %13 : vector<1x128xf32>
    %18 = arith.subf %16, %17 : vector<1x128xf32>
    %c0_10 = arith.constant 0 : index
    %c0_11 = arith.constant 0 : index
    %19 = vector.load %arg4[%c0_10, %c0_11] : memref<1x128xf32, #tpu.memory_space<vmem>>, vector<1x128xf32>
    %cst_12 = arith.constant 9.99999974E-6 : f32
    %20 = vector.broadcast %cst_12 : f32 to vector<1x128xf32>
    %21 = arith.addf %18, %20 : vector<1x128xf32>
    %22 = math.rsqrt %21 : vector<1x128xf32>
    %23 = arith.mulf %19, %22 : vector<1x128xf32>
    %c0_13 = arith.constant 0 : index
    %c0_14 = arith.constant 0 : index
    %24 = vector.load %arg5[%c0_13, %c0_14] : memref<1x128xf32, #tpu.memory_space<vmem>>, vector<1x128xf32>
    %25 = arith.mulf %13, %23 : vector<1x128xf32>
    %26 = arith.subf %24, %25 : vector<1x128xf32>
    %27 = vector.broadcast %23 : vector<1x128xf32> to vector<128x128xf32>
    %28 = arith.mulf %2, %27 : vector<128x128xf32>
    %29 = vector.broadcast %26 : vector<1x128xf32> to vector<128x128xf32>
    %30 = arith.addf %28, %29 : vector<128x128xf32>
    %cst_15 = arith.constant 0.000000e+00 : f32
    %31 = vector.broadcast %cst_15 : f32 to vector<128x128xf32>
    %32 = arith.maximumf %30, %31 : vector<128x128xf32>
    %33 = arith.truncf %32 : vector<128x128xf32> to vector<128x128xbf16>
    %c0_16 = arith.constant 0 : index
    %c0_17 = arith.constant 0 : index
    %34 = vector.load %arg6[%c0_16, %c0_17] : memref<128x128xbf16, #tpu.memory_space<vmem>>, vector<128x128xbf16>
    tpu.vector_store %arg6[%c0_16, %c0_17], %33 {strides = array<i32>} : memref<128x128xbf16, #tpu.memory_space<vmem>>, vector<128x128xbf16>,
    return
  }
  func.func @transform_0(%arg0: i32) -> (i32, i32) {
    %c0_i32 = arith.constant 0 : i32
    %c0_i32_0 = arith.constant 0 : i32
    %c0_i32_1 = arith.constant 0 : i32
    return %c0_i32, %c0_i32_0 : i32, i32
  }
  func.func @transform_1(%arg0: i32) -> (i32, i32) {
    %c0_i32 = arith.constant 0 : i32
    %c0_i32_0 = arith.constant 0 : i32
    %c0_i32_1 = arith.constant 0 : i32
    return %c0_i32, %c0_i32_0 : i32, i32
  }
  func.func @transform_2(%arg0: i32) -> (i32, i32) {
    %c0_i32 = arith.constant 0 : i32
    %c0_i32_0 = arith.constant 0 : i32
    %c0_i32_1 = arith.constant 0 : i32
    return %c0_i32, %c0_i32_0 : i32, i32
  }
  func.func @transform_3(%arg0: i32) -> (i32, i32) {
    %c0_i32 = arith.constant 0 : i32
    %c0_i32_0 = arith.constant 0 : i32
    %c0_i32_1 = arith.constant 0 : i32
    return %c0_i32, %c0_i32_0 : i32, i32
  }
  func.func @transform_4(%arg0: i32) -> (i32, i32) {
    %c0_i32 = arith.constant 0 : i32
    %c0_i32_0 = arith.constant 0 : i32
    %c0_i32_1 = arith.constant 0 : i32
    return %c0_i32, %c0_i32_0 : i32, i32
  }
  func.func @transform_5(%arg0: i32) -> (i32, i32) {
    %c0_i32 = arith.constant 0 : i32
    %c0_i32_0 = arith.constant 0 : i32
    %c0_i32_1 = arith.constant 0 : i32
    return %c0_i32, %c0_i32_0 : i32, i32
  }
}

module attributes {stable_mosaic.version = 11 : i64} {
  func.func @_matmul_bn_relu_kernel(%arg0: i32, %arg1: memref<512x144xbf16, #tpu.memory_space<vmem>>, %arg2: memref<144x128xbf16, #tpu.memory_space<vmem>>, %arg3: memref<128x128xf32, #tpu.memory_space<vmem>>, %arg4: memref<1x128xf32, #tpu.memory_space<vmem>>, %arg5: memref<1x128xf32, #tpu.memory_space<vmem>>, %arg6: memref<512x128xbf16, #tpu.memory_space<vmem>>) attributes {dimension_semantics = [#tpu.dimension_semantics<arbitrary>], iteration_bounds = array<i64: 1>, scalar_prefetch = 0 : i64, scratch_operands = 0 : i64, tpu.core_type = #tpu.core_type<tc>, window_params = [{pipeline_mode = #tpu.pipeline_mode<synchronous>, transform_indices = @transform_0, window_bounds = array<i64: 512, 144>}, {pipeline_mode = #tpu.pipeline_mode<synchronous>, transform_indices = @transform_1, window_bounds = array<i64: 144, 128>}, {pipeline_mode = #tpu.pipeline_mode<synchronous>, transform_indices = @transform_2, window_bounds = array<i64: 128, 128>}, {pipeline_mode = #tpu.pipeline_mode<synchronous>, transform_indices = @transform_3, window_bounds = array<i64: 1, 128>}, {pipeline_mode = #tpu.pipeline_mode<synchronous>, transform_indices = @transform_4, window_bounds = array<i64: 1, 128>}, {pipeline_mode = #tpu.pipeline_mode<synchronous>, transform_indices = @transform_5, window_bounds = array<i64: 512, 128>}]} {
    %c0 = arith.constant 0 : index
    %c0_0 = arith.constant 0 : index
    %0 = vector.load %arg1[%c0, %c0_0] : memref<512x144xbf16, #tpu.memory_space<vmem>>, vector<512x144xbf16>
    %c0_1 = arith.constant 0 : index
    %c0_2 = arith.constant 0 : index
    %1 = vector.load %arg2[%c0_1, %c0_2] : memref<144x128xbf16, #tpu.memory_space<vmem>>, vector<144x128xbf16>
    %cst = arith.constant dense<0.000000e+00> : vector<512x128xf32>
    %2 = tpu.matmul %0, %1, %cst {dimension_numbers = #tpu.dot_dimension_numbers<[1], [0], [0], [1], [0, 0, 1, 1], [], []>} : vector<512x144xbf16>, vector<144x128xbf16>, vector<512x128xf32> -> vector<512x128xf32>
    %cst_3 = arith.constant dense<0.000000e+00> : vector<128xf32>
    %3 = vector.multi_reduction <add>, %2, %cst_3 [0] : vector<512x128xf32> to vector<128xf32>
    %4 = vector.shape_cast %3 : vector<128xf32> to vector<1x128xf32>
    %5 = arith.mulf %2, %2 : vector<512x128xf32>
    %cst_4 = arith.constant dense<0.000000e+00> : vector<128xf32>
    %6 = vector.multi_reduction <add>, %5, %cst_4 [0] : vector<512x128xf32> to vector<128xf32>
    %7 = vector.shape_cast %6 : vector<128xf32> to vector<1x128xf32>
    %8 = tpu.concatenate %4, %7 in 0 : vector<1x128xf32>, vector<1x128xf32> -> vector<2x128xf32>
    %c0_5 = arith.constant 0 : index
    %c0_6 = arith.constant 0 : index
    %9 = vector.load %arg3[%c0_5, %c0_6] : memref<128x128xf32, #tpu.memory_space<vmem>>, vector<128x128xf32>
    %cst_7 = arith.constant dense<0.000000e+00> : vector<2x128xf32>
    %10 = tpu.matmul %8, %9, %cst_7 {dimension_numbers = #tpu.dot_dimension_numbers<[1], [0], [0], [1], [0, 0, 1, 1], [], []>} : vector<2x128xf32>, vector<128x128xf32>, vector<2x128xf32> -> vector<2x128xf32>
    %11 = vector.extract_strided_slice %10 {offsets = [0, 0], sizes = [1, 128], strides = [1, 1]} : vector<2x128xf32> to vector<1x128xf32>
    %cst_8 = arith.constant 4.8828125E-4 : f32
    %12 = vector.broadcast %cst_8 : f32 to vector<1x128xf32>
    %13 = arith.mulf %11, %12 : vector<1x128xf32>
    %14 = vector.extract_strided_slice %10 {offsets = [1, 0], sizes = [1, 128], strides = [1, 1]} : vector<2x128xf32> to vector<1x128xf32>
    %cst_9 = arith.constant 4.8828125E-4 : f32
    %15 = vector.broadcast %cst_9 : f32 to vector<1x128xf32>
    %16 = arith.mulf %14, %15 : vector<1x128xf32>
    %17 = arith.mulf %13, %13 : vector<1x128xf32>
    %18 = arith.subf %16, %17 : vector<1x128xf32>
    %c0_10 = arith.constant 0 : index
    %c0_11 = arith.constant 0 : index
    %19 = vector.load %arg4[%c0_10, %c0_11] : memref<1x128xf32, #tpu.memory_space<vmem>>, vector<1x128xf32>
    %cst_12 = arith.constant 9.99999974E-6 : f32
    %20 = vector.broadcast %cst_12 : f32 to vector<1x128xf32>
    %21 = arith.addf %18, %20 : vector<1x128xf32>
    %22 = math.rsqrt %21 : vector<1x128xf32>
    %23 = arith.mulf %19, %22 : vector<1x128xf32>
    %c0_13 = arith.constant 0 : index
    %c0_14 = arith.constant 0 : index
    %24 = vector.load %arg5[%c0_13, %c0_14] : memref<1x128xf32, #tpu.memory_space<vmem>>, vector<1x128xf32>
    %25 = arith.mulf %13, %23 : vector<1x128xf32>
    %26 = arith.subf %24, %25 : vector<1x128xf32>
    %27 = vector.broadcast %23 : vector<1x128xf32> to vector<512x128xf32>
    %28 = arith.mulf %2, %27 : vector<512x128xf32>
    %29 = vector.broadcast %26 : vector<1x128xf32> to vector<512x128xf32>
    %30 = arith.addf %28, %29 : vector<512x128xf32>
    %cst_15 = arith.constant 0.000000e+00 : f32
    %31 = vector.broadcast %cst_15 : f32 to vector<512x128xf32>
    %32 = arith.maximumf %30, %31 : vector<512x128xf32>
    %33 = arith.truncf %32 : vector<512x128xf32> to vector<512x128xbf16>
    %c0_16 = arith.constant 0 : index
    %c0_17 = arith.constant 0 : index
    %34 = vector.load %arg6[%c0_16, %c0_17] : memref<512x128xbf16, #tpu.memory_space<vmem>>, vector<512x128xbf16>
    tpu.vector_store %arg6[%c0_16, %c0_17], %33 {strides = array<i32>} : memref<512x128xbf16, #tpu.memory_space<vmem>>, vector<512x128xbf16>,
    return
  }
  func.func @transform_0(%arg0: i32) -> (i32, i32) {
    %c0_i32 = arith.constant 0 : i32
    %c0_i32_0 = arith.constant 0 : i32
    %c0_i32_1 = arith.constant 0 : i32
    return %c0_i32, %c0_i32_0 : i32, i32
  }
  func.func @transform_1(%arg0: i32) -> (i32, i32) {
    %c0_i32 = arith.constant 0 : i32
    %c0_i32_0 = arith.constant 0 : i32
    %c0_i32_1 = arith.constant 0 : i32
    return %c0_i32, %c0_i32_0 : i32, i32
  }
  func.func @transform_2(%arg0: i32) -> (i32, i32) {
    %c0_i32 = arith.constant 0 : i32
    %c0_i32_0 = arith.constant 0 : i32
    %c0_i32_1 = arith.constant 0 : i32
    return %c0_i32, %c0_i32_0 : i32, i32
  }
  func.func @transform_3(%arg0: i32) -> (i32, i32) {
    %c0_i32 = arith.constant 0 : i32
    %c0_i32_0 = arith.constant 0 : i32
    %c0_i32_1 = arith.constant 0 : i32
    return %c0_i32, %c0_i32_0 : i32, i32
  }
  func.func @transform_4(%arg0: i32) -> (i32, i32) {
    %c0_i32 = arith.constant 0 : i32
    %c0_i32_0 = arith.constant 0 : i32
    %c0_i32_1 = arith.constant 0 : i32
    return %c0_i32, %c0_i32_0 : i32, i32
  }
  func.func @transform_5(%arg0: i32) -> (i32, i32) {
    %c0_i32 = arith.constant 0 : i32
    %c0_i32_0 = arith.constant 0 : i32
    %c0_i32_1 = arith.constant 0 : i32
    return %c0_i32, %c0_i32_0 : i32, i32
  }
}

module attributes {stable_mosaic.version = 11 : i64} {
  func.func @_matmul_tanh_kernel(%arg0: i32, %arg1: memref<1024x72xbf16, #tpu.memory_space<vmem>>, %arg2: memref<72x128xbf16, #tpu.memory_space<vmem>>, %arg3: memref<1024x128xf32, #tpu.memory_space<vmem>>) attributes {dimension_semantics = [#tpu.dimension_semantics<parallel>], iteration_bounds = array<i64: 2>, scalar_prefetch = 0 : i64, scratch_operands = 0 : i64, tpu.core_type = #tpu.core_type<tc>, window_params = [{transform_indices = @transform_0, window_bounds = array<i64: 1024, 72>}, {pipeline_mode = #tpu.pipeline_mode<synchronous>, transform_indices = @transform_1, window_bounds = array<i64: 72, 128>}, {transform_indices = @transform_2, window_bounds = array<i64: 1024, 128>}]} {
    %c0 = arith.constant 0 : index
    %c0_0 = arith.constant 0 : index
    %0 = vector.load %arg1[%c0, %c0_0] : memref<1024x72xbf16, #tpu.memory_space<vmem>>, vector<1024x72xbf16>
    %c0_1 = arith.constant 0 : index
    %c0_2 = arith.constant 0 : index
    %1 = vector.load %arg2[%c0_1, %c0_2] : memref<72x128xbf16, #tpu.memory_space<vmem>>, vector<72x128xbf16>
    %cst = arith.constant dense<0.000000e+00> : vector<1024x128xf32>
    %2 = tpu.matmul %0, %1, %cst {dimension_numbers = #tpu.dot_dimension_numbers<[1], [0], [0], [1], [0, 0, 1, 1], [], []>} : vector<1024x72xbf16>, vector<72x128xbf16>, vector<1024x128xf32> -> vector<1024x128xf32>
    %3 = math.tanh %2 : vector<1024x128xf32>
    %c0_3 = arith.constant 0 : index
    %c0_4 = arith.constant 0 : index
    %4 = vector.load %arg3[%c0_3, %c0_4] : memref<1024x128xf32, #tpu.memory_space<vmem>>, vector<1024x128xf32>
    tpu.vector_store %arg3[%c0_3, %c0_4], %3 {strides = array<i32>} : memref<1024x128xf32, #tpu.memory_space<vmem>>, vector<1024x128xf32>,
    return
  }
  func.func @transform_0(%arg0: i32) -> (i32, i32) {
    %c0_i32 = arith.constant 0 : i32
    %c0_i32_0 = arith.constant 0 : i32
    return %arg0, %c0_i32 : i32, i32
  }
  func.func @transform_1(%arg0: i32) -> (i32, i32) {
    %c0_i32 = arith.constant 0 : i32
    %c0_i32_0 = arith.constant 0 : i32
    %c0_i32_1 = arith.constant 0 : i32
    return %c0_i32, %c0_i32_0 : i32, i32
  }
  func.func @transform_2(%arg0: i32) -> (i32, i32) {
    %c0_i32 = arith.constant 0 : i32
    %c0_i32_0 = arith.constant 0 : i32
    return %arg0, %c0_i32 : i32, i32
  }
}

</mosaic_0001>

<llo_original>
// kernel: generator_forward.5
$region0: #{generator_forward.5}
  #allocation0 [shape = 'u32[]', space=smem, size = 0x4, offset = 0x4, fixed_abs, tag = 'smem constant byte address 0x4 - core index']
  #allocation1 [shape = 'u32[144,128]{1,0:T(1,128)}', space=vmem, size = 0x12000, scoped, tag = 'internal scratch']
  %s0 = inlined_call_operand.vmem [shape: bf16[32,320], index: 0, kind: input, shape index: {}]
  %s1 = inlined_call_operand.vmem [shape: bf16[320,128], index: 1, kind: input, shape index: {}]
  %s2 = inlined_call_operand.vmem [shape: f32[128,128], index: 2, kind: input, shape index: {}]
  %s3 = inlined_call_operand.vmem [shape: f32[1,128], index: 3, kind: input, shape index: {}]
  %s4 = inlined_call_operand.vmem [shape: f32[1,128], index: 4, kind: input, shape index: {}]
  %s5 = inlined_call_operand.vmem [shape: bf16[32,128], index: 5, kind: output, shape index: {}]
  %s6 = sld [smem:[#allocation0]]
  $region30: #{generator_forward.5} parent=0
    _
  %s8 = ssub.s32 1, %s6
  %s9 = scalar_select 0, %s8, %s6
  // Predicated region
  $region2: #{generator_forward.5} parent=0 // pred_check
    _
  $region3: #{generator_forward.5} parent=0 // pred_check_branch
    %11 = sbr.rel (0) target = $region5
  $region4: #{generator_forward.5} parent=0 // pred_region
    _
  $region5: #{generator_forward.5} parent=0 // pred_fallthru
    _
  // Predicated region
  $region6: #{generator_forward.5} parent=0 // pred_check
    _
  $region7: #{generator_forward.5} parent=0 // pred_check_branch
    %13 = sbr.rel (0) target = $region9
  $region8: #{generator_forward.5} parent=0 // pred_region
    _
  $region9: #{generator_forward.5} parent=0 // pred_fallthru
    _
  // Predicated region
  $region10: #{generator_forward.5} parent=0 // pred_check
    _
  $region11: #{generator_forward.5} parent=0 // pred_check_branch
    %15 = sbr.rel (0) target = $region13
  $region12: #{generator_forward.5} parent=0 // pred_region
    _
  $region13: #{generator_forward.5} parent=0 // pred_fallthru
    _
  // Predicated region
  $region14: #{generator_forward.5} parent=0 // pred_check
    _
  $region15: #{generator_forward.5} parent=0 // pred_check_branch
    %17 = sbr.rel (0) target = $region17
  $region16: #{generator_forward.5} parent=0 // pred_region
    _
  $region17: #{generator_forward.5} parent=0 // pred_fallthru
    _
  // Predicated region
  $region18: #{generator_forward.5} parent=0 // pred_check
    _
  $region19: #{generator_forward.5} parent=0 // pred_check_branch
    %19 = sbr.rel (0) target = $region21
  $region20: #{generator_forward.5} parent=0 // pred_region
    _
  $region21: #{generator_forward.5} parent=0 // pred_fallthru
    _
  %v21 = vld [vmem:[%s0] sm:$0xff]
  %v22 = vld [vmem:[%s0 + $0x8] sm:$0xf]
  %v23 = vld [vmem:[%s0 + $0xc] sm:$0xff]
  %v24 = vld [vmem:[%s0 + $0x14] sm:$0xf]
  %v25 = vld [vmem:[%s0 + $0x18] sm:$0xff]
  %v26 = vld [vmem:[%s0 + $0x20] sm:$0xf]
  %v27 = vld [vmem:[%s0 + $0x24] sm:$0xff]
  %v28 = vld [vmem:[%s0 + $0x2c] sm:$0xf]
  %v29 = vld [vmem:[%s1] sm:$0xf]
  %v30 = vld [vmem:[%s1 + $0x4] sm:$0xf]
  %v31 = vld [vmem:[%s1 + $0x8] sm:$0xf]
  %v32 = vld [vmem:[%s1 + $0xc] sm:$0xf]
  %v33 = vld [vmem:[%s1 + $0x10] sm:$0xf]
  %v34 = vld [vmem:[%s1 + $0x14] sm:$0xf]
  %v35 = vld [vmem:[%s1 + $0x18] sm:$0xf]
  %v36 = vld [vmem:[%s1 + $0x1c] sm:$0xf]
  %v37 = vld [vmem:[%s1 + $0x20] sm:$0xf]
  %v38 = vld [vmem:[%s1 + $0x24] sm:$0xf]
  %v39 = vld [vmem:[%s1 + $0x28] sm:$0xf]
  %v40 = vld [vmem:[%s1 + $0x2c] sm:$0xf]
  %v41 = vld [vmem:[%s1 + $0x30] sm:$0xf]
  %v42 = vld [vmem:[%s1 + $0x34] sm:$0xf]
  %v43 = vld [vmem:[%s1 + $0x38] sm:$0xf]
  %v44 = vld [vmem:[%s1 + $0x3c] sm:$0xf]
  %v45 = vld [vmem:[%s1 + $0x40] sm:$0xf]
  %v46 = vld [vmem:[%s1 + $0x44] sm:$0xf]
  %v47 = vld [vmem:[%s1 + $0x48] sm:$0xf]
  %v48 = vld [vmem:[%s1 + $0x4c] sm:$0xf]
  %v49 = vld [vmem:[%s1 + $0x50] sm:$0xf]
  %v50 = vld [vmem:[%s1 + $0x54] sm:$0xf]
  %v51 = vld [vmem:[%s1 + $0x58] sm:$0xf]
  %v52 = vld [vmem:[%s1 + $0x5c] sm:$0xf]
  %v53 = vld [vmem:[%s1 + $0x60] sm:$0xf]
  %v54 = vld [vmem:[%s1 + $0x64] sm:$0xf]
  %v55 = vld [vmem:[%s1 + $0x68] sm:$0xf]
  %v56 = vld [vmem:[%s1 + $0x6c] sm:$0xf]
  %v57 = vld [vmem:[%s1 + $0x70] sm:$0xf]
  %v58 = vld [vmem:[%s1 + $0x74] sm:$0xf]
  %v59 = vld [vmem:[%s1 + $0x78] sm:$0xf]
  %v60 = vld [vmem:[%s1 + $0x7c] sm:$0xf]
  %v61 = vld [vmem:[%s1 + $0x80] sm:$0xf]
  %v62 = vld [vmem:[%s1 + $0x84] sm:$0xf]
  %v63 = vld [vmem:[%s1 + $0x88] sm:$0xf]
  %v64 = vld [vmem:[%s1 + $0x8c] sm:$0xf]
  %v65 = vld [vmem:[%s1 + $0x90] sm:$0xf]
  %v66 = vld [vmem:[%s1 + $0x94] sm:$0xf]
  %v67 = vld [vmem:[%s1 + $0x98] sm:$0xf]
  %v68 = vld [vmem:[%s1 + $0x9c] sm:$0xf]
  %v77 = vunpack.c.l.b16 %v21
  %v78 = vunpack.c.h.b16 %v21
  %v79 = vunpack.c.l.b16 %v22
  %v80 = vunpack.c.l.b16 %v23
  %v81 = vunpack.c.h.b16 %v23
  %v82 = vunpack.c.l.b16 %v24
  %v83 = vunpack.c.l.b16 %v25
  %v84 = vunpack.c.h.b16 %v25
  %v85 = vunpack.c.l.b16 %v26
  %v86 = vunpack.c.l.b16 %v27
  %v87 = vunpack.c.h.b16 %v27
  %v88 = vunpack.c.l.b16 %v28
  %v89 = vpack.c.b16 %v80, %v77
  %v90 = vpack.c.b16 %v81, %v78
  %v91 = vpack.c.b16 %v82, %v79
  %v92 = vpack.c.b16 %v86, %v83
  %v93 = vpack.c.b16 %v87, %v84
  %v94 = vpack.c.b16 %v88, %v85
  %v139 = vunpack.c.l.b16 %v29
  %v140 = vunpack.c.l.b16 %v30
  %v141 = vunpack.c.l.b16 %v31
  %v142 = vunpack.c.l.b16 %v32
  %v143 = vunpack.c.l.b16 %v33
  %v144 = vunpack.c.l.b16 %v34
  %v145 = vunpack.c.l.b16 %v35
  %v146 = vunpack.c.l.b16 %v36
  %v147 = vunpack.c.l.b16 %v37
  %v148 = vunpack.c.l.b16 %v38
  %v149 = vunpack.c.l.b16 %v39
  %v150 = vunpack.c.l.b16 %v40
  %v151 = vunpack.c.l.b16 %v41
  %v152 = vunpack.c.l.b16 %v42
  %v153 = vunpack.c.l.b16 %v43
  %v154 = vunpack.c.l.b16 %v44
  %v155 = vunpack.c.l.b16 %v45
  %v156 = vunpack.c.l.b16 %v46
  %v157 = vunpack.c.l.b16 %v47
  %v158 = vunpack.c.l.b16 %v48
  %v159 = vunpack.c.l.b16 %v49
  %v160 = vunpack.c.l.b16 %v50
  %v161 = vunpack.c.l.b16 %v51
  %v162 = vunpack.c.l.b16 %v52
  %v163 = vunpack.c.l.b16 %v53
  %v164 = vunpack.c.l.b16 %v54
  %v165 = vunpack.c.l.b16 %v55
  %v166 = vunpack.c.l.b16 %v56
  %v167 = vunpack.c.l.b16 %v57
  %v168 = vunpack.c.l.b16 %v58
  %v169 = vunpack.c.l.b16 %v59
  %v170 = vunpack.c.l.b16 %v60
  %v171 = vunpack.c.l.b16 %v61
  %v172 = vunpack.c.l.b16 %v62
  %v173 = vunpack.c.l.b16 %v63
  %v174 = vunpack.c.l.b16 %v64
  %v175 = vunpack.c.l.b16 %v65
  %v176 = vunpack.c.l.b16 %v66
  %v177 = vunpack.c.l.b16 %v67
  %v178 = vunpack.c.l.b16 %v68
  %v179 = vpack.c.b16 %v140, %v139
  %v180 = vpack.c.b16 %v142, %v141
  %v181 = vpack.c.b16 %v144, %v143
  %v182 = vpack.c.b16 %v146, %v145
  %v183 = vpack.c.b16 %v148, %v147
  %v184 = vpack.c.b16 %v150, %v149
  %v185 = vpack.c.b16 %v152, %v151
  %v186 = vpack.c.b16 %v154, %v153
  %v187 = vpack.c.b16 %v156, %v155
  %v188 = vpack.c.b16 %v158, %v157
  %v189 = vpack.c.b16 %v160, %v159
  %v190 = vpack.c.b16 %v162, %v161
  %v191 = vpack.c.b16 %v164, %v163
  %v192 = vpack.c.b16 %v166, %v165
  %v193 = vpack.c.b16 %v168, %v167
  %v194 = vpack.c.b16 %v170, %v169
  %v195 = vpack.c.b16 %v172, %v171
  %v196 = vpack.c.b16 %v174, %v173
  %v197 = vpack.c.b16 %v176, %v175
  %v198 = vpack.c.b16 %v178, %v177
  %vm219 = vcmask 523264
  %v221 = vsel %vm219, %v91, 0
  %v224 = vsel %vm219, %v94, 0
  %226 = vmatprep.subr.bf16.mxu0 0
  %227 = vmatpush1.bf16.msra.mxu0 %v186
  %228 = vmatprep.subr.bf16.mxu0 0
  %229 = vmatpush1.bf16.msra.mxu0 %v185
  %230 = vmatprep.subr.bf16.mxu0 0
  %231 = vmatpush1.bf16.msra.mxu0 %v184
  %232 = vmatprep.subr.bf16.mxu0 0
  %233 = vmatpush1.bf16.msra.mxu0 %v183
  %234 = vmatprep.subr.bf16.mxu0 0
  %235 = vmatpush1.bf16.msra.mxu0 %v182
  %236 = vmatprep.subr.bf16.mxu0 0
  %237 = vmatpush1.bf16.msra.mxu0 %v181
  %238 = vmatprep.subr.bf16.mxu0 0
  %239 = vmatpush1.bf16.msra.mxu0 %v180
  %240 = vmatprep.subr.bf16.mxu0 0
  %241 = vmatpush1.bf16.msra.mxu0 %v179
  %242 = vmatprep.subr.bf16.mxu0 0
  %243 = vmatpush2.bf16.msra.mxu0 %v194
  %244 = vmatprep.subr.bf16.mxu0 0
  %245 = vmatpush2.bf16.msra.mxu0 %v193
  %246 = vmatprep.subr.bf16.mxu0 0
  %247 = vmatpush2.bf16.msra.mxu0 %v192
  %248 = vmatprep.subr.bf16.mxu0 0
  %249 = vmatpush2.bf16.msra.mxu0 %v191
  %250 = vmatprep.subr.bf16.mxu0 0
  %251 = vmatpush2.bf16.msra.mxu0 %v190
  %252 = vmatprep.subr.bf16.mxu0 0
  %253 = vmatpush2.bf16.msra.mxu0 %v189
  %254 = vmatprep.subr.bf16.mxu0 0
  %255 = vmatpush2.bf16.msra.mxu0 %v188
  %256 = vmatprep.subr.bf16.mxu0 0
  %257 = vmatpush2.bf16.msra.mxu0 %v187
  %258 = vmatprep.mubr.bf16.mxu0 %v90
  %259 = vmatmul.mubr.bf16.gmra.mxu0 %v89
  %v260 = vpop.f32.mrf.mxu0
  %v261 = vadd.f32 0.0, %v260
  %v262 = vpop.f32.mrf.mxu0
  %v263 = vpop.f32.mrf.mxu0
  %v264 = vadd.f32 0.0, %v263
  %v265 = vpop.f32.mrf.mxu0
  %266 = vmatprep.mubr.bf16.mxu0 %v93
  %267 = vmatmul.mubr.bf16.gmra.mxu0 %v92
  %v268 = vpop.f32.mrf.mxu0
  %v269 = vadd.f32 0.0, %v268
  %v270 = vpop.f32.mrf.mxu0
  %v271 = vpop.f32.mrf.mxu0
  %v272 = vadd.f32 0.0, %v271
  %v273 = vpop.f32.mrf.mxu0
  %274 = vdwg.mxu0
  %275 = vmatprep.subr.bf16.mxu0 0
  %276 = vmatpush1.bf16.msra.mxu0 0
  %277 = vmatprep.subr.bf16.mxu0 0
  %278 = vmatpush1.bf16.msra.mxu0 0
  %279 = vmatprep.subr.bf16.mxu0 0
  %280 = vmatpush1.bf16.msra.mxu0 0
  %281 = vmatprep.subr.bf16.mxu0 0
  %282 = vmatpush1.bf16.msra.mxu0 0
  %283 = vmatprep.subr.bf16.mxu0 0
  %284 = vmatpush1.bf16.msra.mxu0 %v198
  %285 = vmatprep.subr.bf16.mxu0 0
  %286 = vmatpush1.bf16.msra.mxu0 %v197
  %287 = vmatprep.subr.bf16.mxu0 0
  %288 = vmatpush1.bf16.msra.mxu0 %v196
  %289 = vmatprep.subr.bf16.mxu0 0
  %290 = vmatpush1.bf16.msra.mxu0 %v195
  %291 = vmatprep.subr.bf16.mxu0 0
  %292 = vmatpush2.bf16.msra.mxu0 0
  %293 = vmatprep.subr.bf16.mxu0 0
  %294 = vmatpush2.bf16.msra.mxu0 0
  %295 = vmatprep.subr.bf16.mxu0 0
  %296 = vmatpush2.bf16.msra.mxu0 0
  %297 = vmatprep.subr.bf16.mxu0 0
  %298 = vmatpush2.bf16.msra.mxu0 0
  %299 = vmatprep.subr.bf16.mxu0 0
  %300 = vmatpush2.bf16.msra.mxu0 0
  %301 = vmatprep.subr.bf16.mxu0 0
  %302 = vmatpush2.bf16.msra.mxu0 0
  %303 = vmatprep.subr.bf16.mxu0 0
  %304 = vmatpush2.bf16.msra.mxu0 0
  %305 = vmatprep.subr.bf16.mxu0 0
  %306 = vmatpush2.bf16.msra.mxu0 0
  %307 = vmatprep.mubr.bf16.mxu0 0
  %308 = vmatmul.mubr.bf16.gmra.mxu0 %v221
  %v309 = vpop.f32.mrf.mxu0
  %v310 = vadd.f32 %v261, %v309
  %v311 = vpop.f32.mrf.mxu0
  %v312 = vpop.f32.mrf.mxu0
  %v313 = vadd.f32 %v264, %v312
  %v314 = vpop.f32.mrf.mxu0
  %315 = vmatprep.mubr.bf16.mxu0 0
  %316 = vmatmul.mubr.bf16.gmra.mxu0 %v224
  %v317 = vpop.f32.mrf.mxu0
  %v318 = vadd.f32 %v269, %v317
  %v319 = vpop.f32.mrf.mxu0
  %v320 = vpop.f32.mrf.mxu0
  %v321 = vadd.f32 %v272, %v320
  %v322 = vpop.f32.mrf.mxu0
  %323 = vdwg.mxu0
  %v324 = vadd.f32 %v310, %v313
  %v325 = vadd.f32 %v324, %v318
  %v326 = vadd.f32 %v325, %v321
  %v327 = vrot.slane %v326, 4
  %v328 = vadd.f32 %v326, %v327
  %v329 = vrot.slane %v328, 2
  %v330 = vadd.f32 %v328, %v329
  %v331 = vrot.slane %v330, 1
  %v332 = vadd.f32 %v330, %v331
  %v333 = vmul.f32 %v310, %v310
  %v334 = vmul.f32 %v313, %v313
  %v335 = vmul.f32 %v318, %v318
  %v336 = vmul.f32 %v321, %v321
  %v337 = vadd.f32 %v333, %v334
  %v338 = vadd.f32 %v337, %v335
  %v339 = vadd.f32 %v338, %v336
  %v340 = vrot.slane %v339, 4
  %v341 = vadd.f32 %v339, %v340
  %v342 = vrot.slane %v341, 2
  %v343 = vadd.f32 %v341, %v342
  %v344 = vrot.slane %v343, 1
  %v345 = vadd.f32 %v343, %v344
  %vm346 = vcmask 1040384
  %v347 = vsel %vm346, %v332, %v345
  %v348 = vld [vmem:[%s2] sm:$0xff]
  %v349 = vld [vmem:[%s2 + $0x8] sm:$0xff]
  %v350 = vld [vmem:[%s2 + $0x10] sm:$0xff]
  %v351 = vld [vmem:[%s2 + $0x18] sm:$0xff]
  %v352 = vld [vmem:[%s2 + $0x20] sm:$0xff]
  %v353 = vld [vmem:[%s2 + $0x28] sm:$0xff]
  %v354 = vld [vmem:[%s2 + $0x30] sm:$0xff]
  %v355 = vld [vmem:[%s2 + $0x38] sm:$0xff]
  %v356 = vld [vmem:[%s2 + $0x40] sm:$0xff]
  %v357 = vld [vmem:[%s2 + $0x48] sm:$0xff]
  %v358 = vld [vmem:[%s2 + $0x50] sm:$0xff]
  %v359 = vld [vmem:[%s2 + $0x58] sm:$0xff]
  %v360 = vld [vmem:[%s2 + $0x60] sm:$0xff]
  %v361 = vld [vmem:[%s2 + $0x68] sm:$0xff]
  %v362 = vld [vmem:[%s2 + $0x70] sm:$0xff]
  %v363 = vld [vmem:[%s2 + $0x78] sm:$0xff]
  %364 = vmatprep.subr.mxu0 0.0
  %365 = vmatpush1.msra.mxu0 %v363
  %366 = vmatprep.subr.mxu0 0.0
  %367 = vmatpush1.msra.mxu0 %v362
  %368 = vmatprep.subr.mxu0 0.0
  %369 = vmatpush1.msra.mxu0 %v361
  %370 = vmatprep.subr.mxu0 0.0
  %371 = vmatpush1.msra.mxu0 %v360
  %372 = vmatprep.subr.mxu0 0.0
  %373 = vmatpush1.msra.mxu0 %v359
  %374 = vmatprep.subr.mxu0 0.0
  %375 = vmatpush1.msra.mxu0 %v358
  %376 = vmatprep.subr.mxu0 0.0
  %377 = vmatpush1.msra.mxu0 %v357
  %378 = vmatprep.subr.mxu0 0.0
  %379 = vmatpush1.msra.mxu0 %v356
  %380 = vmatprep.subr.mxu0 0.0
  %381 = vmatpush1.msra.mxu0 %v355
  %382 = vmatprep.subr.mxu0 0.0
  %383 = vmatpush1.msra.mxu0 %v354
  %384 = vmatprep.subr.mxu0 0.0
  %385 = vmatpush1.msra.mxu0 %v353
  %386 = vmatprep.subr.mxu0 0.0
  %387 = vmatpush1.msra.mxu0 %v352
  %388 = vmatprep.subr.mxu0 0.0
  %389 = vmatpush1.msra.mxu0 %v351
  %390 = vmatprep.subr.mxu0 0.0
  %391 = vmatpush1.msra.mxu0 %v350
  %392 = vmatprep.subr.mxu0 0.0
  %393 = vmatpush1.msra.mxu0 %v349
  %394 = vmatprep.subr.mxu0 0.0
  %395 = vmatpush1.msra.mxu0 %v348
  %396 = vmatprep.subr.mxu0 0.0
  %397 = vmatpush2.msra.mxu0 0.0
  %398 = vmatprep.subr.mxu0 0.0
  %399 = vmatpush2.msra.mxu0 0.0
  %400 = vmatprep.subr.mxu0 0.0
  %401 = vmatpush2.msra.mxu0 0.0
  %402 = vmatprep.subr.mxu0 0.0
  %403 = vmatpush2.msra.mxu0 0.0
  %404 = vmatprep.subr.mxu0 0.0
  %405 = vmatpush2.msra.mxu0 0.0
  %406 = vmatprep.subr.mxu0 0.0
  %407 = vmatpush2.msra.mxu0 0.0
  %408 = vmatprep.subr.mxu0 0.0
  %409 = vmatpush2.msra.mxu0 0.0
  %410 = vmatprep.subr.mxu0 0.0
  %411 = vmatpush2.msra.mxu0 0.0
  %412 = vmatprep.subr.mxu0 0.0
  %413 = vmatpush2.msra.mxu0 0.0
  %414 = vmatprep.subr.mxu0 0.0
  %415 = vmatpush2.msra.mxu0 0.0
  %416 = vmatprep.subr.mxu0 0.0
  %417 = vmatpush2.msra.mxu0 0.0
  %418 = vmatprep.subr.mxu0 0.0
  %419 = vmatpush2.msra.mxu0 0.0
  %420 = vmatprep.subr.mxu0 0.0
  %421 = vmatpush2.msra.mxu0 0.0
  %422 = vmatprep.subr.mxu0 0.0
  %423 = vmatpush2.msra.mxu0 0.0
  %424 = vmatprep.subr.mxu0 0.0
  %425 = vmatpush2.msra.mxu0 0.0
  %426 = vmatprep.subr.mxu0 0.0
  %427 = vmatpush2.msra.mxu0 0.0
  %428 = vmatprep.mubr.f32.mxu0 0.0
  %429 = vmatmul.mubr.f32.gmra.mxu0 %v347
  %v430 = vpop.f32.mrf.mxu0
  %v431 = vadd.f32 0.0, %v430
  %v432 = vpop.f32.mrf.mxu0
  %433 = vdwg.mxu0
  %v434 = vmul.f32 %v431, 0.03125
  %v435 = vmul.f32 %v434, %v434
  %v437 = vrot.slane %v435, 7
  %v439 = vsub.f32 %v434, %v437
  %v440 = vld [vmem:[%s3] sm:$0x1]
  %v441 = vadd.f32 %v439, 1e-05
  %v442 = vrsqrt.pop %v441
  %v445 = vunpack.c.l.s4 1966171168
  %v446 = vunpack.c.0.s8 %v445
  %v447 = vlaneseq
  %v448 = vshrl.u32 %v447, 7
  %v449 = vsub.s32 %v446, %v448
  %v450 = vrot.slane %v442, %v449
  %v451 = vcombine.high %v450, %v450
  %v453 = vunpack.c.l.s4 1966171168
  %v454 = vunpack.c.0.s8 %v453
  %v455 = vlaneseq
  %v456 = vshrl.u32 %v455, 7
  %v457 = vsub.s32 %v454, %v456
  %v458 = vrot.slane %v451, %v457
  %v460 = vmul.f32 %v440, %v458
  %v461 = vld [vmem:[%s4] sm:$0x1]
  %v462 = vmul.f32 %v434, %v460
  %v463 = vsub.f32 %v461, %v462
  %v465 = vlaneseq
  %v466 = vshrl.u32 %v465, 7
  %v467 = vsub.s32 0, %v466
  %v468 = vrot.slane %v460, %v467
  %v470 = vmul.f32 %v310, %v468
  %v471 = vmul.f32 %v313, %v468
  %v472 = vmul.f32 %v318, %v468
  %v473 = vmul.f32 %v321, %v468
  %v475 = vlaneseq
  %v476 = vshrl.u32 %v475, 7
  %v477 = vsub.s32 0, %v476
  %v478 = vrot.slane %v463, %v477
  %v480 = vadd.f32 %v470, %v478
  %v481 = vadd.f32 %v471, %v478
  %v482 = vadd.f32 %v472, %v478
  %v483 = vadd.f32 %v473, %v478
  %v484 = vmax.f32 %v480, 0.0
  %v485 = vmax.f32 %v481, 0.0
  %v486 = vmax.f32 %v482, 0.0
  %v487 = vmax.f32 %v483, 0.0
  %v488 = vpack.c.bf16 %v485, %v484
  %v489 = vpack.c.bf16 %v487, %v486
  %v492 = vunpack.c.l.b16 %v488
  %v493 = vunpack.c.h.b16 %v488
  %v494 = vunpack.c.l.b16 %v489
  %v495 = vunpack.c.h.b16 %v489
  %v496 = vpack.c.b16 %v492, %v492
  %v497 = vpack.c.b16 %v493, %v493
  %v498 = vpack.c.b16 %v494, %v494
  %v499 = vpack.c.b16 %v495, %v495
  %504 = vst [vmem:[%s5] sm:$0xf] %v496
  %505 = vst [vmem:[%s5 + $0x4] sm:$0xf] %v497
  %506 = vst [vmem:[%s5 + $0x8] sm:$0xf] %v498
  %507 = vst [vmem:[%s5 + $0xc] sm:$0xf] %v499
  // Predicated region
  $region22: #{generator_forward.5} parent=0 // pred_check
    _
  $region23: #{generator_forward.5} parent=0 // pred_check_branch
    %509 = sbr.rel (0) target = $region25
  $region24: #{generator_forward.5} parent=0 // pred_region
    _
  $region25: #{generator_forward.5} parent=0 // pred_fallthru
    _
  // Predicated region
  $region26: #{generator_forward.5} parent=0 // pred_check
    _
  $region27: #{generator_forward.5} parent=0 // pred_check_branch
    %511 = sbr.rel (0) target = $region29
  $region28: #{generator_forward.5} parent=0 // pred_region
    _
  $region29: #{generator_forward.5} parent=0 // pred_fallthru
    _

// kernel: tile.33
$region0: #{tile.33}
  #allocation0 [shape = 's32[1]{0}', space=sflag, size = 0x4, scoped, tag = 'scoped memory for tile.33']
  %s0 = inlined_call_operand.vmem [shape: f32[32], index: 0, kind: input, shape index: {}]
  %s1 = inlined_call_operand.vmem [shape: f32[4,32], index: 1, kind: output, shape index: {}]
  // Predicated region
  $region2: #{tile.33} parent=0 // pred_check
    _
  $region3: #{tile.33} parent=0 // pred_check_branch
    %3 = sbr.rel (0) target = $region5
  $region4: #{tile.33} parent=0 // pred_region
    _
  $region5: #{tile.33} parent=0 // pred_fallthru
    _
  %v4 = vld [vmem:[%s0] ss:$0 sm:$0xff]
  %5 = vst [vmem:[%s1] sm:$0xf] %v4

// kernel: generator_forward.6
$region0: #{generator_forward.6}
  #allocation0 [shape = 'u32[]', space=smem, size = 0x4, offset = 0x4, fixed_abs, tag = 'smem constant byte address 0x4 - core index']
  #allocation1 [shape = 'u32[144,128]{1,0:T(1,128)}', space=vmem, size = 0x12000, scoped, tag = 'internal scratch']
  %s0 = inlined_call_operand.vmem [shape: bf16[32,576], index: 0, kind: input, shape index: {}]
  %s1 = inlined_call_operand.vmem [shape: bf16[576,128], index: 1, kind: input, shape index: {}]
  %s2 = inlined_call_operand.vmem [shape: f32[128,128], index: 2, kind: input, shape index: {}]
  %s3 = inlined_call_operand.vmem [shape: f32[1,128], index: 3, kind: input, shape index: {}]
  %s4 = inlined_call_operand.vmem [shape: f32[1,128], index: 4, kind: input, shape index: {}]
  %s5 = inlined_call_operand.vmem [shape: bf16[32,128], index: 5, kind: output, shape index: {}]
  %s6 = sld [smem:[#allocation0]]
  $region30: #{generator_forward.6} parent=0
    _
  %s8 = ssub.s32 1, %s6
  %s9 = scalar_select 0, %s8, %s6
  // Predicated region
  $region2: #{generator_forward.6} parent=0 // pred_check
    _
  $region3: #{generator_forward.6} parent=0 // pred_check_branch
    %11 = sbr.rel (0) target = $region5
  $region4: #{generator_forward.6} parent=0 // pred_region
    _
  $region5: #{generator_forward.6} parent=0 // pred_fallthru
    _
  // Predicated region
  $region6: #{generator_forward.6} parent=0 // pred_check
    _
  $region7: #{generator_forward.6} parent=0 // pred_check_branch
    %13 = sbr.rel (0) target = $region9
  $region8: #{generator_forward.6} parent=0 // pred_region
    _
  $region9: #{generator_forward.6} parent=0 // pred_fallthru
    _
  // Predicated region
  $region10: #{generator_forward.6} parent=0 // pred_check
    _
  $region11: #{generator_forward.6} parent=0 // pred_check_branch
    %15 = sbr.rel (0) target = $region13
  $region12: #{generator_forward.6} parent=0 // pred_region
    _
  $region13: #{generator_forward.6} parent=0 // pred_fallthru
    _
  // Predicated region
  $region14: #{generator_forward.6} parent=0 // pred_check
    _
  $region15: #{generator_forward.6} parent=0 // pred_check_branch
    %17 = sbr.rel (0) target = $region17
  $region16: #{generator_forward.6} parent=0 // pred_region
    _
  $region17: #{generator_forward.6} parent=0 // pred_fallthru
    _
  // Predicated region
  $region18: #{generator_forward.6} parent=0 // pred_check
    _
  $region19: #{generator_forward.6} parent=0 // pred_check_branch
    %19 = sbr.rel (0) target = $region21
  $region20: #{generator_forward.6} parent=0 // pred_region
    _
  $region21: #{generator_forward.6} parent=0 // pred_fallthru
    _
  %v21 = vld [vmem:[%s0] sm:$0xff]
  %v22 = vld [vmem:[%s0 + $0x8] sm:$0xff]
  %v23 = vld [vmem:[%s0 + $0x10] sm:$0xf]
  %v24 = vld [vmem:[%s0 + $0x14] sm:$0xff]
  %v25 = vld [vmem:[%s0 + $0x1c] sm:$0xff]
  %v26 = vld [vmem:[%s0 + $0x24] sm:$0xf]
  %v27 = vld [vmem:[%s0 + $0x28] sm:$0xff]
  %v28 = vld [vmem:[%s0 + $0x30] sm:$0xff]
  %v29 = vld [vmem:[%s0 + $0x38] sm:$0xf]
  %v30 = vld [vmem:[%s0 + $0x3c] sm:$0xff]
  %v31 = vld [vmem:[%s0 + $0x44] sm:$0xff]
  %v32 = vld [vmem:[%s0 + $0x4c] sm:$0xf]
  %v33 = vld [vmem:[%s1] sm:$0xf]
  %v34 = vld [vmem:[%s1 + $0x4] sm:$0xf]
  %v35 = vld [vmem:[%s1 + $0x8] sm:$0xf]
  %v36 = vld [vmem:[%s1 + $0xc] sm:$0xf]
  %v37 = vld [vmem:[%s1 + $0x10] sm:$0xf]
  %v38 = vld [vmem:[%s1 + $0x14] sm:$0xf]
  %v39 = vld [vmem:[%s1 + $0x18] sm:$0xf]
  %v40 = vld [vmem:[%s1 + $0x1c] sm:$0xf]
  %v41 = vld [vmem:[%s1 + $0x20] sm:$0xf]
  %v42 = vld [vmem:[%s1 + $0x24] sm:$0xf]
  %v43 = vld [vmem:[%s1 + $0x28] sm:$0xf]
  %v44 = vld [vmem:[%s1 + $0x2c] sm:$0xf]
  %v45 = vld [vmem:[%s1 + $0x30] sm:$0xf]
  %v46 = vld [vmem:[%s1 + $0x34] sm:$0xf]
  %v47 = vld [vmem:[%s1 + $0x38] sm:$0xf]
  %v48 = vld [vmem:[%s1 + $0x3c] sm:$0xf]
  %v49 = vld [vmem:[%s1 + $0x40] sm:$0xf]
  %v50 = vld [vmem:[%s1 + $0x44] sm:$0xf]
  %v51 = vld [vmem:[%s1 + $0x48] sm:$0xf]
  %v52 = vld [vmem:[%s1 + $0x4c] sm:$0xf]
  %v53 = vld [vmem:[%s1 + $0x50] sm:$0xf]
  %v54 = vld [vmem:[%s1 + $0x54] sm:$0xf]
  %v55 = vld [vmem:[%s1 + $0x58] sm:$0xf]
  %v56 = vld [vmem:[%s1 + $0x5c] sm:$0xf]
  %v57 = vld [vmem:[%s1 + $0x60] sm:$0xf]
  %v58 = vld [vmem:[%s1 + $0x64] sm:$0xf]
  %v59 = vld [vmem:[%s1 + $0x68] sm:$0xf]
  %v60 = vld [vmem:[%s1 + $0x6c] sm:$0xf]
  %v61 = vld [vmem:[%s1 + $0x70] sm:$0xf]
  %v62 = vld [vmem:[%s1 + $0x74] sm:$0xf]
  %v63 = vld [vmem:[%s1 + $0x78] sm:$0xf]
  %v64 = vld [vmem:[%s1 + $0x7c] sm:$0xf]
  %v65 = vld [vmem:[%s1 + $0x80] sm:$0xf]
  %v66 = vld [vmem:[%s1 + $0x84] sm:$0xf]
  %v67 = vld [vmem:[%s1 + $0x88] sm:$0xf]
  %v68 = vld [vmem:[%s1 + $0x8c] sm:$0xf]
  %v69 = vld [vmem:[%s1 + $0x90] sm:$0xf]
  %v70 = vld [vmem:[%s1 + $0x94] sm:$0xf]
  %v71 = vld [vmem:[%s1 + $0x98] sm:$0xf]
  %v72 = vld [vmem:[%s1 + $0x9c] sm:$0xf]
  %v73 = vld [vmem:[%s1 + $0xa0] sm:$0xf]
  %v74 = vld [vmem:[%s1 + $0xa4] sm:$0xf]
  %v75 = vld [vmem:[%s1 + $0xa8] sm:$0xf]
  %v76 = vld [vmem:[%s1 + $0xac] sm:$0xf]
  %v77 = vld [vmem:[%s1 + $0xb0] sm:$0xf]
  %v78 = vld [vmem:[%s1 + $0xb4] sm:$0xf]
  %v79 = vld [vmem:[%s1 + $0xb8] sm:$0xf]
  %v80 = vld [vmem:[%s1 + $0xbc] sm:$0xf]
  %v81 = vld [vmem:[%s1 + $0xc0] sm:$0xf]
  %v82 = vld [vmem:[%s1 + $0xc4] sm:$0xf]
  %v83 = vld [vmem:[%s1 + $0xc8] sm:$0xf]
  %v84 = vld [vmem:[%s1 + $0xcc] sm:$0xf]
  %v85 = vld [vmem:[%s1 + $0xd0] sm:$0xf]
  %v86 = vld [vmem:[%s1 + $0xd4] sm:$0xf]
  %v87 = vld [vmem:[%s1 + $0xd8] sm:$0xf]
  %v88 = vld [vmem:[%s1 + $0xdc] sm:$0xf]
  %v89 = vld [vmem:[%s1 + $0xe0] sm:$0xf]
  %v90 = vld [vmem:[%s1 + $0xe4] sm:$0xf]
  %v91 = vld [vmem:[%s1 + $0xe8] sm:$0xf]
  %v92 = vld [vmem:[%s1 + $0xec] sm:$0xf]
  %v93 = vld [vmem:[%s1 + $0xf0] sm:$0xf]
  %v94 = vld [vmem:[%s1 + $0xf4] sm:$0xf]
  %v95 = vld [vmem:[%s1 + $0xf8] sm:$0xf]
  %v96 = vld [vmem:[%s1 + $0xfc] sm:$0xf]
  %v97 = vld [vmem:[%s1 + $0x100] sm:$0xf]
  %v98 = vld [vmem:[%s1 + $0x104] sm:$0xf]
  %v99 = vld [vmem:[%s1 + $0x108] sm:$0xf]
  %v100 = vld [vmem:[%s1 + $0x10c] sm:$0xf]
  %v101 = vld [vmem:[%s1 + $0x110] sm:$0xf]
  %v102 = vld [vmem:[%s1 + $0x114] sm:$0xf]
  %v103 = vld [vmem:[%s1 + $0x118] sm:$0xf]
  %v104 = vld [vmem:[%s1 + $0x11c] sm:$0xf]
  %v117 = vunpack.c.l.b16 %v21
  %v118 = vunpack.c.h.b16 %v21
  %v119 = vunpack.c.l.b16 %v22
  %v120 = vunpack.c.h.b16 %v22
  %v121 = vunpack.c.l.b16 %v23
  %v122 = vunpack.c.l.b16 %v24
  %v123 = vunpack.c.h.b16 %v24
  %v124 = vunpack.c.l.b16 %v25
  %v125 = vunpack.c.h.b16 %v25
  %v126 = vunpack.c.l.b16 %v26
  %v127 = vunpack.c.l.b16 %v27
  %v128 = vunpack.c.h.b16 %v27
  %v129 = vunpack.c.l.b16 %v28
  %v130 = vunpack.c.h.b16 %v28
  %v131 = vunpack.c.l.b16 %v29
  %v132 = vunpack.c.l.b16 %v30
  %v133 = vunpack.c.h.b16 %v30
  %v134 = vunpack.c.l.b16 %v31
  %v135 = vunpack.c.h.b16 %v31
  %v136 = vunpack.c.l.b16 %v32
  %v137 = vpack.c.b16 %v122, %v117
  %v138 = vpack.c.b16 %v123, %v118
  %v139 = vpack.c.b16 %v124, %v119
  %v140 = vpack.c.b16 %v125, %v120
  %v141 = vpack.c.b16 %v126, %v121
  %v142 = vpack.c.b16 %v132, %v127
  %v143 = vpack.c.b16 %v133, %v128
  %v144 = vpack.c.b16 %v134, %v129
  %v145 = vpack.c.b16 %v135, %v130
  %v146 = vpack.c.b16 %v136, %v131
  %v227 = vunpack.c.l.b16 %v33
  %v228 = vunpack.c.l.b16 %v34
  %v229 = vunpack.c.l.b16 %v35
  %v230 = vunpack.c.l.b16 %v36
  %v231 = vunpack.c.l.b16 %v37
  %v232 = vunpack.c.l.b16 %v38
  %v233 = vunpack.c.l.b16 %v39
  %v234 = vunpack.c.l.b16 %v40
  %v235 = vunpack.c.l.b16 %v41
  %v236 = vunpack.c.l.b16 %v42
  %v237 = vunpack.c.l.b16 %v43
  %v238 = vunpack.c.l.b16 %v44
  %v239 = vunpack.c.l.b16 %v45
  %v240 = vunpack.c.l.b16 %v46
  %v241 = vunpack.c.l.b16 %v47
  %v242 = vunpack.c.l.b16 %v48
  %v243 = vunpack.c.l.b16 %v49
  %v244 = vunpack.c.l.b16 %v50
  %v245 = vunpack.c.l.b16 %v51
  %v246 = vunpack.c.l.b16 %v52
  %v247 = vunpack.c.l.b16 %v53
  %v248 = vunpack.c.l.b16 %v54
  %v249 = vunpack.c.l.b16 %v55
  %v250 = vunpack.c.l.b16 %v56
  %v251 = vunpack.c.l.b16 %v57
  %v252 = vunpack.c.l.b16 %v58
  %v253 = vunpack.c.l.b16 %v59
  %v254 = vunpack.c.l.b16 %v60
  %v255 = vunpack.c.l.b16 %v61
  %v256 = vunpack.c.l.b16 %v62
  %v257 = vunpack.c.l.b16 %v63
  %v258 = vunpack.c.l.b16 %v64
  %v259 = vunpack.c.l.b16 %v65
  %v260 = vunpack.c.l.b16 %v66
  %v261 = vunpack.c.l.b16 %v67
  %v262 = vunpack.c.l.b16 %v68
  %v263 = vunpack.c.l.b16 %v69
  %v264 = vunpack.c.l.b16 %v70
  %v265 = vunpack.c.l.b16 %v71
  %v266 = vunpack.c.l.b16 %v72
  %v267 = vunpack.c.l.b16 %v73
  %v268 = vunpack.c.l.b16 %v74
  %v269 = vunpack.c.l.b16 %v75
  %v270 = vunpack.c.l.b16 %v76
  %v271 = vunpack.c.l.b16 %v77
  %v272 = vunpack.c.l.b16 %v78
  %v273 = vunpack.c.l.b16 %v79
  %v274 = vunpack.c.l.b16 %v80
  %v275 = vunpack.c.l.b16 %v81
  %v276 = vunpack.c.l.b16 %v82
  %v277 = vunpack.c.l.b16 %v83
  %v278 = vunpack.c.l.b16 %v84
  %v279 = vunpack.c.l.b16 %v85
  %v280 = vunpack.c.l.b16 %v86
  %v281 = vunpack.c.l.b16 %v87
  %v282 = vunpack.c.l.b16 %v88
  %v283 = vunpack.c.l.b16 %v89
  %v284 = vunpack.c.l.b16 %v90
  %v285 = vunpack.c.l.b16 %v91
  %v286 = vunpack.c.l.b16 %v92
  %v287 = vunpack.c.l.b16 %v93
  %v288 = vunpack.c.l.b16 %v94
  %v289 = vunpack.c.l.b16 %v95
  %v290 = vunpack.c.l.b16 %v96
  %v291 = vunpack.c.l.b16 %v97
  %v292 = vunpack.c.l.b16 %v98
  %v293 = vunpack.c.l.b16 %v99
  %v294 = vunpack.c.l.b16 %v100
  %v295 = vunpack.c.l.b16 %v101
  %v296 = vunpack.c.l.b16 %v102
  %v297 = vunpack.c.l.b16 %v103
  %v298 = vunpack.c.l.b16 %v104
  %v299 = vpack.c.b16 %v228, %v227
  %v300 = vpack.c.b16 %v230, %v229
  %v301 = vpack.c.b16 %v232, %v231
  %v302 = vpack.c.b16 %v234, %v233
  %v303 = vpack.c.b16 %v236, %v235
  %v304 = vpack.c.b16 %v238, %v237
  %v305 = vpack.c.b16 %v240, %v239
  %v306 = vpack.c.b16 %v242, %v241
  %v307 = vpack.c.b16 %v244, %v243
  %v308 = vpack.c.b16 %v246, %v245
  %v309 = vpack.c.b16 %v248, %v247
  %v310 = vpack.c.b16 %v250, %v249
  %v311 = vpack.c.b16 %v252, %v251
  %v312 = vpack.c.b16 %v254, %v253
  %v313 = vpack.c.b16 %v256, %v255
  %v314 = vpack.c.b16 %v258, %v257
  %v315 = vpack.c.b16 %v260, %v259
  %v316 = vpack.c.b16 %v262, %v261
  %v317 = vpack.c.b16 %v264, %v263
  %v318 = vpack.c.b16 %v266, %v265
  %v319 = vpack.c.b16 %v268, %v267
  %v320 = vpack.c.b16 %v270, %v269
  %v321 = vpack.c.b16 %v272, %v271
  %v322 = vpack.c.b16 %v274, %v273
  %v323 = vpack.c.b16 %v276, %v275
  %v324 = vpack.c.b16 %v278, %v277
  %v325 = vpack.c.b16 %v280, %v279
  %v326 = vpack.c.b16 %v282, %v281
  %v327 = vpack.c.b16 %v284, %v283
  %v328 = vpack.c.b16 %v286, %v285
  %v329 = vpack.c.b16 %v288, %v287
  %v330 = vpack.c.b16 %v290, %v289
  %v331 = vpack.c.b16 %v292, %v291
  %v332 = vpack.c.b16 %v294, %v293
  %v333 = vpack.c.b16 %v296, %v295
  %v334 = vpack.c.b16 %v298, %v297
  %vm371 = vcmask 523264
  %v373 = vsel %vm371, %v141, 0
  %v376 = vsel %vm371, %v146, 0
  %378 = vmatprep.subr.bf16.mxu0 0
  %379 = vmatpush1.bf16.msra.mxu0 %v306
  %380 = vmatprep.subr.bf16.mxu0 0
  %381 = vmatpush1.bf16.msra.mxu0 %v305
  %382 = vmatprep.subr.bf16.mxu0 0
  %383 = vmatpush1.bf16.msra.mxu0 %v304
  %384 = vmatprep.subr.bf16.mxu0 0
  %385 = vmatpush1.bf16.msra.mxu0 %v303
  %386 = vmatprep.subr.bf16.mxu0 0
  %387 = vmatpush1.bf16.msra.mxu0 %v302
  %388 = vmatprep.subr.bf16.mxu0 0
  %389 = vmatpush1.bf16.msra.mxu0 %v301
  %390 = vmatprep.subr.bf16.mxu0 0
  %391 = vmatpush1.bf16.msra.mxu0 %v300
  %392 = vmatprep.subr.bf16.mxu0 0
  %393 = vmatpush1.bf16.msra.mxu0 %v299
  %394 = vmatprep.subr.bf16.mxu0 0
  %395 = vmatpush2.bf16.msra.mxu0 %v314
  %396 = vmatprep.subr.bf16.mxu0 0
  %397 = vmatpush2.bf16.msra.mxu0 %v313
  %398 = vmatprep.subr.bf16.mxu0 0
  %399 = vmatpush2.bf16.msra.mxu0 %v312
  %400 = vmatprep.subr.bf16.mxu0 0
  %401 = vmatpush2.bf16.msra.mxu0 %v311
  %402 = vmatprep.subr.bf16.mxu0 0
  %403 = vmatpush2.bf16.msra.mxu0 %v310
  %404 = vmatprep.subr.bf16.mxu0 0
  %405 = vmatpush2.bf16.msra.mxu0 %v309
  %406 = vmatprep.subr.bf16.mxu0 0
  %407 = vmatpush2.bf16.msra.mxu0 %v308
  %408 = vmatprep.subr.bf16.mxu0 0
  %409 = vmatpush2.bf16.msra.mxu0 %v307
  %410 = vmatprep.mubr.bf16.mxu0 %v138
  %411 = vmatmul.mubr.bf16.gmra.mxu0 %v137
  %v412 = vpop.f32.mrf.mxu0
  %v413 = vadd.f32 0.0, %v412
  %v414 = vpop.f32.mrf.mxu0
  %v415 = vpop.f32.mrf.mxu0
  %v416 = vadd.f32 0.0, %v415
  %v417 = vpop.f32.mrf.mxu0
  %418 = vmatprep.mubr.bf16.mxu0 %v143
  %419 = vmatmul.mubr.bf16.gmra.mxu0 %v142
  %v420 = vpop.f32.mrf.mxu0
  %v421 = vadd.f32 0.0, %v420
  %v422 = vpop.f32.mrf.mxu0
  %v423 = vpop.f32.mrf.mxu0
  %v424 = vadd.f32 0.0, %v423
  %v425 = vpop.f32.mrf.mxu0
  %426 = vdwg.mxu0
  %427 = vmatprep.subr.bf16.mxu0 0
  %428 = vmatpush1.bf16.msra.mxu0 %v322
  %429 = vmatprep.subr.bf16.mxu0 0
  %430 = vmatpush1.bf16.msra.mxu0 %v321
  %431 = vmatprep.subr.bf16.mxu0 0
  %432 = vmatpush1.bf16.msra.mxu0 %v320
  %433 = vmatprep.subr.bf16.mxu0 0
  %434 = vmatpush1.bf16.msra.mxu0 %v319
  %435 = vmatprep.subr.bf16.mxu0 0
  %436 = vmatpush1.bf16.msra.mxu0 %v318
  %437 = vmatprep.subr.bf16.mxu0 0
  %438 = vmatpush1.bf16.msra.mxu0 %v317
  %439 = vmatprep.subr.bf16.mxu0 0
  %440 = vmatpush1.bf16.msra.mxu0 %v316
  %441 = vmatprep.subr.bf16.mxu0 0
  %442 = vmatpush1.bf16.msra.mxu0 %v315
  %443 = vmatprep.subr.bf16.mxu0 0
  %444 = vmatpush2.bf16.msra.mxu0 %v330
  %445 = vmatprep.subr.bf16.mxu0 0
  %446 = vmatpush2.bf16.msra.mxu0 %v329
  %447 = vmatprep.subr.bf16.mxu0 0
  %448 = vmatpush2.bf16.msra.mxu0 %v328
  %449 = vmatprep.subr.bf16.mxu0 0
  %450 = vmatpush2.bf16.msra.mxu0 %v327
  %451 = vmatprep.subr.bf16.mxu0 0
  %452 = vmatpush2.bf16.msra.mxu0 %v326
  %453 = vmatprep.subr.bf16.mxu0 0
  %454 = vmatpush2.bf16.msra.mxu0 %v325
  %455 = vmatprep.subr.bf16.mxu0 0
  %456 = vmatpush2.bf16.msra.mxu0 %v324
  %457 = vmatprep.subr.bf16.mxu0 0
  %458 = vmatpush2.bf16.msra.mxu0 %v323
  %459 = vmatprep.mubr.bf16.mxu0 %v140
  %460 = vmatmul.mubr.bf16.gmra.mxu0 %v139
  %v461 = vpop.f32.mrf.mxu0
  %v462 = vadd.f32 %v413, %v461
  %v463 = vpop.f32.mrf.mxu0
  %v464 = vpop.f32.mrf.mxu0
  %v465 = vadd.f32 %v416, %v464
  %v466 = vpop.f32.mrf.mxu0
  %467 = vmatprep.mubr.bf16.mxu0 %v145
  %468 = vmatmul.mubr.bf16.gmra.mxu0 %v144
  %v469 = vpop.f32.mrf.mxu0
  %v470 = vadd.f32 %v421, %v469
  %v471 = vpop.f32.mrf.mxu0
  %v472 = vpop.f32.mrf.mxu0
  %v473 = vadd.f32 %v424, %v472
  %v474 = vpop.f32.mrf.mxu0
  %475 = vdwg.mxu0
  %476 = vmatprep.subr.bf16.mxu0 0
  %477 = vmatpush1.bf16.msra.mxu0 0
  %478 = vmatprep.subr.bf16.mxu0 0
  %479 = vmatpush1.bf16.msra.mxu0 0
  %480 = vmatprep.subr.bf16.mxu0 0
  %481 = vmatpush1.bf16.msra.mxu0 0
  %482 = vmatprep.subr.bf16.mxu0 0
  %483 = vmatpush1.bf16.msra.mxu0 0
  %484 = vmatprep.subr.bf16.mxu0 0
  %485 = vmatpush1.bf16.msra.mxu0 %v334
  %486 = vmatprep.subr.bf16.mxu0 0
  %487 = vmatpush1.bf16.msra.mxu0 %v333
  %488 = vmatprep.subr.bf16.mxu0 0
  %489 = vmatpush1.bf16.msra.mxu0 %v332
  %490 = vmatprep.subr.bf16.mxu0 0
  %491 = vmatpush1.bf16.msra.mxu0 %v331
  %492 = vmatprep.subr.bf16.mxu0 0
  %493 = vmatpush2.bf16.msra.mxu0 0
  %494 = vmatprep.subr.bf16.mxu0 0
  %495 = vmatpush2.bf16.msra.mxu0 0
  %496 = vmatprep.subr.bf16.mxu0 0
  %497 = vmatpush2.bf16.msra.mxu0 0
  %498 = vmatprep.subr.bf16.mxu0 0
  %499 = vmatpush2.bf16.msra.mxu0 0
  %500 = vmatprep.subr.bf16.mxu0 0
  %501 = vmatpush2.bf16.msra.mxu0 0
  %502 = vmatprep.subr.bf16.mxu0 0
  %503 = vmatpush2.bf16.msra.mxu0 0
  %504 = vmatprep.subr.bf16.mxu0 0
  %505 = vmatpush2.bf16.msra.mxu0 0
  %506 = vmatprep.subr.bf16.mxu0 0
  %507 = vmatpush2.bf16.msra.mxu0 0
  %508 = vmatprep.mubr.bf16.mxu0 0
  %509 = vmatmul.mubr.bf16.gmra.mxu0 %v373
  %v510 = vpop.f32.mrf.mxu0
  %v511 = vadd.f32 %v462, %v510
  %v512 = vpop.f32.mrf.mxu0
  %v513 = vpop.f32.mrf.mxu0
  %v514 = vadd.f32 %v465, %v513
  %v515 = vpop.f32.mrf.mxu0
  %516 = vmatprep.mubr.bf16.mxu0 0
  %517 = vmatmul.mubr.bf16.gmra.mxu0 %v376
  %v518 = vpop.f32.mrf.mxu0
  %v519 = vadd.f32 %v470, %v518
  %v520 = vpop.f32.mrf.mxu0
  %v521 = vpop.f32.mrf.mxu0
  %v522 = vadd.f32 %v473, %v521
  %v523 = vpop.f32.mrf.mxu0
  %524 = vdwg.mxu0
  %v525 = vadd.f32 %v511, %v514
  %v526 = vadd.f32 %v525, %v519
  %v527 = vadd.f32 %v526, %v522
  %v528 = vrot.slane %v527, 4
  %v529 = vadd.f32 %v527, %v528
  %v530 = vrot.slane %v529, 2
  %v531 = vadd.f32 %v529, %v530
  %v532 = vrot.slane %v531, 1
  %v533 = vadd.f32 %v531, %v532
  %v534 = vmul.f32 %v511, %v511
  %v535 = vmul.f32 %v514, %v514
  %v536 = vmul.f32 %v519, %v519
  %v537 = vmul.f32 %v522, %v522
  %v538 = vadd.f32 %v534, %v535
  %v539 = vadd.f32 %v538, %v536
  %v540 = vadd.f32 %v539, %v537
  %v541 = vrot.slane %v540, 4
  %v542 = vadd.f32 %v540, %v541
  %v543 = vrot.slane %v542, 2
  %v544 = vadd.f32 %v542, %v543
  %v545 = vrot.slane %v544, 1
  %v546 = vadd.f32 %v544, %v545
  %vm547 = vcmask 1040384
  %v548 = vsel %vm547, %v533, %v546
  %v549 = vld [vmem:[%s2] sm:$0xff]
  %v550 = vld [vmem:[%s2 + $0x8] sm:$0xff]
  %v551 = vld [vmem:[%s2 + $0x10] sm:$0xff]
  %v552 = vld [vmem:[%s2 + $0x18] sm:$0xff]
  %v553 = vld [vmem:[%s2 + $0x20] sm:$0xff]
  %v554 = vld [vmem:[%s2 + $0x28] sm:$0xff]
  %v555 = vld [vmem:[%s2 + $0x30] sm:$0xff]
  %v556 = vld [vmem:[%s2 + $0x38] sm:$0xff]
  %v557 = vld [vmem:[%s2 + $0x40] sm:$0xff]
  %v558 = vld [vmem:[%s2 + $0x48] sm:$0xff]
  %v559 = vld [vmem:[%s2 + $0x50] sm:$0xff]
  %v560 = vld [vmem:[%s2 + $0x58] sm:$0xff]
  %v561 = vld [vmem:[%s2 + $0x60] sm:$0xff]
  %v562 = vld [vmem:[%s2 + $0x68] sm:$0xff]
  %v563 = vld [vmem:[%s2 + $0x70] sm:$0xff]
  %v564 = vld [vmem:[%s2 + $0x78] sm:$0xff]
  %565 = vmatprep.subr.mxu0 0.0
  %566 = vmatpush1.msra.mxu0 %v564
  %567 = vmatprep.subr.mxu0 0.0
  %568 = vmatpush1.msra.mxu0 %v563
  %569 = vmatprep.subr.mxu0 0.0
  %570 = vmatpush1.msra.mxu0 %v562
  %571 = vmatprep.subr.mxu0 0.0
  %572 = vmatpush1.msra.mxu0 %v561
  %573 = vmatprep.subr.mxu0 0.0
  %574 = vmatpush1.msra.mxu0 %v560
  %575 = vmatprep.subr.mxu0 0.0
  %576 = vmatpush1.msra.mxu0 %v559
  %577 = vmatprep.subr.mxu0 0.0
  %578 = vmatpush1.msra.mxu0 %v558
  %579 = vmatprep.subr.mxu0 0.0
  %580 = vmatpush1.msra.mxu0 %v557
  %581 = vmatprep.subr.mxu0 0.0
  %582 = vmatpush1.msra.mxu0 %v556
  %583 = vmatprep.subr.mxu0 0.0
  %584 = vmatpush1.msra.mxu0 %v555
  %585 = vmatprep.subr.mxu0 0.0
  %586 = vmatpush1.msra.mxu0 %v554
  %587 = vmatprep.subr.mxu0 0.0
  %588 = vmatpush1.msra.mxu0 %v553
  %589 = vmatprep.subr.mxu0 0.0
  %590 = vmatpush1.msra.mxu0 %v552
  %591 = vmatprep.subr.mxu0 0.0
  %592 = vmatpush1.msra.mxu0 %v551
  %593 = vmatprep.subr.mxu0 0.0
  %594 = vmatpush1.msra.mxu0 %v550
  %595 = vmatprep.subr.mxu0 0.0
  %596 = vmatpush1.msra.mxu0 %v549
  %597 = vmatprep.subr.mxu0 0.0
  %598 = vmatpush2.msra.mxu0 0.0
  %599 = vmatprep.subr.mxu0 0.0
  %600 = vmatpush2.msra.mxu0 0.0
  %601 = vmatprep.subr.mxu0 0.0
  %602 = vmatpush2.msra.mxu0 0.0
  %603 = vmatprep.subr.mxu0 0.0
  %604 = vmatpush2.msra.mxu0 0.0
  %605 = vmatprep.subr.mxu0 0.0
  %606 = vmatpush2.msra.mxu0 0.0
  %607 = vmatprep.subr.mxu0 0.0
  %608 = vmatpush2.msra.mxu0 0.0
  %609 = vmatprep.subr.mxu0 0.0
  %610 = vmatpush2.msra.mxu0 0.0
  %611 = vmatprep.subr.mxu0 0.0
  %612 = vmatpush2.msra.mxu0 0.0
  %613 = vmatprep.subr.mxu0 0.0
  %614 = vmatpush2.msra.mxu0 0.0
  %615 = vmatprep.subr.mxu0 0.0
  %616 = vmatpush2.msra.mxu0 0.0
  %617 = vmatprep.subr.mxu0 0.0
  %618 = vmatpush2.msra.mxu0 0.0
  %619 = vmatprep.subr.mxu0 0.0
  %620 = vmatpush2.msra.mxu0 0.0
  %621 = vmatprep.subr.mxu0 0.0
  %622 = vmatpush2.msra.mxu0 0.0
  %623 = vmatprep.subr.mxu0 0.0
  %624 = vmatpush2.msra.mxu0 0.0
  %625 = vmatprep.subr.mxu0 0.0
  %626 = vmatpush2.msra.mxu0 0.0
  %627 = vmatprep.subr.mxu0 0.0
  %628 = vmatpush2.msra.mxu0 0.0
  %629 = vmatprep.mubr.f32.mxu0 0.0
  %630 = vmatmul.mubr.f32.gmra.mxu0 %v548
  %v631 = vpop.f32.mrf.mxu0
  %v632 = vadd.f32 0.0, %v631
  %v633 = vpop.f32.mrf.mxu0
  %634 = vdwg.mxu0
  %v635 = vmul.f32 %v632, 0.0078125
  %v636 = vmul.f32 %v635, %v635
  %v638 = vrot.slane %v636, 7
  %v640 = vsub.f32 %v635, %v638
  %v641 = vld [vmem:[%s3] sm:$0x1]
  %v642 = vadd.f32 %v640, 1e-05
  %v643 = vrsqrt.pop %v642
  %v646 = vunpack.c.l.s4 1966171168
  %v647 = vunpack.c.0.s8 %v646
  %v648 = vlaneseq
  %v649 = vshrl.u32 %v648, 7
  %v650 = vsub.s32 %v647, %v649
  %v651 = vrot.slane %v643, %v650
  %v652 = vcombine.high %v651, %v651
  %v654 = vunpack.c.l.s4 1966171168
  %v655 = vunpack.c.0.s8 %v654
  %v656 = vlaneseq
  %v657 = vshrl.u32 %v656, 7
  %v658 = vsub.s32 %v655, %v657
  %v659 = vrot.slane %v652, %v658
  %v661 = vmul.f32 %v641, %v659
  %v662 = vld [vmem:[%s4] sm:$0x1]
  %v663 = vmul.f32 %v635, %v661
  %v664 = vsub.f32 %v662, %v663
  %v666 = vlaneseq
  %v667 = vshrl.u32 %v666, 7
  %v668 = vsub.s32 0, %v667
  %v669 = vrot.slane %v661, %v668
  %v671 = vmul.f32 %v511, %v669
  %v672 = vmul.f32 %v514, %v669
  %v673 = vmul.f32 %v519, %v669
  %v674 = vmul.f32 %v522, %v669
  %v676 = vlaneseq
  %v677 = vshrl.u32 %v676, 7
  %v678 = vsub.s32 0, %v677
  %v679 = vrot.slane %v664, %v678
  %v681 = vadd.f32 %v671, %v679
  %v682 = vadd.f32 %v672, %v679
  %v683 = vadd.f32 %v673, %v679
  %v684 = vadd.f32 %v674, %v679
  %v685 = vmax.f32 %v681, 0.0
  %v686 = vmax.f32 %v682, 0.0
  %v687 = vmax.f32 %v683, 0.0
  %v688 = vmax.f32 %v684, 0.0
  %v689 = vpack.c.bf16 %v686, %v685
  %v690 = vpack.c.bf16 %v688, %v687
  %v693 = vunpack.c.l.b16 %v689
  %v694 = vunpack.c.h.b16 %v689
  %v695 = vunpack.c.l.b16 %v690
  %v696 = vunpack.c.h.b16 %v690
  %v697 = vpack.c.b16 %v693, %v693
  %v698 = vpack.c.b16 %v694, %v694
  %v699 = vpack.c.b16 %v695, %v695
  %v700 = vpack.c.b16 %v696, %v696
  %705 = vst [vmem:[%s5] sm:$0xf] %v697
  %706 = vst [vmem:[%s5 + $0x4] sm:$0xf] %v698
  %707 = vst [vmem:[%s5 + $0x8] sm:$0xf] %v699
  %708 = vst [vmem:[%s5 + $0xc] sm:$0xf] %v700
  // Predicated region
  $region22: #{generator_forward.6} parent=0 // pred_check
    _
  $region23: #{generator_forward.6} parent=0 // pred_check_branch
    %710 = sbr.rel (0) target = $region25
  $region24: #{generator_forward.6} parent=0 // pred_region
    _
  $region25: #{generator_forward.6} parent=0 // pred_fallthru
    _
  // Predicated region
  $region26: #{generator_forward.6} parent=0 // pred_check
    _
  $region27: #{generator_forward.6} parent=0 // pred_check_branch
    %712 = sbr.rel (0) target = $region29
  $region28: #{generator_forward.6} parent=0 // pred_region
    _
  $region29: #{generator_forward.6} parent=0 // pred_fallthru
    _

// kernel: tile.43
$region0: #{tile.43}
  #allocation0 [shape = 's32[1]{0}', space=sflag, size = 0x4, scoped, tag = 'scoped memory for tile.43']
  %s0 = inlined_call_operand.vmem [shape: f32[16], index: 0, kind: input, shape index: {}]
  %s1 = inlined_call_operand.vmem [shape: f32[4,16], index: 1, kind: output, shape index: {}]
  // Predicated region
  $region2: #{tile.43} parent=0 // pred_check
    _
  $region3: #{tile.43} parent=0 // pred_check_branch
    %3 = sbr.rel (0) target = $region5
  $region4: #{tile.43} parent=0 // pred_region
    _
  $region5: #{tile.43} parent=0 // pred_fallthru
    _
  %v4 = vld [vmem:[%s0] ss:$0 sm:$0xff]
  %5 = vst [vmem:[%s1] sm:$0xf] %v4

// kernel: tile.44
$region0: #{tile.44}
  %s0 = inlined_call_operand.vmem [shape: f32[4,16], index: 0, kind: input, shape index: {}]
  %s1 = inlined_call_operand.vmem [shape: f32[64], index: 1, kind: output, shape index: {}]
  $region1: #{tile.44} parent=0
    #allocation0 [shape = 'u8[4096]{0}', space=vmem, size = 0x1000, scoped, tag = 'scoped mem for output reshape']
    #allocation1 [shape = 'u8[4096]{0}', space=vmem, size = 0x1000, scoped, tag = 'scoped mem for input reshape']
    %s3 = sshll.u32 1, 4
    %s4 = ssub.s32 %s3, 1
    %v5 = vld [vmem:[%s0] sm:%s4]
    %6 = vst [vmem:[#allocation1] sm:%s4] %v5
    %v7 = vld [vmem:[#allocation1] sm:$0x1]
    %vm8 = vcmask 130048
    %9 = vst.msk [vmem:[#allocation0] sm:$0x1] %vm8, %v7
    %s10 = scalar_lea.vmem [#allocation1], 3
    %v11 = vld [vmem:[%s10] sm:$0x1]
    %12 = vrot.lane.b32.xlu0 %v11, 48
    %v13 = vpop.permute.xlu0 %12
    %vm14 = vcmask 523648
    %15 = vst.msk [vmem:[#allocation0] sm:$0x1] %vm14, %v13
    %s16 = scalar_lea.vmem [#allocation1], 2
    %v17 = vld [vmem:[%s16] sm:$0x1]
    %18 = vrot.lane.b32.xlu0 %v17, 32
    %v19 = vpop.permute.xlu0 %18
    %vm20 = vcmask 392448
    %21 = vst.msk [vmem:[#allocation0] sm:$0x1] %vm20, %v19
    %s22 = scalar_lea.vmem [#allocation1], 1
    %v23 = vld [vmem:[%s22] sm:$0x1]
    %24 = vrot.lane.b32.xlu0 %v23, 16
    %v25 = vpop.permute.xlu0 %24
    %vm26 = vcmask 261248
    %27 = vst.msk [vmem:[#allocation0] sm:$0x1] %vm26, %v25
    %s29 = sshll.u32 1, 1
    %s30 = ssub.s32 %s29, 1
    %v32 = vld [vmem:[#allocation0] sm:%s30]
    %s33 = sshll.u32 1, 1
    %s34 = ssub.s32 %s33, 1
    %35 = vst [vmem:[%s1] sm:%s34] %v32

// kernel: generator_forward.7
$region0: #{generator_forward.7}
  #allocation0 [shape = 'u32[]', space=smem, size = 0x4, offset = 0x4, fixed_abs, tag = 'smem constant byte address 0x4 - core index']
  #allocation1 [shape = 'u32[144,128]{1,0:T(1,128)}', space=vmem, size = 0x12000, scoped, tag = 'internal scratch']
  %s0 = inlined_call_operand.vmem [shape: bf16[128,288], index: 0, kind: input, shape index: {}]
  %s1 = inlined_call_operand.vmem [shape: bf16[288,128], index: 1, kind: input, shape index: {}]
  %s2 = inlined_call_operand.vmem [shape: f32[128,128], index: 2, kind: input, shape index: {}]
  %s3 = inlined_call_operand.vmem [shape: f32[1,128], index: 3, kind: input, shape index: {}]
  %s4 = inlined_call_operand.vmem [shape: f32[1,128], index: 4, kind: input, shape index: {}]
  %s5 = inlined_call_operand.vmem [shape: bf16[128,128], index: 5, kind: output, shape index: {}]
  %s6 = sld [smem:[#allocation0]]
  $region30: #{generator_forward.7} parent=0
    _
  %s8 = ssub.s32 1, %s6
  %s9 = scalar_select 0, %s8, %s6
  // Predicated region
  $region2: #{generator_forward.7} parent=0 // pred_check
    _
  $region3: #{generator_forward.7} parent=0 // pred_check_branch
    %11 = sbr.rel (0) target = $region5
  $region4: #{generator_forward.7} parent=0 // pred_region
    _
  $region5: #{generator_forward.7} parent=0 // pred_fallthru
    _
  // Predicated region
  $region6: #{generator_forward.7} parent=0 // pred_check
    _
  $region7: #{generator_forward.7} parent=0 // pred_check_branch
    %13 = sbr.rel (0) target = $region9
  $region8: #{generator_forward.7} parent=0 // pred_region
    _
  $region9: #{generator_forward.7} parent=0 // pred_fallthru
    _
  // Predicated region
  $region10: #{generator_forward.7} parent=0 // pred_check
    _
  $region11: #{generator_forward.7} parent=0 // pred_check_branch
    %15 = sbr.rel (0) target = $region13
  $region12: #{generator_forward.7} parent=0 // pred_region
    _
  $region13: #{generator_forward.7} parent=0 // pred_fallthru
    _
  // Predicated region
  $region14: #{generator_forward.7} parent=0 // pred_check
    _
  $region15: #{generator_forward.7} parent=0 // pred_check_branch
    %17 = sbr.rel (0) target = $region17
  $region16: #{generator_forward.7} parent=0 // pred_region
    _
  $region17: #{generator_forward.7} parent=0 // pred_fallthru
    _
  // Predicated region
  $region18: #{generator_forward.7} parent=0 // pred_check
    _
  $region19: #{generator_forward.7} parent=0 // pred_check_branch
    %19 = sbr.rel (0) target = $region21
  $region20: #{generator_forward.7} parent=0 // pred_region
    _
  $region21: #{generator_forward.7} parent=0 // pred_fallthru
    _
  %v21 = vld [vmem:[%s0] sm:$0xff]
  %v22 = vld [vmem:[%s0 + $0x8] sm:$0xf]
  %v23 = vld [vmem:[%s0 + $0xc] sm:$0xff]
  %v24 = vld [vmem:[%s0 + $0x14] sm:$0xf]
  %v25 = vld [vmem:[%s0 + $0x18] sm:$0xff]
  %v26 = vld [vmem:[%s0 + $0x20] sm:$0xf]
  %v27 = vld [vmem:[%s0 + $0x24] sm:$0xff]
  %v28 = vld [vmem:[%s0 + $0x2c] sm:$0xf]
  %v29 = vld [vmem:[%s0 + $0x30] sm:$0xff]
  %v30 = vld [vmem:[%s0 + $0x38] sm:$0xf]
  %v31 = vld [vmem:[%s0 + $0x3c] sm:$0xff]
  %v32 = vld [vmem:[%s0 + $0x44] sm:$0xf]
  %v33 = vld [vmem:[%s0 + $0x48] sm:$0xff]
  %v34 = vld [vmem:[%s0 + $0x50] sm:$0xf]
  %v35 = vld [vmem:[%s0 + $0x54] sm:$0xff]
  %v36 = vld [vmem:[%s0 + $0x5c] sm:$0xf]
  %v37 = vld [vmem:[%s0 + $0x60] sm:$0xff]
  %v38 = vld [vmem:[%s0 + $0x68] sm:$0xf]
  %v39 = vld [vmem:[%s0 + $0x6c] sm:$0xff]
  %v40 = vld [vmem:[%s0 + $0x74] sm:$0xf]
  %v41 = vld [vmem:[%s0 + $0x78] sm:$0xff]
  %v42 = vld [vmem:[%s0 + $0x80] sm:$0xf]
  %v43 = vld [vmem:[%s0 + $0x84] sm:$0xff]
  %v44 = vld [vmem:[%s0 + $0x8c] sm:$0xf]
  %v45 = vld [vmem:[%s0 + $0x90] sm:$0xff]
  %v46 = vld [vmem:[%s0 + $0x98] sm:$0xf]
  %v47 = vld [vmem:[%s0 + $0x9c] sm:$0xff]
  %v48 = vld [vmem:[%s0 + $0xa4] sm:$0xf]
  %v49 = vld [vmem:[%s0 + $0xa8] sm:$0xff]
  %v50 = vld [vmem:[%s0 + $0xb0] sm:$0xf]
  %v51 = vld [vmem:[%s0 + $0xb4] sm:$0xff]
  %v52 = vld [vmem:[%s0 + $0xbc] sm:$0xf]
  %v53 = vld [vmem:[%s1] sm:$0xf]
  %v54 = vld [vmem:[%s1 + $0x4] sm:$0xf]
  %v55 = vld [vmem:[%s1 + $0x8] sm:$0xf]
  %v56 = vld [vmem:[%s1 + $0xc] sm:$0xf]
  %v57 = vld [vmem:[%s1 + $0x10] sm:$0xf]
  %v58 = vld [vmem:[%s1 + $0x14] sm:$0xf]
  %v59 = vld [vmem:[%s1 + $0x18] sm:$0xf]
  %v60 = vld [vmem:[%s1 + $0x1c] sm:$0xf]
  %v61 = vld [vmem:[%s1 + $0x20] sm:$0xf]
  %v62 = vld [vmem:[%s1 + $0x24] sm:$0xf]
  %v63 = vld [vmem:[%s1 + $0x28] sm:$0xf]
  %v64 = vld [vmem:[%s1 + $0x2c] sm:$0xf]
  %v65 = vld [vmem:[%s1 + $0x30] sm:$0xf]
  %v66 = vld [vmem:[%s1 + $0x34] sm:$0xf]
  %v67 = vld [vmem:[%s1 + $0x38] sm:$0xf]
  %v68 = vld [vmem:[%s1 + $0x3c] sm:$0xf]
  %v69 = vld [vmem:[%s1 + $0x40] sm:$0xf]
  %v70 = vld [vmem:[%s1 + $0x44] sm:$0xf]
  %v71 = vld [vmem:[%s1 + $0x48] sm:$0xf]
  %v72 = vld [vmem:[%s1 + $0x4c] sm:$0xf]
  %v73 = vld [vmem:[%s1 + $0x50] sm:$0xf]
  %v74 = vld [vmem:[%s1 + $0x54] sm:$0xf]
  %v75 = vld [vmem:[%s1 + $0x58] sm:$0xf]
  %v76 = vld [vmem:[%s1 + $0x5c] sm:$0xf]
  %v77 = vld [vmem:[%s1 + $0x60] sm:$0xf]
  %v78 = vld [vmem:[%s1 + $0x64] sm:$0xf]
  %v79 = vld [vmem:[%s1 + $0x68] sm:$0xf]
  %v80 = vld [vmem:[%s1 + $0x6c] sm:$0xf]
  %v81 = vld [vmem:[%s1 + $0x70] sm:$0xf]
  %v82 = vld [vmem:[%s1 + $0x74] sm:$0xf]
  %v83 = vld [vmem:[%s1 + $0x78] sm:$0xf]
  %v84 = vld [vmem:[%s1 + $0x7c] sm:$0xf]
  %v85 = vld [vmem:[%s1 + $0x80] sm:$0xf]
  %v86 = vld [vmem:[%s1 + $0x84] sm:$0xf]
  %v87 = vld [vmem:[%s1 + $0x88] sm:$0xf]
  %v88 = vld [vmem:[%s1 + $0x8c] sm:$0xf]
  %v121 = vunpack.c.l.b16 %v21
  %v122 = vunpack.c.h.b16 %v21
  %v123 = vunpack.c.l.b16 %v22
  %v124 = vunpack.c.l.b16 %v23
  %v125 = vunpack.c.h.b16 %v23
  %v126 = vunpack.c.l.b16 %v24
  %v127 = vunpack.c.l.b16 %v25
  %v128 = vunpack.c.h.b16 %v25
  %v129 = vunpack.c.l.b16 %v26
  %v130 = vunpack.c.l.b16 %v27
  %v131 = vunpack.c.h.b16 %v27
  %v132 = vunpack.c.l.b16 %v28
  %v133 = vunpack.c.l.b16 %v29
  %v134 = vunpack.c.h.b16 %v29
  %v135 = vunpack.c.l.b16 %v30
  %v136 = vunpack.c.l.b16 %v31
  %v137 = vunpack.c.h.b16 %v31
  %v138 = vunpack.c.l.b16 %v32
  %v139 = vunpack.c.l.b16 %v33
  %v140 = vunpack.c.h.b16 %v33
  %v141 = vunpack.c.l.b16 %v34
  %v142 = vunpack.c.l.b16 %v35
  %v143 = vunpack.c.h.b16 %v35
  %v144 = vunpack.c.l.b16 %v36
  %v145 = vunpack.c.l.b16 %v37
  %v146 = vunpack.c.h.b16 %v37
  %v147 = vunpack.c.l.b16 %v38
  %v148 = vunpack.c.l.b16 %v39
  %v149 = vunpack.c.h.b16 %v39
  %v150 = vunpack.c.l.b16 %v40
  %v151 = vunpack.c.l.b16 %v41
  %v152 = vunpack.c.h.b16 %v41
  %v153 = vunpack.c.l.b16 %v42
  %v154 = vunpack.c.l.b16 %v43
  %v155 = vunpack.c.h.b16 %v43
  %v156 = vunpack.c.l.b16 %v44
  %v157 = vunpack.c.l.b16 %v45
  %v158 = vunpack.c.h.b16 %v45
  %v159 = vunpack.c.l.b16 %v46
  %v160 = vunpack.c.l.b16 %v47
  %v161 = vunpack.c.h.b16 %v47
  %v162 = vunpack.c.l.b16 %v48
  %v163 = vunpack.c.l.b16 %v49
  %v164 = vunpack.c.h.b16 %v49
  %v165 = vunpack.c.l.b16 %v50
  %v166 = vunpack.c.l.b16 %v51
  %v167 = vunpack.c.h.b16 %v51
  %v168 = vunpack.c.l.b16 %v52
  %v169 = vpack.c.b16 %v124, %v121
  %v170 = vpack.c.b16 %v125, %v122
  %v171 = vpack.c.b16 %v126, %v123
  %v172 = vpack.c.b16 %v130, %v127
  %v173 = vpack.c.b16 %v131, %v128
  %v174 = vpack.c.b16 %v132, %v129
  %v175 = vpack.c.b16 %v136, %v133
  %v176 = vpack.c.b16 %v137, %v134
  %v177 = vpack.c.b16 %v138, %v135
  %v178 = vpack.c.b16 %v142, %v139
  %v179 = vpack.c.b16 %v143, %v140
  %v180 = vpack.c.b16 %v144, %v141
  %v181 = vpack.c.b16 %v148, %v145
  %v182 = vpack.c.b16 %v149, %v146
  %v183 = vpack.c.b16 %v150, %v147
  %v184 = vpack.c.b16 %v154, %v151
  %v185 = vpack.c.b16 %v155, %v152
  %v186 = vpack.c.b16 %v156, %v153
  %v187 = vpack.c.b16 %v160, %v157
  %v188 = vpack.c.b16 %v161, %v158
  %v189 = vpack.c.b16 %v162, %v159
  %v190 = vpack.c.b16 %v166, %v163
  %v191 = vpack.c.b16 %v167, %v164
  %v192 = vpack.c.b16 %v168, %v165
  %v245 = vunpack.c.l.b16 %v53
  %v246 = vunpack.c.l.b16 %v54
  %v247 = vunpack.c.l.b16 %v55
  %v248 = vunpack.c.l.b16 %v56
  %v249 = vunpack.c.l.b16 %v57
  %v250 = vunpack.c.l.b16 %v58
  %v251 = vunpack.c.l.b16 %v59
  %v252 = vunpack.c.l.b16 %v60
  %v253 = vunpack.c.l.b16 %v61
  %v254 = vunpack.c.l.b16 %v62
  %v255 = vunpack.c.l.b16 %v63
  %v256 = vunpack.c.l.b16 %v64
  %v257 = vunpack.c.l.b16 %v65
  %v258 = vunpack.c.l.b16 %v66
  %v259 = vunpack.c.l.b16 %v67
  %v260 = vunpack.c.l.b16 %v68
  %v261 = vunpack.c.l.b16 %v69
  %v262 = vunpack.c.l.b16 %v70
  %v263 = vunpack.c.l.b16 %v71
  %v264 = vunpack.c.l.b16 %v72
  %v265 = vunpack.c.l.b16 %v73
  %v266 = vunpack.c.l.b16 %v74
  %v267 = vunpack.c.l.b16 %v75
  %v268 = vunpack.c.l.b16 %v76
  %v269 = vunpack.c.l.b16 %v77
  %v270 = vunpack.c.l.b16 %v78
  %v271 = vunpack.c.l.b16 %v79
  %v272 = vunpack.c.l.b16 %v80
  %v273 = vunpack.c.l.b16 %v81
  %v274 = vunpack.c.l.b16 %v82
  %v275 = vunpack.c.l.b16 %v83
  %v276 = vunpack.c.l.b16 %v84
  %v277 = vunpack.c.l.b16 %v85
  %v278 = vunpack.c.l.b16 %v86
  %v279 = vunpack.c.l.b16 %v87
  %v280 = vunpack.c.l.b16 %v88
  %v281 = vpack.c.b16 %v246, %v245
  %v282 = vpack.c.b16 %v248, %v247
  %v283 = vpack.c.b16 %v250, %v249
  %v284 = vpack.c.b16 %v252, %v251
  %v285 = vpack.c.b16 %v254, %v253
  %v286 = vpack.c.b16 %v256, %v255
  %v287 = vpack.c.b16 %v258, %v257
  %v288 = vpack.c.b16 %v260, %v259
  %v289 = vpack.c.b16 %v262, %v261
  %v290 = vpack.c.b16 %v264, %v263
  %v291 = vpack.c.b16 %v266, %v265
  %v292 = vpack.c.b16 %v268, %v267
  %v293 = vpack.c.b16 %v270, %v269
  %v294 = vpack.c.b16 %v272, %v271
  %v295 = vpack.c.b16 %v274, %v273
  %v296 = vpack.c.b16 %v276, %v275
  %v297 = vpack.c.b16 %v278, %v277
  %v298 = vpack.c.b16 %v280, %v279
  %vm317 = vcmask 261120
  %v319 = vsel %vm317, %v171, 0
  %v322 = vsel %vm317, %v174, 0
  %v325 = vsel %vm317, %v177, 0
  %v328 = vsel %vm317, %v180, 0
  %v331 = vsel %vm317, %v183, 0
  %v334 = vsel %vm317, %v186, 0
  %v337 = vsel %vm317, %v189, 0
  %v340 = vsel %vm317, %v192, 0
  %342 = vmatprep.subr.bf16.mxu0 0
  %343 = vmatpush1.bf16.msra.mxu0 %v288
  %344 = vmatprep.subr.bf16.mxu0 0
  %345 = vmatpush1.bf16.msra.mxu0 %v287
  %346 = vmatprep.subr.bf16.mxu0 0
  %347 = vmatpush1.bf16.msra.mxu0 %v286
  %348 = vmatprep.subr.bf16.mxu0 0
  %349 = vmatpush1.bf16.msra.mxu0 %v285
  %350 = vmatprep.subr.bf16.mxu0 0
  %351 = vmatpush1.bf16.msra.mxu0 %v284
  %352 = vmatprep.subr.bf16.mxu0 0
  %353 = vmatpush1.bf16.msra.mxu0 %v283
  %354 = vmatprep.subr.bf16.mxu0 0
  %355 = vmatpush1.bf16.msra.mxu0 %v282
  %356 = vmatprep.subr.bf16.mxu0 0
  %357 = vmatpush1.bf16.msra.mxu0 %v281
  %358 = vmatprep.subr.bf16.mxu0 0
  %359 = vmatpush2.bf16.msra.mxu0 %v296
  %360 = vmatprep.subr.bf16.mxu0 0
  %361 = vmatpush2.bf16.msra.mxu0 %v295
  %362 = vmatprep.subr.bf16.mxu0 0
  %363 = vmatpush2.bf16.msra.mxu0 %v294
  %364 = vmatprep.subr.bf16.mxu0 0
  %365 = vmatpush2.bf16.msra.mxu0 %v293
  %366 = vmatprep.subr.bf16.mxu0 0
  %367 = vmatpush2.bf16.msra.mxu0 %v292
  %368 = vmatprep.subr.bf16.mxu0 0
  %369 = vmatpush2.bf16.msra.mxu0 %v291
  %370 = vmatprep.subr.bf16.mxu0 0
  %371 = vmatpush2.bf16.msra.mxu0 %v290
  %372 = vmatprep.subr.bf16.mxu0 0
  %373 = vmatpush2.bf16.msra.mxu0 %v289
  %374 = vmatprep.mubr.bf16.mxu0 %v170
  %375 = vmatmul.mubr.bf16.gmra.mxu0 %v169
  %v376 = vpop.f32.mrf.mxu0
  %v377 = vadd.f32 0.0, %v376
  %v378 = vpop.f32.mrf.mxu0
  %v379 = vpop.f32.mrf.mxu0
  %v380 = vadd.f32 0.0, %v379
  %v381 = vpop.f32.mrf.mxu0
  %382 = vmatprep.mubr.bf16.mxu0 %v173
  %383 = vmatmul.mubr.bf16.gmra.mxu0 %v172
  %v384 = vpop.f32.mrf.mxu0
  %v385 = vadd.f32 0.0, %v384
  %v386 = vpop.f32.mrf.mxu0
  %v387 = vpop.f32.mrf.mxu0
  %v388 = vadd.f32 0.0, %v387
  %v389 = vpop.f32.mrf.mxu0
  %390 = vmatprep.mubr.bf16.mxu0 %v176
  %391 = vmatmul.mubr.bf16.gmra.mxu0 %v175
  %v392 = vpop.f32.mrf.mxu0
  %v393 = vadd.f32 0.0, %v392
  %v394 = vpop.f32.mrf.mxu0
  %v395 = vpop.f32.mrf.mxu0
  %v396 = vadd.f32 0.0, %v395
  %v397 = vpop.f32.mrf.mxu0
  %398 = vmatprep.mubr.bf16.mxu0 %v179
  %399 = vmatmul.mubr.bf16.gmra.mxu0 %v178
  %v400 = vpop.f32.mrf.mxu0
  %v401 = vadd.f32 0.0, %v400
  %v402 = vpop.f32.mrf.mxu0
  %v403 = vpop.f32.mrf.mxu0
  %v404 = vadd.f32 0.0, %v403
  %v405 = vpop.f32.mrf.mxu0
  %406 = vmatprep.mubr.bf16.mxu0 %v182
  %407 = vmatmul.mubr.bf16.gmra.mxu0 %v181
  %v408 = vpop.f32.mrf.mxu0
  %v409 = vadd.f32 0.0, %v408
  %v410 = vpop.f32.mrf.mxu0
  %v411 = vpop.f32.mrf.mxu0
  %v412 = vadd.f32 0.0, %v411
  %v413 = vpop.f32.mrf.mxu0
  %414 = vmatprep.mubr.bf16.mxu0 %v185
  %415 = vmatmul.mubr.bf16.gmra.mxu0 %v184
  %v416 = vpop.f32.mrf.mxu0
  %v417 = vadd.f32 0.0, %v416
  %v418 = vpop.f32.mrf.mxu0
  %v419 = vpop.f32.mrf.mxu0
  %v420 = vadd.f32 0.0, %v419
  %v421 = vpop.f32.mrf.mxu0
  %422 = vmatprep.mubr.bf16.mxu0 %v188
  %423 = vmatmul.mubr.bf16.gmra.mxu0 %v187
  %v424 = vpop.f32.mrf.mxu0
  %v425 = vadd.f32 0.0, %v424
  %v426 = vpop.f32.mrf.mxu0
  %v427 = vpop.f32.mrf.mxu0
  %v428 = vadd.f32 0.0, %v427
  %v429 = vpop.f32.mrf.mxu0
  %430 = vmatprep.mubr.bf16.mxu0 %v191
  %431 = vmatmul.mubr.bf16.gmra.mxu0 %v190
  %v432 = vpop.f32.mrf.mxu0
  %v433 = vadd.f32 0.0, %v432
  %v434 = vpop.f32.mrf.mxu0
  %v435 = vpop.f32.mrf.mxu0
  %v436 = vadd.f32 0.0, %v435
  %v437 = vpop.f32.mrf.mxu0
  %438 = vdwg.mxu0
  %439 = vmatprep.subr.bf16.mxu0 0
  %440 = vmatpush1.bf16.msra.mxu0 0
  %441 = vmatprep.subr.bf16.mxu0 0
  %442 = vmatpush1.bf16.msra.mxu0 0
  %443 = vmatprep.subr.bf16.mxu0 0
  %444 = vmatpush1.bf16.msra.mxu0 0
  %445 = vmatprep.subr.bf16.mxu0 0
  %446 = vmatpush1.bf16.msra.mxu0 0
  %447 = vmatprep.subr.bf16.mxu0 0
  %448 = vmatpush1.bf16.msra.mxu0 0
  %449 = vmatprep.subr.bf16.mxu0 0
  %450 = vmatpush1.bf16.msra.mxu0 0
  %451 = vmatprep.subr.bf16.mxu0 0
  %452 = vmatpush1.bf16.msra.mxu0 %v298
  %453 = vmatprep.subr.bf16.mxu0 0
  %454 = vmatpush1.bf16.msra.mxu0 %v297
  %455 = vmatprep.subr.bf16.mxu0 0
  %456 = vmatpush2.bf16.msra.mxu0 0
  %457 = vmatprep.subr.bf16.mxu0 0
  %458 = vmatpush2.bf16.msra.mxu0 0
  %459 = vmatprep.subr.bf16.mxu0 0
  %460 = vmatpush2.bf16.msra.mxu0 0
  %461 = vmatprep.subr.bf16.mxu0 0
  %462 = vmatpush2.bf16.msra.mxu0 0
  %463 = vmatprep.subr.bf16.mxu0 0
  %464 = vmatpush2.bf16.msra.mxu0 0
  %465 = vmatprep.subr.bf16.mxu0 0
  %466 = vmatpush2.bf16.msra.mxu0 0
  %467 = vmatprep.subr.bf16.mxu0 0
  %468 = vmatpush2.bf16.msra.mxu0 0
  %469 = vmatprep.subr.bf16.mxu0 0
  %470 = vmatpush2.bf16.msra.mxu0 0
  %471 = vmatprep.mubr.bf16.mxu0 0
  %472 = vmatmul.mubr.bf16.gmra.mxu0 %v319
  %v473 = vpop.f32.mrf.mxu0
  %v474 = vadd.f32 %v377, %v473
  %v475 = vpop.f32.mrf.mxu0
  %v476 = vpop.f32.mrf.mxu0
  %v477 = vadd.f32 %v380, %v476
  %v478 = vpop.f32.mrf.mxu0
  %479 = vmatprep.mubr.bf16.mxu0 0
  %480 = vmatmul.mubr.bf16.gmra.mxu0 %v322
  %v481 = vpop.f32.mrf.mxu0
  %v482 = vadd.f32 %v385, %v481
  %v483 = vpop.f32.mrf.mxu0
  %v484 = vpop.f32.mrf.mxu0
  %v485 = vadd.f32 %v388, %v484
  %v486 = vpop.f32.mrf.mxu0
  %487 = vmatprep.mubr.bf16.mxu0 0
  %488 = vmatmul.mubr.bf16.gmra.mxu0 %v325
  %v489 = vpop.f32.mrf.mxu0
  %v490 = vadd.f32 %v393, %v489
  %v491 = vpop.f32.mrf.mxu0
  %v492 = vpop.f32.mrf.mxu0
  %v493 = vadd.f32 %v396, %v492
  %v494 = vpop.f32.mrf.mxu0
  %495 = vmatprep.mubr.bf16.mxu0 0
  %496 = vmatmul.mubr.bf16.gmra.mxu0 %v328
  %v497 = vpop.f32.mrf.mxu0
  %v498 = vadd.f32 %v401, %v497
  %v499 = vpop.f32.mrf.mxu0
  %v500 = vpop.f32.mrf.mxu0
  %v501 = vadd.f32 %v404, %v500
  %v502 = vpop.f32.mrf.mxu0
  %503 = vmatprep.mubr.bf16.mxu0 0
  %504 = vmatmul.mubr.bf16.gmra.mxu0 %v331
  %v505 = vpop.f32.mrf.mxu0
  %v506 = vadd.f32 %v409, %v505
  %v507 = vpop.f32.mrf.mxu0
  %v508 = vpop.f32.mrf.mxu0
  %v509 = vadd.f32 %v412, %v508
  %v510 = vpop.f32.mrf.mxu0
  %511 = vmatprep.mubr.bf16.mxu0 0
  %512 = vmatmul.mubr.bf16.gmra.mxu0 %v334
  %v513 = vpop.f32.mrf.mxu0
  %v514 = vadd.f32 %v417, %v513
  %v515 = vpop.f32.mrf.mxu0
  %v516 = vpop.f32.mrf.mxu0
  %v517 = vadd.f32 %v420, %v516
  %v518 = vpop.f32.mrf.mxu0
  %519 = vmatprep.mubr.bf16.mxu0 0
  %520 = vmatmul.mubr.bf16.gmra.mxu0 %v337
  %v521 = vpop.f32.mrf.mxu0
  %v522 = vadd.f32 %v425, %v521
  %v523 = vpop.f32.mrf.mxu0
  %v524 = vpop.f32.mrf.mxu0
  %v525 = vadd.f32 %v428, %v524
  %v526 = vpop.f32.mrf.mxu0
  %527 = vmatprep.mubr.bf16.mxu0 0
  %528 = vmatmul.mubr.bf16.gmra.mxu0 %v340
  %v529 = vpop.f32.mrf.mxu0
  %v530 = vadd.f32 %v433, %v529
  %v531 = vpop.f32.mrf.mxu0
  %v532 = vpop.f32.mrf.mxu0
  %v533 = vadd.f32 %v436, %v532
  %v534 = vpop.f32.mrf.mxu0
  %535 = vdwg.mxu0
  %v536 = vadd.f32 %v474, %v477
  %v537 = vadd.f32 %v536, %v482
  %v538 = vadd.f32 %v537, %v485
  %v539 = vadd.f32 %v538, %v490
  %v540 = vadd.f32 %v539, %v493
  %v541 = vadd.f32 %v540, %v498
  %v542 = vadd.f32 %v541, %v501
  %v543 = vadd.f32 %v542, %v506
  %v544 = vadd.f32 %v543, %v509
  %v545 = vadd.f32 %v544, %v514
  %v546 = vadd.f32 %v545, %v517
  %v547 = vadd.f32 %v546, %v522
  %v548 = vadd.f32 %v547, %v525
  %v549 = vadd.f32 %v548, %v530
  %v550 = vadd.f32 %v549, %v533
  %v551 = vrot.slane %v550, 4
  %v552 = vadd.f32 %v550, %v551
  %v553 = vrot.slane %v552, 2
  %v554 = vadd.f32 %v552, %v553
  %v555 = vrot.slane %v554, 1
  %v556 = vadd.f32 %v554, %v555
  %v557 = vmul.f32 %v474, %v474
  %v558 = vmul.f32 %v477, %v477
  %v559 = vmul.f32 %v482, %v482
  %v560 = vmul.f32 %v485, %v485
  %v561 = vmul.f32 %v490, %v490
  %v562 = vmul.f32 %v493, %v493
  %v563 = vmul.f32 %v498, %v498
  %v564 = vmul.f32 %v501, %v501
  %v565 = vmul.f32 %v506, %v506
  %v566 = vmul.f32 %v509, %v509
  %v567 = vmul.f32 %v514, %v514
  %v568 = vmul.f32 %v517, %v517
  %v569 = vmul.f32 %v522, %v522
  %v570 = vmul.f32 %v525, %v525
  %v571 = vmul.f32 %v530, %v530
  %v572 = vmul.f32 %v533, %v533
  %v573 = vadd.f32 %v557, %v558
  %v574 = vadd.f32 %v573, %v559
  %v575 = vadd.f32 %v574, %v560
  %v576 = vadd.f32 %v575, %v561
  %v577 = vadd.f32 %v576, %v562
  %v578 = vadd.f32 %v577, %v563
  %v579 = vadd.f32 %v578, %v564
  %v580 = vadd.f32 %v579, %v565
  %v581 = vadd.f32 %v580, %v566
  %v582 = vadd.f32 %v581, %v567
  %v583 = vadd.f32 %v582, %v568
  %v584 = vadd.f32 %v583, %v569
  %v585 = vadd.f32 %v584, %v570
  %v586 = vadd.f32 %v585, %v571
  %v587 = vadd.f32 %v586, %v572
  %v588 = vrot.slane %v587, 4
  %v589 = vadd.f32 %v587, %v588
  %v590 = vrot.slane %v589, 2
  %v591 = vadd.f32 %v589, %v590
  %v592 = vrot.slane %v591, 1
  %v593 = vadd.f32 %v591, %v592
  %vm594 = vcmask 1040384
  %v595 = vsel %vm594, %v556, %v593
  %v596 = vld [vmem:[%s2] sm:$0xff]
  %v597 = vld [vmem:[%s2 + $0x8] sm:$0xff]
  %v598 = vld [vmem:[%s2 + $0x10] sm:$0xff]
  %v599 = vld [vmem:[%s2 + $0x18] sm:$0xff]
  %v600 = vld [vmem:[%s2 + $0x20] sm:$0xff]
  %v601 = vld [vmem:[%s2 + $0x28] sm:$0xff]
  %v602 = vld [vmem:[%s2 + $0x30] sm:$0xff]
  %v603 = vld [vmem:[%s2 + $0x38] sm:$0xff]
  %v604 = vld [vmem:[%s2 + $0x40] sm:$0xff]
  %v605 = vld [vmem:[%s2 + $0x48] sm:$0xff]
  %v606 = vld [vmem:[%s2 + $0x50] sm:$0xff]
  %v607 = vld [vmem:[%s2 + $0x58] sm:$0xff]
  %v608 = vld [vmem:[%s2 + $0x60] sm:$0xff]
  %v609 = vld [vmem:[%s2 + $0x68] sm:$0xff]
  %v610 = vld [vmem:[%s2 + $0x70] sm:$0xff]
  %v611 = vld [vmem:[%s2 + $0x78] sm:$0xff]
  %612 = vmatprep.subr.mxu0 0.0
  %613 = vmatpush1.msra.mxu0 %v611
  %614 = vmatprep.subr.mxu0 0.0
  %615 = vmatpush1.msra.mxu0 %v610
  %616 = vmatprep.subr.mxu0 0.0
  %617 = vmatpush1.msra.mxu0 %v609
  %618 = vmatprep.subr.mxu0 0.0
  %619 = vmatpush1.msra.mxu0 %v608
  %620 = vmatprep.subr.mxu0 0.0
  %621 = vmatpush1.msra.mxu0 %v607
  %622 = vmatprep.subr.mxu0 0.0
  %623 = vmatpush1.msra.mxu0 %v606
  %624 = vmatprep.subr.mxu0 0.0
  %625 = vmatpush1.msra.mxu0 %v605
  %626 = vmatprep.subr.mxu0 0.0
  %627 = vmatpush1.msra.mxu0 %v604
  %628 = vmatprep.subr.mxu0 0.0
  %629 = vmatpush1.msra.mxu0 %v603
  %630 = vmatprep.subr.mxu0 0.0
  %631 = vmatpush1.msra.mxu0 %v602
  %632 = vmatprep.subr.mxu0 0.0
  %633 = vmatpush1.msra.mxu0 %v601
  %634 = vmatprep.subr.mxu0 0.0
  %635 = vmatpush1.msra.mxu0 %v600
  %636 = vmatprep.subr.mxu0 0.0
  %637 = vmatpush1.msra.mxu0 %v599
  %638 = vmatprep.subr.mxu0 0.0
  %639 = vmatpush1.msra.mxu0 %v598
  %640 = vmatprep.subr.mxu0 0.0
  %641 = vmatpush1.msra.mxu0 %v597
  %642 = vmatprep.subr.mxu0 0.0
  %643 = vmatpush1.msra.mxu0 %v596
  %644 = vmatprep.subr.mxu0 0.0
  %645 = vmatpush2.msra.mxu0 0.0
  %646 = vmatprep.subr.mxu0 0.0
  %647 = vmatpush2.msra.mxu0 0.0
  %648 = vmatprep.subr.mxu0 0.0
  %649 = vmatpush2.msra.mxu0 0.0
  %650 = vmatprep.subr.mxu0 0.0
  %651 = vmatpush2.msra.mxu0 0.0
  %652 = vmatprep.subr.mxu0 0.0
  %653 = vmatpush2.msra.mxu0 0.0
  %654 = vmatprep.subr.mxu0 0.0
  %655 = vmatpush2.msra.mxu0 0.0
  %656 = vmatprep.subr.mxu0 0.0
  %657 = vmatpush2.msra.mxu0 0.0
  %658 = vmatprep.subr.mxu0 0.0
  %659 = vmatpush2.msra.mxu0 0.0
  %660 = vmatprep.subr.mxu0 0.0
  %661 = vmatpush2.msra.mxu0 0.0
  %662 = vmatprep.subr.mxu0 0.0
  %663 = vmatpush2.msra.mxu0 0.0
  %664 = vmatprep.subr.mxu0 0.0
  %665 = vmatpush2.msra.mxu0 0.0
  %666 = vmatprep.subr.mxu0 0.0
  %667 = vmatpush2.msra.mxu0 0.0
  %668 = vmatprep.subr.mxu0 0.0
  %669 = vmatpush2.msra.mxu0 0.0
  %670 = vmatprep.subr.mxu0 0.0
  %671 = vmatpush2.msra.mxu0 0.0
  %672 = vmatprep.subr.mxu0 0.0
  %673 = vmatpush2.msra.mxu0 0.0
  %674 = vmatprep.subr.mxu0 0.0
  %675 = vmatpush2.msra.mxu0 0.0
  %676 = vmatprep.mubr.f32.mxu0 0.0
  %677 = vmatmul.mubr.f32.gmra.mxu0 %v595
  %v678 = vpop.f32.mrf.mxu0
  %v679 = vadd.f32 0.0, %v678
  %v680 = vpop.f32.mrf.mxu0
  %681 = vdwg.mxu0
  %v682 = vmul.f32 %v679, 0.001953125
  %v683 = vmul.f32 %v682, %v682
  %v685 = vrot.slane %v683, 7
  %v687 = vsub.f32 %v682, %v685
  %v688 = vld [vmem:[%s3] sm:$0x1]
  %v689 = vadd.f32 %v687, 1e-05
  %v690 = vrsqrt.pop %v689
  %v693 = vunpack.c.l.s4 1966171168
  %v694 = vunpack.c.0.s8 %v693
  %v695 = vlaneseq
  %v696 = vshrl.u32 %v695, 7
  %v697 = vsub.s32 %v694, %v696
  %v698 = vrot.slane %v690, %v697
  %v699 = vcombine.high %v698, %v698
  %v701 = vunpack.c.l.s4 1966171168
  %v702 = vunpack.c.0.s8 %v701
  %v703 = vlaneseq
  %v704 = vshrl.u32 %v703, 7
  %v705 = vsub.s32 %v702, %v704
  %v706 = vrot.slane %v699, %v705
  %v708 = vmul.f32 %v688, %v706
  %v709 = vld [vmem:[%s4] sm:$0x1]
  %v710 = vmul.f32 %v682, %v708
  %v711 = vsub.f32 %v709, %v710
  %v713 = vlaneseq
  %v714 = vshrl.u32 %v713, 7
  %v715 = vsub.s32 0, %v714
  %v716 = vrot.slane %v708, %v715
  %v718 = vmul.f32 %v474, %v716
  %v719 = vmul.f32 %v477, %v716
  %v720 = vmul.f32 %v482, %v716
  %v721 = vmul.f32 %v485, %v716
  %v722 = vmul.f32 %v490, %v716
  %v723 = vmul.f32 %v493, %v716
  %v724 = vmul.f32 %v498, %v716
  %v725 = vmul.f32 %v501, %v716
  %v726 = vmul.f32 %v506, %v716
  %v727 = vmul.f32 %v509, %v716
  %v728 = vmul.f32 %v514, %v716
  %v729 = vmul.f32 %v517, %v716
  %v730 = vmul.f32 %v522, %v716
  %v731 = vmul.f32 %v525, %v716
  %v732 = vmul.f32 %v530, %v716
  %v733 = vmul.f32 %v533, %v716
  %v735 = vlaneseq
  %v736 = vshrl.u32 %v735, 7
  %v737 = vsub.s32 0, %v736
  %v738 = vrot.slane %v711, %v737
  %v740 = vadd.f32 %v718, %v738
  %v741 = vadd.f32 %v719, %v738
  %v742 = vadd.f32 %v720, %v738
  %v743 = vadd.f32 %v721, %v738
  %v744 = vadd.f32 %v722, %v738
  %v745 = vadd.f32 %v723, %v738
  %v746 = vadd.f32 %v724, %v738
  %v747 = vadd.f32 %v725, %v738
  %v748 = vadd.f32 %v726, %v738
  %v749 = vadd.f32 %v727, %v738
  %v750 = vadd.f32 %v728, %v738
  %v751 = vadd.f32 %v729, %v738
  %v752 = vadd.f32 %v730, %v738
  %v753 = vadd.f32 %v731, %v738
  %v754 = vadd.f32 %v732, %v738
  %v755 = vadd.f32 %v733, %v738
  %v756 = vmax.f32 %v740, 0.0
  %v757 = vmax.f32 %v741, 0.0
  %v758 = vmax.f32 %v742, 0.0
  %v759 = vmax.f32 %v743, 0.0
  %v760 = vmax.f32 %v744, 0.0
  %v761 = vmax.f32 %v745, 0.0
  %v762 = vmax.f32 %v746, 0.0
  %v763 = vmax.f32 %v747, 0.0
  %v764 = vmax.f32 %v748, 0.0
  %v765 = vmax.f32 %v749, 0.0
  %v766 = vmax.f32 %v750, 0.0
  %v767 = vmax.f32 %v751, 0.0
  %v768 = vmax.f32 %v752, 0.0
  %v769 = vmax.f32 %v753, 0.0
  %v770 = vmax.f32 %v754, 0.0
  %v771 = vmax.f32 %v755, 0.0
  %v772 = vpack.c.bf16 %v757, %v756
  %v773 = vpack.c.bf16 %v759, %v758
  %v774 = vpack.c.bf16 %v761, %v760
  %v775 = vpack.c.bf16 %v763, %v762
  %v776 = vpack.c.bf16 %v765, %v764
  %v777 = vpack.c.bf16 %v767, %v766
  %v778 = vpack.c.bf16 %v769, %v768
  %v779 = vpack.c.bf16 %v771, %v770
  %v788 = vunpack.c.l.b16 %v772
  %v789 = vunpack.c.h.b16 %v772
  %v790 = vunpack.c.l.b16 %v773
  %v791 = vunpack.c.h.b16 %v773
  %v792 = vunpack.c.l.b16 %v774
  %v793 = vunpack.c.h.b16 %v774
  %v794 = vunpack.c.l.b16 %v775
  %v795 = vunpack.c.h.b16 %v775
  %v796 = vunpack.c.l.b16 %v776
  %v797 = vunpack.c.h.b16 %v776
  %v798 = vunpack.c.l.b16 %v777
  %v799 = vunpack.c.h.b16 %v777
  %v800 = vunpack.c.l.b16 %v778
  %v801 = vunpack.c.h.b16 %v778
  %v802 = vunpack.c.l.b16 %v779
  %v803 = vunpack.c.h.b16 %v779
  %v804 = vpack.c.b16 %v788, %v788
  %v805 = vpack.c.b16 %v789, %v789
  %v806 = vpack.c.b16 %v790, %v790
  %v807 = vpack.c.b16 %v791, %v791
  %v808 = vpack.c.b16 %v792, %v792
  %v809 = vpack.c.b16 %v793, %v793
  %v810 = vpack.c.b16 %v794, %v794
  %v811 = vpack.c.b16 %v795, %v795
  %v812 = vpack.c.b16 %v796, %v796
  %v813 = vpack.c.b16 %v797, %v797
  %v814 = vpack.c.b16 %v798, %v798
  %v815 = vpack.c.b16 %v799, %v799
  %v816 = vpack.c.b16 %v800, %v800
  %v817 = vpack.c.b16 %v801, %v801
  %v818 = vpack.c.b16 %v802, %v802
  %v819 = vpack.c.b16 %v803, %v803
  %836 = vst [vmem:[%s5] sm:$0xf] %v804
  %837 = vst [vmem:[%s5 + $0x4] sm:$0xf] %v805
  %838 = vst [vmem:[%s5 + $0x8] sm:$0xf] %v806
  %839 = vst [vmem:[%s5 + $0xc] sm:$0xf] %v807
  %840 = vst [vmem:[%s5 + $0x10] sm:$0xf] %v808
  %841 = vst [vmem:[%s5 + $0x14] sm:$0xf] %v809
  %842 = vst [vmem:[%s5 + $0x18] sm:$0xf] %v810
  %843 = vst [vmem:[%s5 + $0x1c] sm:$0xf] %v811
  %844 = vst [vmem:[%s5 + $0x20] sm:$0xf] %v812
  %845 = vst [vmem:[%s5 + $0x24] sm:$0xf] %v813
  %846 = vst [vmem:[%s5 + $0x28] sm:$0xf] %v814
  %847 = vst [vmem:[%s5 + $0x2c] sm:$0xf] %v815
  %848 = vst [vmem:[%s5 + $0x30] sm:$0xf] %v816
  %849 = vst [vmem:[%s5 + $0x34] sm:$0xf] %v817
  %850 = vst [vmem:[%s5 + $0x38] sm:$0xf] %v818
  %851 = vst [vmem:[%s5 + $0x3c] sm:$0xf] %v819
  // Predicated region
  $region22: #{generator_forward.7} parent=0 // pred_check
    _
  $region23: #{generator_forward.7} parent=0 // pred_check_branch
    %853 = sbr.rel (0) target = $region25
  $region24: #{generator_forward.7} parent=0 // pred_region
    _
  $region25: #{generator_forward.7} parent=0 // pred_fallthru
    _
  // Predicated region
  $region26: #{generator_forward.7} parent=0 // pred_check
    _
  $region27: #{generator_forward.7} parent=0 // pred_check_branch
    %855 = sbr.rel (0) target = $region29
  $region28: #{generator_forward.7} parent=0 // pred_region
    _
  $region29: #{generator_forward.7} parent=0 // pred_fallthru
    _

// kernel: tile.53
$region0: #{tile.53}
  #allocation0 [shape = 's32[1]{0}', space=sflag, size = 0x4, scoped, tag = 'scoped memory for tile.53']
  %s0 = inlined_call_operand.vmem [shape: f32[8], index: 0, kind: input, shape index: {}]
  %s1 = inlined_call_operand.vmem [shape: f32[4,8], index: 1, kind: output, shape index: {}]
  // Predicated region
  $region2: #{tile.53} parent=0 // pred_check
    _
  $region3: #{tile.53} parent=0 // pred_check_branch
    %3 = sbr.rel (0) target = $region5
  $region4: #{tile.53} parent=0 // pred_region
    _
  $region5: #{tile.53} parent=0 // pred_fallthru
    _
  %v4 = vld [vmem:[%s0] ss:$0 sm:$0xff]
  %5 = vst [vmem:[%s1] sm:$0xf] %v4

// kernel: tile.54
$region0: #{tile.54}
  %s0 = inlined_call_operand.vmem [shape: f32[4,8], index: 0, kind: input, shape index: {}]
  %s1 = inlined_call_operand.vmem [shape: f32[32], index: 1, kind: output, shape index: {}]
  $region1: #{tile.54} parent=0
    #allocation0 [shape = 'u8[4096]{0}', space=vmem, size = 0x1000, scoped, tag = 'scoped mem for output reshape']
    #allocation1 [shape = 'u8[4096]{0}', space=vmem, size = 0x1000, scoped, tag = 'scoped mem for input reshape']
    %s3 = sshll.u32 1, 4
    %s4 = ssub.s32 %s3, 1
    %v5 = vld [vmem:[%s0] sm:%s4]
    %6 = vst [vmem:[#allocation1] sm:%s4] %v5
    %v7 = vld [vmem:[#allocation1] sm:$0x1]
    %vm8 = vcmask 64512
    %9 = vst.msk [vmem:[#allocation0] sm:$0x1] %vm8, %v7
    %s10 = scalar_lea.vmem [#allocation1], 3
    %v11 = vld [vmem:[%s10] sm:$0x1]
    %12 = vrot.lane.b32.xlu0 %v11, 24
    %v13 = vpop.permute.xlu0 %12
    %vm14 = vcmask 261312
    %15 = vst.msk [vmem:[#allocation0] sm:$0x1] %vm14, %v13
    %s16 = scalar_lea.vmem [#allocation1], 2
    %v17 = vld [vmem:[%s16] sm:$0x1]
    %18 = vrot.lane.b32.xlu0 %v17, 16
    %v19 = vpop.permute.xlu0 %18
    %vm20 = vcmask 195712
    %21 = vst.msk [vmem:[#allocation0] sm:$0x1] %vm20, %v19
    %s22 = scalar_lea.vmem [#allocation1], 1
    %v23 = vld [vmem:[%s22] sm:$0x1]
    %24 = vrot.lane.b32.xlu0 %v23, 8
    %v25 = vpop.permute.xlu0 %24
    %vm26 = vcmask 130112
    %27 = vst.msk [vmem:[#allocation0] sm:$0x1] %vm26, %v25
    %s29 = sshll.u32 1, 1
    %s30 = ssub.s32 %s29, 1
    %v32 = vld [vmem:[#allocation0] sm:%s30]
    %s33 = sshll.u32 1, 1
    %s34 = ssub.s32 %s33, 1
    %35 = vst [vmem:[%s1] sm:%s34] %v32

// kernel: generator_forward.8
$region0: #{generator_forward.8}
  #allocation0 [shape = 'u32[]', space=smem, size = 0x4, offset = 0x4, fixed_abs, tag = 'smem constant byte address 0x4 - core index']
  #allocation1 [shape = 'u32[144,128]{1,0:T(1,128)}', space=vmem, size = 0x12000, scoped, tag = 'internal scratch']
  %s0 = inlined_call_operand.vmem [shape: bf16[512,144], index: 0, kind: input, shape index: {}]
  %s1 = inlined_call_operand.vmem [shape: bf16[144,128], index: 1, kind: input, shape index: {}]
  %s2 = inlined_call_operand.vmem [shape: f32[128,128], index: 2, kind: input, shape index: {}]
  %s3 = inlined_call_operand.vmem [shape: f32[1,128], index: 3, kind: input, shape index: {}]
  %s4 = inlined_call_operand.vmem [shape: f32[1,128], index: 4, kind: input, shape index: {}]
  %s5 = inlined_call_operand.vmem [shape: bf16[512,128], index: 5, kind: output, shape index: {}]
  %s6 = sld [smem:[#allocation0]]
  $region30: #{generator_forward.8} parent=0
    _
  %s8 = ssub.s32 1, %s6
  %s9 = scalar_select 0, %s8, %s6
  // Predicated region
  $region2: #{generator_forward.8} parent=0 // pred_check
    _
  $region3: #{generator_forward.8} parent=0 // pred_check_branch
    %11 = sbr.rel (0) target = $region5
  $region4: #{generator_forward.8} parent=0 // pred_region
    _
  $region5: #{generator_forward.8} parent=0 // pred_fallthru
    _
  // Predicated region
  $region6: #{generator_forward.8} parent=0 // pred_check
    _
  $region7: #{generator_forward.8} parent=0 // pred_check_branch
    %13 = sbr.rel (0) target = $region9
  $region8: #{generator_forward.8} parent=0 // pred_region
    _
  $region9: #{generator_forward.8} parent=0 // pred_fallthru
    _
  // Predicated region
  $region10: #{generator_forward.8} parent=0 // pred_check
    _
  $region11: #{generator_forward.8} parent=0 // pred_check_branch
    %15 = sbr.rel (0) target = $region13
  $region12: #{generator_forward.8} parent=0 // pred_region
    _
  $region13: #{generator_forward.8} parent=0 // pred_fallthru
    _
  // Predicated region
  $region14: #{generator_forward.8} parent=0 // pred_check
    _
  $region15: #{generator_forward.8} parent=0 // pred_check_branch
    %17 = sbr.rel (0) target = $region17
  $region16: #{generator_forward.8} parent=0 // pred_region
    _
  $region17: #{generator_forward.8} parent=0 // pred_fallthru
    _
  // Predicated region
  $region18: #{generator_forward.8} parent=0 // pred_check
    _
  $region19: #{generator_forward.8} parent=0 // pred_check_branch
    %19 = sbr.rel (0) target = $region21
  $region20: #{generator_forward.8} parent=0 // pred_region
    _
  $region21: #{generator_forward.8} parent=0 // pred_fallthru
    _
  %v21 = vld [vmem:[%s0] sm:$0xff]
  %v22 = vld [vmem:[%s0 + $0x8] sm:$0xff]
  %v23 = vld [vmem:[%s0 + $0x10] sm:$0xff]
  %v24 = vld [vmem:[%s0 + $0x18] sm:$0xff]
  %v25 = vld [vmem:[%s0 + $0x20] sm:$0xff]
  %v26 = vld [vmem:[%s0 + $0x28] sm:$0xff]
  %v27 = vld [vmem:[%s0 + $0x30] sm:$0xff]
  %v28 = vld [vmem:[%s0 + $0x38] sm:$0xff]
  %v29 = vld [vmem:[%s0 + $0x40] sm:$0xff]
  %v30 = vld [vmem:[%s0 + $0x48] sm:$0xff]
  %v31 = vld [vmem:[%s0 + $0x50] sm:$0xff]
  %v32 = vld [vmem:[%s0 + $0x58] sm:$0xff]
  %v33 = vld [vmem:[%s0 + $0x60] sm:$0xff]
  %v34 = vld [vmem:[%s0 + $0x68] sm:$0xff]
  %v35 = vld [vmem:[%s0 + $0x70] sm:$0xff]
  %v36 = vld [vmem:[%s0 + $0x78] sm:$0xff]
  %v37 = vld [vmem:[%s0 + $0x80] sm:$0xff]
  %v38 = vld [vmem:[%s0 + $0x88] sm:$0xff]
  %v39 = vld [vmem:[%s0 + $0x90] sm:$0xff]
  %v40 = vld [vmem:[%s0 + $0x98] sm:$0xff]
  %v41 = vld [vmem:[%s0 + $0xa0] sm:$0xff]
  %v42 = vld [vmem:[%s0 + $0xa8] sm:$0xff]
  %v43 = vld [vmem:[%s0 + $0xb0] sm:$0xff]
  %v44 = vld [vmem:[%s0 + $0xb8] sm:$0xff]
  %v45 = vld [vmem:[%s0 + $0xc0] sm:$0xff]
  %v46 = vld [vmem:[%s0 + $0xc8] sm:$0xff]
  %v47 = vld [vmem:[%s0 + $0xd0] sm:$0xff]
  %v48 = vld [vmem:[%s0 + $0xd8] sm:$0xff]
  %v49 = vld [vmem:[%s0 + $0xe0] sm:$0xff]
  %v50 = vld [vmem:[%s0 + $0xe8] sm:$0xff]
  %v51 = vld [vmem:[%s0 + $0xf0] sm:$0xff]
  %v52 = vld [vmem:[%s0 + $0xf8] sm:$0xff]
  %v53 = vld [vmem:[%s0 + $0x100] sm:$0xff]
  %v54 = vld [vmem:[%s0 + $0x108] sm:$0xff]
  %v55 = vld [vmem:[%s0 + $0x110] sm:$0xff]
  %v56 = vld [vmem:[%s0 + $0x118] sm:$0xff]
  %v57 = vld [vmem:[%s0 + $0x120] sm:$0xff]
  %v58 = vld [vmem:[%s0 + $0x128] sm:$0xff]
  %v59 = vld [vmem:[%s0 + $0x130] sm:$0xff]
  %v60 = vld [vmem:[%s0 + $0x138] sm:$0xff]
  %v61 = vld [vmem:[%s0 + $0x140] sm:$0xff]
  %v62 = vld [vmem:[%s0 + $0x148] sm:$0xff]
  %v63 = vld [vmem:[%s0 + $0x150] sm:$0xff]
  %v64 = vld [vmem:[%s0 + $0x158] sm:$0xff]
  %v65 = vld [vmem:[%s0 + $0x160] sm:$0xff]
  %v66 = vld [vmem:[%s0 + $0x168] sm:$0xff]
  %v67 = vld [vmem:[%s0 + $0x170] sm:$0xff]
  %v68 = vld [vmem:[%s0 + $0x178] sm:$0xff]
  %v69 = vld [vmem:[%s0 + $0x180] sm:$0xff]
  %v70 = vld [vmem:[%s0 + $0x188] sm:$0xff]
  %v71 = vld [vmem:[%s0 + $0x190] sm:$0xff]
  %v72 = vld [vmem:[%s0 + $0x198] sm:$0xff]
  %v73 = vld [vmem:[%s0 + $0x1a0] sm:$0xff]
  %v74 = vld [vmem:[%s0 + $0x1a8] sm:$0xff]
  %v75 = vld [vmem:[%s0 + $0x1b0] sm:$0xff]
  %v76 = vld [vmem:[%s0 + $0x1b8] sm:$0xff]
  %v77 = vld [vmem:[%s0 + $0x1c0] sm:$0xff]
  %v78 = vld [vmem:[%s0 + $0x1c8] sm:$0xff]
  %v79 = vld [vmem:[%s0 + $0x1d0] sm:$0xff]
  %v80 = vld [vmem:[%s0 + $0x1d8] sm:$0xff]
  %v81 = vld [vmem:[%s0 + $0x1e0] sm:$0xff]
  %v82 = vld [vmem:[%s0 + $0x1e8] sm:$0xff]
  %v83 = vld [vmem:[%s0 + $0x1f0] sm:$0xff]
  %v84 = vld [vmem:[%s0 + $0x1f8] sm:$0xff]
  %v85 = vld [vmem:[%s1] sm:$0xf]
  %v86 = vld [vmem:[%s1 + $0x4] sm:$0xf]
  %v87 = vld [vmem:[%s1 + $0x8] sm:$0xf]
  %v88 = vld [vmem:[%s1 + $0xc] sm:$0xf]
  %v89 = vld [vmem:[%s1 + $0x10] sm:$0xf]
  %v90 = vld [vmem:[%s1 + $0x14] sm:$0xf]
  %v91 = vld [vmem:[%s1 + $0x18] sm:$0xf]
  %v92 = vld [vmem:[%s1 + $0x1c] sm:$0xf]
  %v93 = vld [vmem:[%s1 + $0x20] sm:$0xf]
  %v94 = vld [vmem:[%s1 + $0x24] sm:$0xf]
  %v95 = vld [vmem:[%s1 + $0x28] sm:$0xf]
  %v96 = vld [vmem:[%s1 + $0x2c] sm:$0xf]
  %v97 = vld [vmem:[%s1 + $0x30] sm:$0xf]
  %v98 = vld [vmem:[%s1 + $0x34] sm:$0xf]
  %v99 = vld [vmem:[%s1 + $0x38] sm:$0xf]
  %v100 = vld [vmem:[%s1 + $0x3c] sm:$0xf]
  %v101 = vld [vmem:[%s1 + $0x40] sm:$0xf]
  %v102 = vld [vmem:[%s1 + $0x44] sm:$0xf]
  %v167 = vunpack.c.l.b16 %v21
  %v168 = vunpack.c.h.b16 %v21
  %v169 = vunpack.c.l.b16 %v22
  %v170 = vunpack.c.h.b16 %v22
  %v171 = vunpack.c.l.b16 %v23
  %v172 = vunpack.c.h.b16 %v23
  %v173 = vunpack.c.l.b16 %v24
  %v174 = vunpack.c.h.b16 %v24
  %v175 = vunpack.c.l.b16 %v25
  %v176 = vunpack.c.h.b16 %v25
  %v177 = vunpack.c.l.b16 %v26
  %v178 = vunpack.c.h.b16 %v26
  %v179 = vunpack.c.l.b16 %v27
  %v180 = vunpack.c.h.b16 %v27
  %v181 = vunpack.c.l.b16 %v28
  %v182 = vunpack.c.h.b16 %v28
  %v183 = vunpack.c.l.b16 %v29
  %v184 = vunpack.c.h.b16 %v29
  %v185 = vunpack.c.l.b16 %v30
  %v186 = vunpack.c.h.b16 %v30
  %v187 = vunpack.c.l.b16 %v31
  %v188 = vunpack.c.h.b16 %v31
  %v189 = vunpack.c.l.b16 %v32
  %v190 = vunpack.c.h.b16 %v32
  %v191 = vunpack.c.l.b16 %v33
  %v192 = vunpack.c.h.b16 %v33
  %v193 = vunpack.c.l.b16 %v34
  %v194 = vunpack.c.h.b16 %v34
  %v195 = vunpack.c.l.b16 %v35
  %v196 = vunpack.c.h.b16 %v35
  %v197 = vunpack.c.l.b16 %v36
  %v198 = vunpack.c.h.b16 %v36
  %v199 = vunpack.c.l.b16 %v37
  %v200 = vunpack.c.h.b16 %v37
  %v201 = vunpack.c.l.b16 %v38
  %v202 = vunpack.c.h.b16 %v38
  %v203 = vunpack.c.l.b16 %v39
  %v204 = vunpack.c.h.b16 %v39
  %v205 = vunpack.c.l.b16 %v40
  %v206 = vunpack.c.h.b16 %v40
  %v207 = vunpack.c.l.b16 %v41
  %v208 = vunpack.c.h.b16 %v41
  %v209 = vunpack.c.l.b16 %v42
  %v210 = vunpack.c.h.b16 %v42
  %v211 = vunpack.c.l.b16 %v43
  %v212 = vunpack.c.h.b16 %v43
  %v213 = vunpack.c.l.b16 %v44
  %v214 = vunpack.c.h.b16 %v44
  %v215 = vunpack.c.l.b16 %v45
  %v216 = vunpack.c.h.b16 %v45
  %v217 = vunpack.c.l.b16 %v46
  %v218 = vunpack.c.h.b16 %v46
  %v219 = vunpack.c.l.b16 %v47
  %v220 = vunpack.c.h.b16 %v47
  %v221 = vunpack.c.l.b16 %v48
  %v222 = vunpack.c.h.b16 %v48
  %v223 = vunpack.c.l.b16 %v49
  %v224 = vunpack.c.h.b16 %v49
  %v225 = vunpack.c.l.b16 %v50
  %v226 = vunpack.c.h.b16 %v50
  %v227 = vunpack.c.l.b16 %v51
  %v228 = vunpack.c.h.b16 %v51
  %v229 = vunpack.c.l.b16 %v52
  %v230 = vunpack.c.h.b16 %v52
  %v231 = vunpack.c.l.b16 %v53
  %v232 = vunpack.c.h.b16 %v53
  %v233 = vunpack.c.l.b16 %v54
  %v234 = vunpack.c.h.b16 %v54
  %v235 = vunpack.c.l.b16 %v55
  %v236 = vunpack.c.h.b16 %v55
  %v237 = vunpack.c.l.b16 %v56
  %v238 = vunpack.c.h.b16 %v56
  %v239 = vunpack.c.l.b16 %v57
  %v240 = vunpack.c.h.b16 %v57
  %v241 = vunpack.c.l.b16 %v58
  %v242 = vunpack.c.h.b16 %v58
  %v243 = vunpack.c.l.b16 %v59
  %v244 = vunpack.c.h.b16 %v59
  %v245 = vunpack.c.l.b16 %v60
  %v246 = vunpack.c.h.b16 %v60
  %v247 = vunpack.c.l.b16 %v61
  %v248 = vunpack.c.h.b16 %v61
  %v249 = vunpack.c.l.b16 %v62
  %v250 = vunpack.c.h.b16 %v62
  %v251 = vunpack.c.l.b16 %v63
  %v252 = vunpack.c.h.b16 %v63
  %v253 = vunpack.c.l.b16 %v64
  %v254 = vunpack.c.h.b16 %v64
  %v255 = vunpack.c.l.b16 %v65
  %v256 = vunpack.c.h.b16 %v65
  %v257 = vunpack.c.l.b16 %v66
  %v258 = vunpack.c.h.b16 %v66
  %v259 = vunpack.c.l.b16 %v67
  %v260 = vunpack.c.h.b16 %v67
  %v261 = vunpack.c.l.b16 %v68
  %v262 = vunpack.c.h.b16 %v68
  %v263 = vunpack.c.l.b16 %v69
  %v264 = vunpack.c.h.b16 %v69
  %v265 = vunpack.c.l.b16 %v70
  %v266 = vunpack.c.h.b16 %v70
  %v267 = vunpack.c.l.b16 %v71
  %v268 = vunpack.c.h.b16 %v71
  %v269 = vunpack.c.l.b16 %v72
  %v270 = vunpack.c.h.b16 %v72
  %v271 = vunpack.c.l.b16 %v73
  %v272 = vunpack.c.h.b16 %v73
  %v273 = vunpack.c.l.b16 %v74
  %v274 = vunpack.c.h.b16 %v74
  %v275 = vunpack.c.l.b16 %v75
  %v276 = vunpack.c.h.b16 %v75
  %v277 = vunpack.c.l.b16 %v76
  %v278 = vunpack.c.h.b16 %v76
  %v279 = vunpack.c.l.b16 %v77
  %v280 = vunpack.c.h.b16 %v77
  %v281 = vunpack.c.l.b16 %v78
  %v282 = vunpack.c.h.b16 %v78
  %v283 = vunpack.c.l.b16 %v79
  %v284 = vunpack.c.h.b16 %v79
  %v285 = vunpack.c.l.b16 %v80
  %v286 = vunpack.c.h.b16 %v80
  %v287 = vunpack.c.l.b16 %v81
  %v288 = vunpack.c.h.b16 %v81
  %v289 = vunpack.c.l.b16 %v82
  %v290 = vunpack.c.h.b16 %v82
  %v291 = vunpack.c.l.b16 %v83
  %v292 = vunpack.c.h.b16 %v83
  %v293 = vunpack.c.l.b16 %v84
  %v294 = vunpack.c.h.b16 %v84
  %v295 = vpack.c.b16 %v169, %v167
  %v296 = vpack.c.b16 %v170, %v168
  %v297 = vpack.c.b16 %v173, %v171
  %v298 = vpack.c.b16 %v174, %v172
  %v299 = vpack.c.b16 %v177, %v175
  %v300 = vpack.c.b16 %v178, %v176
  %v301 = vpack.c.b16 %v181, %v179
  %v302 = vpack.c.b16 %v182, %v180
  %v303 = vpack.c.b16 %v185, %v183
  %v304 = vpack.c.b16 %v186, %v184
  %v305 = vpack.c.b16 %v189, %v187
  %v306 = vpack.c.b16 %v190, %v188
  %v307 = vpack.c.b16 %v193, %v191
  %v308 = vpack.c.b16 %v194, %v192
  %v309 = vpack.c.b16 %v197, %v195
  %v310 = vpack.c.b16 %v198, %v196
  %v311 = vpack.c.b16 %v201, %v199
  %v312 = vpack.c.b16 %v202, %v200
  %v313 = vpack.c.b16 %v205, %v203
  %v314 = vpack.c.b16 %v206, %v204
  %v315 = vpack.c.b16 %v209, %v207
  %v316 = vpack.c.b16 %v210, %v208
  %v317 = vpack.c.b16 %v213, %v211
  %v318 = vpack.c.b16 %v214, %v212
  %v319 = vpack.c.b16 %v217, %v215
  %v320 = vpack.c.b16 %v218, %v216
  %v321 = vpack.c.b16 %v221, %v219
  %v322 = vpack.c.b16 %v222, %v220
  %v323 = vpack.c.b16 %v225, %v223
  %v324 = vpack.c.b16 %v226, %v224
  %v325 = vpack.c.b16 %v229, %v227
  %v326 = vpack.c.b16 %v230, %v228
  %v327 = vpack.c.b16 %v233, %v231
  %v328 = vpack.c.b16 %v234, %v232
  %v329 = vpack.c.b16 %v237, %v235
  %v330 = vpack.c.b16 %v238, %v236
  %v331 = vpack.c.b16 %v241, %v239
  %v332 = vpack.c.b16 %v242, %v240
  %v333 = vpack.c.b16 %v245, %v243
  %v334 = vpack.c.b16 %v246, %v244
  %v335 = vpack.c.b16 %v249, %v247
  %v336 = vpack.c.b16 %v250, %v248
  %v337 = vpack.c.b16 %v253, %v251
  %v338 = vpack.c.b16 %v254, %v252
  %v339 = vpack.c.b16 %v257, %v255
  %v340 = vpack.c.b16 %v258, %v256
  %v341 = vpack.c.b16 %v261, %v259
  %v342 = vpack.c.b16 %v262, %v260
  %v343 = vpack.c.b16 %v265, %v263
  %v344 = vpack.c.b16 %v266, %v264
  %v345 = vpack.c.b16 %v269, %v267
  %v346 = vpack.c.b16 %v270, %v268
  %v347 = vpack.c.b16 %v273, %v271
  %v348 = vpack.c.b16 %v274, %v272
  %v349 = vpack.c.b16 %v277, %v275
  %v350 = vpack.c.b16 %v278, %v276
  %v351 = vpack.c.b16 %v281, %v279
  %v352 = vpack.c.b16 %v282, %v280
  %v353 = vpack.c.b16 %v285, %v283
  %v354 = vpack.c.b16 %v286, %v284
  %v355 = vpack.c.b16 %v289, %v287
  %v356 = vpack.c.b16 %v290, %v288
  %v357 = vpack.c.b16 %v293, %v291
  %v358 = vpack.c.b16 %v294, %v292
  %v409 = vunpack.c.l.b16 %v85
  %v410 = vunpack.c.l.b16 %v86
  %v411 = vunpack.c.l.b16 %v87
  %v412 = vunpack.c.l.b16 %v88
  %v413 = vunpack.c.l.b16 %v89
  %v414 = vunpack.c.l.b16 %v90
  %v415 = vunpack.c.l.b16 %v91
  %v416 = vunpack.c.l.b16 %v92
  %v417 = vunpack.c.l.b16 %v93
  %v418 = vunpack.c.l.b16 %v94
  %v419 = vunpack.c.l.b16 %v95
  %v420 = vunpack.c.l.b16 %v96
  %v421 = vunpack.c.l.b16 %v97
  %v422 = vunpack.c.l.b16 %v98
  %v423 = vunpack.c.l.b16 %v99
  %v424 = vunpack.c.l.b16 %v100
  %v425 = vunpack.c.l.b16 %v101
  %v426 = vunpack.c.l.b16 %v102
  %v427 = vpack.c.b16 %v410, %v409
  %v428 = vpack.c.b16 %v412, %v411
  %v429 = vpack.c.b16 %v414, %v413
  %v430 = vpack.c.b16 %v416, %v415
  %v431 = vpack.c.b16 %v418, %v417
  %v432 = vpack.c.b16 %v420, %v419
  %v433 = vpack.c.b16 %v422, %v421
  %v434 = vpack.c.b16 %v424, %v423
  %v435 = vpack.c.b16 %v426, %v425
  %vm445 = vcmask 130048
  %v447 = vsel %vm445, %v296, 0
  %v450 = vsel %vm445, %v298, 0
  %v453 = vsel %vm445, %v300, 0
  %v456 = vsel %vm445, %v302, 0
  %v459 = vsel %vm445, %v304, 0
  %v462 = vsel %vm445, %v306, 0
  %v465 = vsel %vm445, %v308, 0
  %v468 = vsel %vm445, %v310, 0
  %v471 = vsel %vm445, %v312, 0
  %v474 = vsel %vm445, %v314, 0
  %v477 = vsel %vm445, %v316, 0
  %v480 = vsel %vm445, %v318, 0
  %v483 = vsel %vm445, %v320, 0
  %v486 = vsel %vm445, %v322, 0
  %v489 = vsel %vm445, %v324, 0
  %v492 = vsel %vm445, %v326, 0
  %v495 = vsel %vm445, %v328, 0
  %v498 = vsel %vm445, %v330, 0
  %v501 = vsel %vm445, %v332, 0
  %v504 = vsel %vm445, %v334, 0
  %v507 = vsel %vm445, %v336, 0
  %v510 = vsel %vm445, %v338, 0
  %v513 = vsel %vm445, %v340, 0
  %v516 = vsel %vm445, %v342, 0
  %v519 = vsel %vm445, %v344, 0
  %v522 = vsel %vm445, %v346, 0
  %v525 = vsel %vm445, %v348, 0
  %v528 = vsel %vm445, %v350, 0
  %v531 = vsel %vm445, %v352, 0
  %v534 = vsel %vm445, %v354, 0
  %v537 = vsel %vm445, %v356, 0
  %v540 = vsel %vm445, %v358, 0
  %542 = vmatprep.subr.bf16.mxu0 0
  %543 = vmatpush1.bf16.msra.mxu0 %v434
  %544 = vmatprep.subr.bf16.mxu0 0
  %545 = vmatpush1.bf16.msra.mxu0 %v433
  %546 = vmatprep.subr.bf16.mxu0 0
  %547 = vmatpush1.bf16.msra.mxu0 %v432
  %548 = vmatprep.subr.bf16.mxu0 0
  %549 = vmatpush1.bf16.msra.mxu0 %v431
  %550 = vmatprep.subr.bf16.mxu0 0
  %551 = vmatpush1.bf16.msra.mxu0 %v430
  %552 = vmatprep.subr.bf16.mxu0 0
  %553 = vmatpush1.bf16.msra.mxu0 %v429
  %554 = vmatprep.subr.bf16.mxu0 0
  %555 = vmatpush1.bf16.msra.mxu0 %v428
  %556 = vmatprep.subr.bf16.mxu0 0
  %557 = vmatpush1.bf16.msra.mxu0 %v427
  %558 = vmatprep.subr.bf16.mxu0 0
  %559 = vmatpush2.bf16.msra.mxu0 0
  %560 = vmatprep.subr.bf16.mxu0 0
  %561 = vmatpush2.bf16.msra.mxu0 0
  %562 = vmatprep.subr.bf16.mxu0 0
  %563 = vmatpush2.bf16.msra.mxu0 0
  %564 = vmatprep.subr.bf16.mxu0 0
  %565 = vmatpush2.bf16.msra.mxu0 0
  %566 = vmatprep.subr.bf16.mxu0 0
  %567 = vmatpush2.bf16.msra.mxu0 0
  %568 = vmatprep.subr.bf16.mxu0 0
  %569 = vmatpush2.bf16.msra.mxu0 0
  %570 = vmatprep.subr.bf16.mxu0 0
  %571 = vmatpush2.bf16.msra.mxu0 0
  %572 = vmatprep.subr.bf16.mxu0 0
  %573 = vmatpush2.bf16.msra.mxu0 %v435
  %574 = vmatprep.mubr.bf16.mxu0 %v447
  %575 = vmatmul.mubr.bf16.gmra.mxu0 %v295
  %v576 = vpop.f32.mrf.mxu0
  %v577 = vadd.f32 0.0, %v576
  %v578 = vpop.f32.mrf.mxu0
  %v579 = vpop.f32.mrf.mxu0
  %v580 = vadd.f32 0.0, %v579
  %v581 = vpop.f32.mrf.mxu0
  %582 = vmatprep.mubr.bf16.mxu0 %v450
  %583 = vmatmul.mubr.bf16.gmra.mxu0 %v297
  %v584 = vpop.f32.mrf.mxu0
  %v585 = vadd.f32 0.0, %v584
  %v586 = vpop.f32.mrf.mxu0
  %v587 = vpop.f32.mrf.mxu0
  %v588 = vadd.f32 0.0, %v587
  %v589 = vpop.f32.mrf.mxu0
  %590 = vmatprep.mubr.bf16.mxu0 %v453
  %591 = vmatmul.mubr.bf16.gmra.mxu0 %v299
  %v592 = vpop.f32.mrf.mxu0
  %v593 = vadd.f32 0.0, %v592
  %v594 = vpop.f32.mrf.mxu0
  %v595 = vpop.f32.mrf.mxu0
  %v596 = vadd.f32 0.0, %v595
  %v597 = vpop.f32.mrf.mxu0
  %598 = vmatprep.mubr.bf16.mxu0 %v456
  %599 = vmatmul.mubr.bf16.gmra.mxu0 %v301
  %v600 = vpop.f32.mrf.mxu0
  %v601 = vadd.f32 0.0, %v600
  %v602 = vpop.f32.mrf.mxu0
  %v603 = vpop.f32.mrf.mxu0
  %v604 = vadd.f32 0.0, %v603
  %v605 = vpop.f32.mrf.mxu0
  %606 = vmatprep.mubr.bf16.mxu0 %v459
  %607 = vmatmul.mubr.bf16.gmra.mxu0 %v303
  %v608 = vpop.f32.mrf.mxu0
  %v609 = vadd.f32 0.0, %v608
  %v610 = vpop.f32.mrf.mxu0
  %v611 = vpop.f32.mrf.mxu0
  %v612 = vadd.f32 0.0, %v611
  %v613 = vpop.f32.mrf.mxu0
  %614 = vmatprep.mubr.bf16.mxu0 %v462
  %615 = vmatmul.mubr.bf16.gmra.mxu0 %v305
  %v616 = vpop.f32.mrf.mxu0
  %v617 = vadd.f32 0.0, %v616
  %v618 = vpop.f32.mrf.mxu0
  %v619 = vpop.f32.mrf.mxu0
  %v620 = vadd.f32 0.0, %v619
  %v621 = vpop.f32.mrf.mxu0
  %622 = vmatprep.mubr.bf16.mxu0 %v465
  %623 = vmatmul.mubr.bf16.gmra.mxu0 %v307
  %v624 = vpop.f32.mrf.mxu0
  %v625 = vadd.f32 0.0, %v624
  %v626 = vpop.f32.mrf.mxu0
  %v627 = vpop.f32.mrf.mxu0
  %v628 = vadd.f32 0.0, %v627
  %v629 = vpop.f32.mrf.mxu0
  %630 = vmatprep.mubr.bf16.mxu0 %v468
  %631 = vmatmul.mubr.bf16.gmra.mxu0 %v309
  %v632 = vpop.f32.mrf.mxu0
  %v633 = vadd.f32 0.0, %v632
  %v634 = vpop.f32.mrf.mxu0
  %v635 = vpop.f32.mrf.mxu0
  %v636 = vadd.f32 0.0, %v635
  %v637 = vpop.f32.mrf.mxu0
  %638 = vmatprep.mubr.bf16.mxu0 %v471
  %639 = vmatmul.mubr.bf16.gmra.mxu0 %v311
  %v640 = vpop.f32.mrf.mxu0
  %v641 = vadd.f32 0.0, %v640
  %v642 = vpop.f32.mrf.mxu0
  %v643 = vpop.f32.mrf.mxu0
  %v644 = vadd.f32 0.0, %v643
  %v645 = vpop.f32.mrf.mxu0
  %646 = vmatprep.mubr.bf16.mxu0 %v474
  %647 = vmatmul.mubr.bf16.gmra.mxu0 %v313
  %v648 = vpop.f32.mrf.mxu0
  %v649 = vadd.f32 0.0, %v648
  %v650 = vpop.f32.mrf.mxu0
  %v651 = vpop.f32.mrf.mxu0
  %v652 = vadd.f32 0.0, %v651
  %v653 = vpop.f32.mrf.mxu0
  %654 = vmatprep.mubr.bf16.mxu0 %v477
  %655 = vmatmul.mubr.bf16.gmra.mxu0 %v315
  %v656 = vpop.f32.mrf.mxu0
  %v657 = vadd.f32 0.0, %v656
  %v658 = vpop.f32.mrf.mxu0
  %v659 = vpop.f32.mrf.mxu0
  %v660 = vadd.f32 0.0, %v659
  %v661 = vpop.f32.mrf.mxu0
  %662 = vmatprep.mubr.bf16.mxu0 %v480
  %663 = vmatmul.mubr.bf16.gmra.mxu0 %v317
  %v664 = vpop.f32.mrf.mxu0
  %v665 = vadd.f32 0.0, %v664
  %v666 = vpop.f32.mrf.mxu0
  %v667 = vpop.f32.mrf.mxu0
  %v668 = vadd.f32 0.0, %v667
  %v669 = vpop.f32.mrf.mxu0
  %670 = vmatprep.mubr.bf16.mxu0 %v483
  %671 = vmatmul.mubr.bf16.gmra.mxu0 %v319
  %v672 = vpop.f32.mrf.mxu0
  %v673 = vadd.f32 0.0, %v672
  %v674 = vpop.f32.mrf.mxu0
  %v675 = vpop.f32.mrf.mxu0
  %v676 = vadd.f32 0.0, %v675
  %v677 = vpop.f32.mrf.mxu0
  %678 = vmatprep.mubr.bf16.mxu0 %v486
  %679 = vmatmul.mubr.bf16.gmra.mxu0 %v321
  %v680 = vpop.f32.mrf.mxu0
  %v681 = vadd.f32 0.0, %v680
  %v682 = vpop.f32.mrf.mxu0
  %v683 = vpop.f32.mrf.mxu0
  %v684 = vadd.f32 0.0, %v683
  %v685 = vpop.f32.mrf.mxu0
  %686 = vmatprep.mubr.bf16.mxu0 %v489
  %687 = vmatmul.mubr.bf16.gmra.mxu0 %v323
  %v688 = vpop.f32.mrf.mxu0
  %v689 = vadd.f32 0.0, %v688
  %v690 = vpop.f32.mrf.mxu0
  %v691 = vpop.f32.mrf.mxu0
  %v692 = vadd.f32 0.0, %v691
  %v693 = vpop.f32.mrf.mxu0
  %694 = vmatprep.mubr.bf16.mxu0 %v492
  %695 = vmatmul.mubr.bf16.gmra.mxu0 %v325
  %v696 = vpop.f32.mrf.mxu0
  %v697 = vadd.f32 0.0, %v696
  %v698 = vpop.f32.mrf.mxu0
  %v699 = vpop.f32.mrf.mxu0
  %v700 = vadd.f32 0.0, %v699
  %v701 = vpop.f32.mrf.mxu0
  %702 = vmatprep.mubr.bf16.mxu0 %v495
  %703 = vmatmul.mubr.bf16.gmra.mxu0 %v327
  %v704 = vpop.f32.mrf.mxu0
  %v705 = vadd.f32 0.0, %v704
  %v706 = vpop.f32.mrf.mxu0
  %v707 = vpop.f32.mrf.mxu0
  %v708 = vadd.f32 0.0, %v707
  %v709 = vpop.f32.mrf.mxu0
  %710 = vmatprep.mubr.bf16.mxu0 %v498
  %711 = vmatmul.mubr.bf16.gmra.mxu0 %v329
  %v712 = vpop.f32.mrf.mxu0
  %v713 = vadd.f32 0.0, %v712
  %v714 = vpop.f32.mrf.mxu0
  %v715 = vpop.f32.mrf.mxu0
  %v716 = vadd.f32 0.0, %v715
  %v717 = vpop.f32.mrf.mxu0
  %718 = vmatprep.mubr.bf16.mxu0 %v501
  %719 = vmatmul.mubr.bf16.gmra.mxu0 %v331
  %v720 = vpop.f32.mrf.mxu0
  %v721 = vadd.f32 0.0, %v720
  %v722 = vpop.f32.mrf.mxu0
  %v723 = vpop.f32.mrf.mxu0
  %v724 = vadd.f32 0.0, %v723
  %v725 = vpop.f32.mrf.mxu0
  %726 = vmatprep.mubr.bf16.mxu0 %v504
  %727 = vmatmul.mubr.bf16.gmra.mxu0 %v333
  %v728 = vpop.f32.mrf.mxu0
  %v729 = vadd.f32 0.0, %v728
  %v730 = vpop.f32.mrf.mxu0
  %v731 = vpop.f32.mrf.mxu0
  %v732 = vadd.f32 0.0, %v731
  %v733 = vpop.f32.mrf.mxu0
  %734 = vmatprep.mubr.bf16.mxu0 %v507
  %735 = vmatmul.mubr.bf16.gmra.mxu0 %v335
  %v736 = vpop.f32.mrf.mxu0
  %v737 = vadd.f32 0.0, %v736
  %v738 = vpop.f32.mrf.mxu0
  %v739 = vpop.f32.mrf.mxu0
  %v740 = vadd.f32 0.0, %v739
  %v741 = vpop.f32.mrf.mxu0
  %742 = vmatprep.mubr.bf16.mxu0 %v510
  %743 = vmatmul.mubr.bf16.gmra.mxu0 %v337
  %v744 = vpop.f32.mrf.mxu0
  %v745 = vadd.f32 0.0, %v744
  %v746 = vpop.f32.mrf.mxu0
  %v747 = vpop.f32.mrf.mxu0
  %v748 = vadd.f32 0.0, %v747
  %v749 = vpop.f32.mrf.mxu0
  %750 = vmatprep.mubr.bf16.mxu0 %v513
  %751 = vmatmul.mubr.bf16.gmra.mxu0 %v339
  %v752 = vpop.f32.mrf.mxu0
  %v753 = vadd.f32 0.0, %v752
  %v754 = vpop.f32.mrf.mxu0
  %v755 = vpop.f32.mrf.mxu0
  %v756 = vadd.f32 0.0, %v755
  %v757 = vpop.f32.mrf.mxu0
  %758 = vmatprep.mubr.bf16.mxu0 %v516
  %759 = vmatmul.mubr.bf16.gmra.mxu0 %v341
  %v760 = vpop.f32.mrf.mxu0
  %v761 = vadd.f32 0.0, %v760
  %v762 = vpop.f32.mrf.mxu0
  %v763 = vpop.f32.mrf.mxu0
  %v764 = vadd.f32 0.0, %v763
  %v765 = vpop.f32.mrf.mxu0
  %766 = vmatprep.mubr.bf16.mxu0 %v519
  %767 = vmatmul.mubr.bf16.gmra.mxu0 %v343
  %v768 = vpop.f32.mrf.mxu0
  %v769 = vadd.f32 0.0, %v768
  %v770 = vpop.f32.mrf.mxu0
  %v771 = vpop.f32.mrf.mxu0
  %v772 = vadd.f32 0.0, %v771
  %v773 = vpop.f32.mrf.mxu0
  %774 = vmatprep.mubr.bf16.mxu0 %v522
  %775 = vmatmul.mubr.bf16.gmra.mxu0 %v345
  %v776 = vpop.f32.mrf.mxu0
  %v777 = vadd.f32 0.0, %v776
  %v778 = vpop.f32.mrf.mxu0
  %v779 = vpop.f32.mrf.mxu0
  %v780 = vadd.f32 0.0, %v779
  %v781 = vpop.f32.mrf.mxu0
  %782 = vmatprep.mubr.bf16.mxu0 %v525
  %783 = vmatmul.mubr.bf16.gmra.mxu0 %v347
  %v784 = vpop.f32.mrf.mxu0
  %v785 = vadd.f32 0.0, %v784
  %v786 = vpop.f32.mrf.mxu0
  %v787 = vpop.f32.mrf.mxu0
  %v788 = vadd.f32 0.0, %v787
  %v789 = vpop.f32.mrf.mxu0
  %790 = vmatprep.mubr.bf16.mxu0 %v528
  %791 = vmatmul.mubr.bf16.gmra.mxu0 %v349
  %v792 = vpop.f32.mrf.mxu0
  %v793 = vadd.f32 0.0, %v792
  %v794 = vpop.f32.mrf.mxu0
  %v795 = vpop.f32.mrf.mxu0
  %v796 = vadd.f32 0.0, %v795
  %v797 = vpop.f32.mrf.mxu0
  %798 = vmatprep.mubr.bf16.mxu0 %v531
  %799 = vmatmul.mubr.bf16.gmra.mxu0 %v351
  %v800 = vpop.f32.mrf.mxu0
  %v801 = vadd.f32 0.0, %v800
  %v802 = vpop.f32.mrf.mxu0
  %v803 = vpop.f32.mrf.mxu0
  %v804 = vadd.f32 0.0, %v803
  %v805 = vpop.f32.mrf.mxu0
  %806 = vmatprep.mubr.bf16.mxu0 %v534
  %807 = vmatmul.mubr.bf16.gmra.mxu0 %v353
  %v808 = vpop.f32.mrf.mxu0
  %v809 = vadd.f32 0.0, %v808
  %v810 = vpop.f32.mrf.mxu0
  %v811 = vpop.f32.mrf.mxu0
  %v812 = vadd.f32 0.0, %v811
  %v813 = vpop.f32.mrf.mxu0
  %814 = vmatprep.mubr.bf16.mxu0 %v537
  %815 = vmatmul.mubr.bf16.gmra.mxu0 %v355
  %v816 = vpop.f32.mrf.mxu0
  %v817 = vadd.f32 0.0, %v816
  %v818 = vpop.f32.mrf.mxu0
  %v819 = vpop.f32.mrf.mxu0
  %v820 = vadd.f32 0.0, %v819
  %v821 = vpop.f32.mrf.mxu0
  %822 = vmatprep.mubr.bf16.mxu0 %v540
  %823 = vmatmul.mubr.bf16.gmra.mxu0 %v357
  %v824 = vpop.f32.mrf.mxu0
  %v825 = vadd.f32 0.0, %v824
  %v826 = vpop.f32.mrf.mxu0
  %v827 = vpop.f32.mrf.mxu0
  %v828 = vadd.f32 0.0, %v827
  %v829 = vpop.f32.mrf.mxu0
  %830 = vdwg.mxu0
  %v831 = vadd.f32 %v577, %v580
  %v832 = vadd.f32 %v831, %v585
  %v833 = vadd.f32 %v832, %v588
  %v834 = vadd.f32 %v833, %v593
  %v835 = vadd.f32 %v834, %v596
  %v836 = vadd.f32 %v835, %v601
  %v837 = vadd.f32 %v836, %v604
  %v838 = vadd.f32 %v837, %v609
  %v839 = vadd.f32 %v838, %v612
  %v840 = vadd.f32 %v839, %v617
  %v841 = vadd.f32 %v840, %v620
  %v842 = vadd.f32 %v841, %v625
  %v843 = vadd.f32 %v842, %v628
  %v844 = vadd.f32 %v843, %v633
  %v845 = vadd.f32 %v844, %v636
  %v846 = vadd.f32 %v845, %v641
  %v847 = vadd.f32 %v846, %v644
  %v848 = vadd.f32 %v847, %v649
  %v849 = vadd.f32 %v848, %v652
  %v850 = vadd.f32 %v849, %v657
  %v851 = vadd.f32 %v850, %v660
  %v852 = vadd.f32 %v851, %v665
  %v853 = vadd.f32 %v852, %v668
  %v854 = vadd.f32 %v853, %v673
  %v855 = vadd.f32 %v854, %v676
  %v856 = vadd.f32 %v855, %v681
  %v857 = vadd.f32 %v856, %v684
  %v858 = vadd.f32 %v857, %v689
  %v859 = vadd.f32 %v858, %v692
  %v860 = vadd.f32 %v859, %v697
  %v861 = vadd.f32 %v860, %v700
  %v862 = vadd.f32 %v861, %v705
  %v863 = vadd.f32 %v862, %v708
  %v864 = vadd.f32 %v863, %v713
  %v865 = vadd.f32 %v864, %v716
  %v866 = vadd.f32 %v865, %v721
  %v867 = vadd.f32 %v866, %v724
  %v868 = vadd.f32 %v867, %v729
  %v869 = vadd.f32 %v868, %v732
  %v870 = vadd.f32 %v869, %v737
  %v871 = vadd.f32 %v870, %v740
  %v872 = vadd.f32 %v871, %v745
  %v873 = vadd.f32 %v872, %v748
  %v874 = vadd.f32 %v873, %v753
  %v875 = vadd.f32 %v874, %v756
  %v876 = vadd.f32 %v875, %v761
  %v877 = vadd.f32 %v876, %v764
  %v878 = vadd.f32 %v877, %v769
  %v879 = vadd.f32 %v878, %v772
  %v880 = vadd.f32 %v879, %v777
  %v881 = vadd.f32 %v880, %v780
  %v882 = vadd.f32 %v881, %v785
  %v883 = vadd.f32 %v882, %v788
  %v884 = vadd.f32 %v883, %v793
  %v885 = vadd.f32 %v884, %v796
  %v886 = vadd.f32 %v885, %v801
  %v887 = vadd.f32 %v886, %v804
  %v888 = vadd.f32 %v887, %v809
  %v889 = vadd.f32 %v888, %v812
  %v890 = vadd.f32 %v889, %v817
  %v891 = vadd.f32 %v890, %v820
  %v892 = vadd.f32 %v891, %v825
  %v893 = vadd.f32 %v892, %v828
  %v894 = vrot.slane %v893, 4
  %v895 = vadd.f32 %v893, %v894
  %v896 = vrot.slane %v895, 2
  %v897 = vadd.f32 %v895, %v896
  %v898 = vrot.slane %v897, 1
  %v899 = vadd.f32 %v897, %v898
  %v900 = vmul.f32 %v577, %v577
  %v901 = vmul.f32 %v580, %v580
  %v902 = vmul.f32 %v585, %v585
  %v903 = vmul.f32 %v588, %v588
  %v904 = vmul.f32 %v593, %v593
  %v905 = vmul.f32 %v596, %v596
  %v906 = vmul.f32 %v601, %v601
  %v907 = vmul.f32 %v604, %v604
  %v908 = vmul.f32 %v609, %v609
  %v909 = vmul.f32 %v612, %v612
  %v910 = vmul.f32 %v617, %v617
  %v911 = vmul.f32 %v620, %v620
  %v912 = vmul.f32 %v625, %v625
  %v913 = vmul.f32 %v628, %v628
  %v914 = vmul.f32 %v633, %v633
  %v915 = vmul.f32 %v636, %v636
  %v916 = vmul.f32 %v641, %v641
  %v917 = vmul.f32 %v644, %v644
  %v918 = vmul.f32 %v649, %v649
  %v919 = vmul.f32 %v652, %v652
  %v920 = vmul.f32 %v657, %v657
  %v921 = vmul.f32 %v660, %v660
  %v922 = vmul.f32 %v665, %v665
  %v923 = vmul.f32 %v668, %v668
  %v924 = vmul.f32 %v673, %v673
  %v925 = vmul.f32 %v676, %v676
  %v926 = vmul.f32 %v681, %v681
  %v927 = vmul.f32 %v684, %v684
  %v928 = vmul.f32 %v689, %v689
  %v929 = vmul.f32 %v692, %v692
  %v930 = vmul.f32 %v697, %v697
  %v931 = vmul.f32 %v700, %v700
  %v932 = vmul.f32 %v705, %v705
  %v933 = vmul.f32 %v708, %v708
  %v934 = vmul.f32 %v713, %v713
  %v935 = vmul.f32 %v716, %v716
  %v936 = vmul.f32 %v721, %v721
  %v937 = vmul.f32 %v724, %v724
  %v938 = vmul.f32 %v729, %v729
  %v939 = vmul.f32 %v732, %v732
  %v940 = vmul.f32 %v737, %v737
  %v941 = vmul.f32 %v740, %v740
  %v942 = vmul.f32 %v745, %v745
  %v943 = vmul.f32 %v748, %v748
  %v944 = vmul.f32 %v753, %v753
  %v945 = vmul.f32 %v756, %v756
  %v946 = vmul.f32 %v761, %v761
  %v947 = vmul.f32 %v764, %v764
  %v948 = vmul.f32 %v769, %v769
  %v949 = vmul.f32 %v772, %v772
  %v950 = vmul.f32 %v777, %v777
  %v951 = vmul.f32 %v780, %v780
  %v952 = vmul.f32 %v785, %v785
  %v953 = vmul.f32 %v788, %v788
  %v954 = vmul.f32 %v793, %v793
  %v955 = vmul.f32 %v796, %v796
  %v956 = vmul.f32 %v801, %v801
  %v957 = vmul.f32 %v804, %v804
  %v958 = vmul.f32 %v809, %v809
  %v959 = vmul.f32 %v812, %v812
  %v960 = vmul.f32 %v817, %v817
  %v961 = vmul.f32 %v820, %v820
  %v962 = vmul.f32 %v825, %v825
  %v963 = vmul.f32 %v828, %v828
  %v964 = vadd.f32 %v900, %v901
  %v965 = vadd.f32 %v964, %v902
  %v966 = vadd.f32 %v965, %v903
  %v967 = vadd.f32 %v966, %v904
  %v968 = vadd.f32 %v967, %v905
  %v969 = vadd.f32 %v968, %v906
  %v970 = vadd.f32 %v969, %v907
  %v971 = vadd.f32 %v970, %v908
  %v972 = vadd.f32 %v971, %v909
  %v973 = vadd.f32 %v972, %v910
  %v974 = vadd.f32 %v973, %v911
  %v975 = vadd.f32 %v974, %v912
  %v976 = vadd.f32 %v975, %v913
  %v977 = vadd.f32 %v976, %v914
  %v978 = vadd.f32 %v977, %v915
  %v979 = vadd.f32 %v978, %v916
  %v980 = vadd.f32 %v979, %v917
  %v981 = vadd.f32 %v980, %v918
  %v982 = vadd.f32 %v981, %v919
  %v983 = vadd.f32 %v982, %v920
  %v984 = vadd.f32 %v983, %v921
  %v985 = vadd.f32 %v984, %v922
  %v986 = vadd.f32 %v985, %v923
  %v987 = vadd.f32 %v986, %v924
  %v988 = vadd.f32 %v987, %v925
  %v989 = vadd.f32 %v988, %v926
  %v990 = vadd.f32 %v989, %v927
  %v991 = vadd.f32 %v990, %v928
  %v992 = vadd.f32 %v991, %v929
  %v993 = vadd.f32 %v992, %v930
  %v994 = vadd.f32 %v993, %v931
  %v995 = vadd.f32 %v994, %v932
  %v996 = vadd.f32 %v995, %v933
  %v997 = vadd.f32 %v996, %v934
  %v998 = vadd.f32 %v997, %v935
  %v999 = vadd.f32 %v998, %v936
  %v1000 = vadd.f32 %v999, %v937
  %v1001 = vadd.f32 %v1000, %v938
  %v1002 = vadd.f32 %v1001, %v939
  %v1003 = vadd.f32 %v1002, %v940
  %v1004 = vadd.f32 %v1003, %v941
  %v1005 = vadd.f32 %v1004, %v942
  %v1006 = vadd.f32 %v1005, %v943
  %v1007 = vadd.f32 %v1006, %v944
  %v1008 = vadd.f32 %v1007, %v945
  %v1009 = vadd.f32 %v1008, %v946
  %v1010 = vadd.f32 %v1009, %v947
  %v1011 = vadd.f32 %v1010, %v948
  %v1012 = vadd.f32 %v1011, %v949
  %v1013 = vadd.f32 %v1012, %v950
  %v1014 = vadd.f32 %v1013, %v951
  %v1015 = vadd.f32 %v1014, %v952
  %v1016 = vadd.f32 %v1015, %v953
  %v1017 = vadd.f32 %v1016, %v954
  %v1018 = vadd.f32 %v1017, %v955
  %v1019 = vadd.f32 %v1018, %v956
  %v1020 = vadd.f32 %v1019, %v957
  %v1021 = vadd.f32 %v1020, %v958
  %v1022 = vadd.f32 %v1021, %v959
  %v1023 = vadd.f32 %v1022, %v960
  %v1024 = vadd.f32 %v1023, %v961
  %v1025 = vadd.f32 %v1024, %v962
  %v1026 = vadd.f32 %v1025, %v963
  %v1027 = vrot.slane %v1026, 4
  %v1028 = vadd.f32 %v1026, %v1027
  %v1029 = vrot.slane %v1028, 2
  %v1030 = vadd.f32 %v1028, %v1029
  %v1031 = vrot.slane %v1030, 1
  %v1032 = vadd.f32 %v1030, %v1031
  %vm1033 = vcmask 1040384
  %v1034 = vsel %vm1033, %v899, %v1032
  %v1035 = vld [vmem:[%s2] sm:$0xff]
  %v1036 = vld [vmem:[%s2 + $0x8] sm:$0xff]
  %v1037 = vld [vmem:[%s2 + $0x10] sm:$0xff]
  %v1038 = vld [vmem:[%s2 + $0x18] sm:$0xff]
  %v1039 = vld [vmem:[%s2 + $0x20] sm:$0xff]
  %v1040 = vld [vmem:[%s2 + $0x28] sm:$0xff]
  %v1041 = vld [vmem:[%s2 + $0x30] sm:$0xff]
  %v1042 = vld [vmem:[%s2 + $0x38] sm:$0xff]
  %v1043 = vld [vmem:[%s2 + $0x40] sm:$0xff]
  %v1044 = vld [vmem:[%s2 + $0x48] sm:$0xff]
  %v1045 = vld [vmem:[%s2 + $0x50] sm:$0xff]
  %v1046 = vld [vmem:[%s2 + $0x58] sm:$0xff]
  %v1047 = vld [vmem:[%s2 + $0x60] sm:$0xff]
  %v1048 = vld [vmem:[%s2 + $0x68] sm:$0xff]
  %v1049 = vld [vmem:[%s2 + $0x70] sm:$0xff]
  %v1050 = vld [vmem:[%s2 + $0x78] sm:$0xff]
  %1051 = vmatprep.subr.mxu0 0.0
  %1052 = vmatpush1.msra.mxu0 %v1050
  %1053 = vmatprep.subr.mxu0 0.0
  %1054 = vmatpush1.msra.mxu0 %v1049
  %1055 = vmatprep.subr.mxu0 0.0
  %1056 = vmatpush1.msra.mxu0 %v1048
  %1057 = vmatprep.subr.mxu0 0.0
  %1058 = vmatpush1.msra.mxu0 %v1047
  %1059 = vmatprep.subr.mxu0 0.0
  %1060 = vmatpush1.msra.mxu0 %v1046
  %1061 = vmatprep.subr.mxu0 0.0
  %1062 = vmatpush1.msra.mxu0 %v1045
  %1063 = vmatprep.subr.mxu0 0.0
  %1064 = vmatpush1.msra.mxu0 %v1044
  %1065 = vmatprep.subr.mxu0 0.0
  %1066 = vmatpush1.msra.mxu0 %v1043
  %1067 = vmatprep.subr.mxu0 0.0
  %1068 = vmatpush1.msra.mxu0 %v1042
  %1069 = vmatprep.subr.mxu0 0.0
  %1070 = vmatpush1.msra.mxu0 %v1041
  %1071 = vmatprep.subr.mxu0 0.0
  %1072 = vmatpush1.msra.mxu0 %v1040
  %1073 = vmatprep.subr.mxu0 0.0
  %1074 = vmatpush1.msra.mxu0 %v1039
  %1075 = vmatprep.subr.mxu0 0.0
  %1076 = vmatpush1.msra.mxu0 %v1038
  %1077 = vmatprep.subr.mxu0 0.0
  %1078 = vmatpush1.msra.mxu0 %v1037
  %1079 = vmatprep.subr.mxu0 0.0
  %1080 = vmatpush1.msra.mxu0 %v1036
  %1081 = vmatprep.subr.mxu0 0.0
  %1082 = vmatpush1.msra.mxu0 %v1035
  %1083 = vmatprep.subr.mxu0 0.0
  %1084 = vmatpush2.msra.mxu0 0.0
  %1085 = vmatprep.subr.mxu0 0.0
  %1086 = vmatpush2.msra.mxu0 0.0
  %1087 = vmatprep.subr.mxu0 0.0
  %1088 = vmatpush2.msra.mxu0 0.0
  %1089 = vmatprep.subr.mxu0 0.0
  %1090 = vmatpush2.msra.mxu0 0.0
  %1091 = vmatprep.subr.mxu0 0.0
  %1092 = vmatpush2.msra.mxu0 0.0
  %1093 = vmatprep.subr.mxu0 0.0
  %1094 = vmatpush2.msra.mxu0 0.0
  %1095 = vmatprep.subr.mxu0 0.0
  %1096 = vmatpush2.msra.mxu0 0.0
  %1097 = vmatprep.subr.mxu0 0.0
  %1098 = vmatpush2.msra.mxu0 0.0
  %1099 = vmatprep.subr.mxu0 0.0
  %1100 = vmatpush2.msra.mxu0 0.0
  %1101 = vmatprep.subr.mxu0 0.0
  %1102 = vmatpush2.msra.mxu0 0.0
  %1103 = vmatprep.subr.mxu0 0.0
  %1104 = vmatpush2.msra.mxu0 0.0
  %1105 = vmatprep.subr.mxu0 0.0
  %1106 = vmatpush2.msra.mxu0 0.0
  %1107 = vmatprep.subr.mxu0 0.0
  %1108 = vmatpush2.msra.mxu0 0.0
  %1109 = vmatprep.subr.mxu0 0.0
  %1110 = vmatpush2.msra.mxu0 0.0
  %1111 = vmatprep.subr.mxu0 0.0
  %1112 = vmatpush2.msra.mxu0 0.0
  %1113 = vmatprep.subr.mxu0 0.0
  %1114 = vmatpush2.msra.mxu0 0.0
  %1115 = vmatprep.mubr.f32.mxu0 0.0
  %1116 = vmatmul.mubr.f32.gmra.mxu0 %v1034
  %v1117 = vpop.f32.mrf.mxu0
  %v1118 = vadd.f32 0.0, %v1117
  %v1119 = vpop.f32.mrf.mxu0
  %1120 = vdwg.mxu0
  %v1121 = vmul.f32 %v1118, 0.00048828125
  %v1122 = vmul.f32 %v1121, %v1121
  %v1124 = vrot.slane %v1122, 7
  %v1126 = vsub.f32 %v1121, %v1124
  %v1127 = vld [vmem:[%s3] sm:$0x1]
  %v1128 = vadd.f32 %v1126, 1e-05
  %v1129 = vrsqrt.pop %v1128
  %v1132 = vunpack.c.l.s4 1966171168
  %v1133 = vunpack.c.0.s8 %v1132
  %v1134 = vlaneseq
  %v1135 = vshrl.u32 %v1134, 7
  %v1136 = vsub.s32 %v1133, %v1135
  %v1137 = vrot.slane %v1129, %v1136
  %v1138 = vcombine.high %v1137, %v1137
  %v1140 = vunpack.c.l.s4 1966171168
  %v1141 = vunpack.c.0.s8 %v1140
  %v1142 = vlaneseq
  %v1143 = vshrl.u32 %v1142, 7
  %v1144 = vsub.s32 %v1141, %v1143
  %v1145 = vrot.slane %v1138, %v1144
  %v1147 = vmul.f32 %v1127, %v1145
  %v1148 = vld [vmem:[%s4] sm:$0x1]
  %v1149 = vmul.f32 %v1121, %v1147
  %v1150 = vsub.f32 %v1148, %v1149
  %v1152 = vlaneseq
  %v1153 = vshrl.u32 %v1152, 7
  %v1154 = vsub.s32 0, %v1153
  %v1155 = vrot.slane %v1147, %v1154
  %v1157 = vmul.f32 %v577, %v1155
  %v1158 = vmul.f32 %v580, %v1155
  %v1159 = vmul.f32 %v585, %v1155
  %v1160 = vmul.f32 %v588, %v1155
  %v1161 = vmul.f32 %v593, %v1155
  %v1162 = vmul.f32 %v596, %v1155
  %v1163 = vmul.f32 %v601, %v1155
  %v1164 = vmul.f32 %v604, %v1155
  %v1165 = vmul.f32 %v609, %v1155
  %v1166 = vmul.f32 %v612, %v1155
  %v1167 = vmul.f32 %v617, %v1155
  %v1168 = vmul.f32 %v620, %v1155
  %v1169 = vmul.f32 %v625, %v1155
  %v1170 = vmul.f32 %v628, %v1155
  %v1171 = vmul.f32 %v633, %v1155
  %v1172 = vmul.f32 %v636, %v1155
  %v1173 = vmul.f32 %v641, %v1155
  %v1174 = vmul.f32 %v644, %v1155
  %v1175 = vmul.f32 %v649, %v1155
  %v1176 = vmul.f32 %v652, %v1155
  %v1177 = vmul.f32 %v657, %v1155
  %v1178 = vmul.f32 %v660, %v1155
  %v1179 = vmul.f32 %v665, %v1155
  %v1180 = vmul.f32 %v668, %v1155
  %v1181 = vmul.f32 %v673, %v1155
  %v1182 = vmul.f32 %v676, %v1155
  %v1183 = vmul.f32 %v681, %v1155
  %v1184 = vmul.f32 %v684, %v1155
  %v1185 = vmul.f32 %v689, %v1155
  %v1186 = vmul.f32 %v692, %v1155
  %v1187 = vmul.f32 %v697, %v1155
  %v1188 = vmul.f32 %v700, %v1155
  %v1189 = vmul.f32 %v705, %v1155
  %v1190 = vmul.f32 %v708, %v1155
  %v1191 = vmul.f32 %v713, %v1155
  %v1192 = vmul.f32 %v716, %v1155
  %v1193 = vmul.f32 %v721, %v1155
  %v1194 = vmul.f32 %v724, %v1155
  %v1195 = vmul.f32 %v729, %v1155
  %v1196 = vmul.f32 %v732, %v1155
  %v1197 = vmul.f32 %v737, %v1155
  %v1198 = vmul.f32 %v740, %v1155
  %v1199 = vmul.f32 %v745, %v1155
  %v1200 = vmul.f32 %v748, %v1155
  %v1201 = vmul.f32 %v753, %v1155
  %v1202 = vmul.f32 %v756, %v1155
  %v1203 = vmul.f32 %v761, %v1155
  %v1204 = vmul.f32 %v764, %v1155
  %v1205 = vmul.f32 %v769, %v1155
  %v1206 = vmul.f32 %v772, %v1155
  %v1207 = vmul.f32 %v777, %v1155
  %v1208 = vmul.f32 %v780, %v1155
  %v1209 = vmul.f32 %v785, %v1155
  %v1210 = vmul.f32 %v788, %v1155
  %v1211 = vmul.f32 %v793, %v1155
  %v1212 = vmul.f32 %v796, %v1155
  %v1213 = vmul.f32 %v801, %v1155
  %v1214 = vmul.f32 %v804, %v1155
  %v1215 = vmul.f32 %v809, %v1155
  %v1216 = vmul.f32 %v812, %v1155
  %v1217 = vmul.f32 %v817, %v1155
  %v1218 = vmul.f32 %v820, %v1155
  %v1219 = vmul.f32 %v825, %v1155
  %v1220 = vmul.f32 %v828, %v1155
  %v1222 = vlaneseq
  %v1223 = vshrl.u32 %v1222, 7
  %v1224 = vsub.s32 0, %v1223
  %v1225 = vrot.slane %v1150, %v1224
  %v1227 = vadd.f32 %v1157, %v1225
  %v1228 = vadd.f32 %v1158, %v1225
  %v1229 = vadd.f32 %v1159, %v1225
  %v1230 = vadd.f32 %v1160, %v1225
  %v1231 = vadd.f32 %v1161, %v1225
  %v1232 = vadd.f32 %v1162, %v1225
  %v1233 = vadd.f32 %v1163, %v1225
  %v1234 = vadd.f32 %v1164, %v1225
  %v1235 = vadd.f32 %v1165, %v1225
  %v1236 = vadd.f32 %v1166, %v1225
  %v1237 = vadd.f32 %v1167, %v1225
  %v1238 = vadd.f32 %v1168, %v1225
  %v1239 = vadd.f32 %v1169, %v1225
  %v1240 = vadd.f32 %v1170, %v1225
  %v1241 = vadd.f32 %v1171, %v1225
  %v1242 = vadd.f32 %v1172, %v1225
  %v1243 = vadd.f32 %v1173, %v1225
  %v1244 = vadd.f32 %v1174, %v1225
  %v1245 = vadd.f32 %v1175, %v1225
  %v1246 = vadd.f32 %v1176, %v1225
  %v1247 = vadd.f32 %v1177, %v1225
  %v1248 = vadd.f32 %v1178, %v1225
  %v1249 = vadd.f32 %v1179, %v1225
  %v1250 = vadd.f32 %v1180, %v1225
  %v1251 = vadd.f32 %v1181, %v1225
  %v1252 = vadd.f32 %v1182, %v1225
  %v1253 = vadd.f32 %v1183, %v1225
  %v1254 = vadd.f32 %v1184, %v1225
  %v1255 = vadd.f32 %v1185, %v1225
  %v1256 = vadd.f32 %v1186, %v1225
  %v1257 = vadd.f32 %v1187, %v1225
  %v1258 = vadd.f32 %v1188, %v1225
  %v1259 = vadd.f32 %v1189, %v1225
  %v1260 = vadd.f32 %v1190, %v1225
  %v1261 = vadd.f32 %v1191, %v1225
  %v1262 = vadd.f32 %v1192, %v1225
  %v1263 = vadd.f32 %v1193, %v1225
  %v1264 = vadd.f32 %v1194, %v1225
  %v1265 = vadd.f32 %v1195, %v1225
  %v1266 = vadd.f32 %v1196, %v1225
  %v1267 = vadd.f32 %v1197, %v1225
  %v1268 = vadd.f32 %v1198, %v1225
  %v1269 = vadd.f32 %v1199, %v1225
  %v1270 = vadd.f32 %v1200, %v1225
  %v1271 = vadd.f32 %v1201, %v1225
  %v1272 = vadd.f32 %v1202, %v1225
  %v1273 = vadd.f32 %v1203, %v1225
  %v1274 = vadd.f32 %v1204, %v1225
  %v1275 = vadd.f32 %v1205, %v1225
  %v1276 = vadd.f32 %v1206, %v1225
  %v1277 = vadd.f32 %v1207, %v1225
  %v1278 = vadd.f32 %v1208, %v1225
  %v1279 = vadd.f32 %v1209, %v1225
  %v1280 = vadd.f32 %v1210, %v1225
  %v1281 = vadd.f32 %v1211, %v1225
  %v1282 = vadd.f32 %v1212, %v1225
  %v1283 = vadd.f32 %v1213, %v1225
  %v1284 = vadd.f32 %v1214, %v1225
  %v1285 = vadd.f32 %v1215, %v1225
  %v1286 = vadd.f32 %v1216, %v1225
  %v1287 = vadd.f32 %v1217, %v1225
  %v1288 = vadd.f32 %v1218, %v1225
  %v1289 = vadd.f32 %v1219, %v1225
  %v1290 = vadd.f32 %v1220, %v1225
  %v1291 = vmax.f32 %v1227, 0.0
  %v1292 = vmax.f32 %v1228, 0.0
  %v1293 = vmax.f32 %v1229, 0.0
  %v1294 = vmax.f32 %v1230, 0.0
  %v1295 = vmax.f32 %v1231, 0.0
  %v1296 = vmax.f32 %v1232, 0.0
  %v1297 = vmax.f32 %v1233, 0.0
  %v1298 = vmax.f32 %v1234, 0.0
  %v1299 = vmax.f32 %v1235, 0.0
  %v1300 = vmax.f32 %v1236, 0.0
  %v1301 = vmax.f32 %v1237, 0.0
  %v1302 = vmax.f32 %v1238, 0.0
  %v1303 = vmax.f32 %v1239, 0.0
  %v1304 = vmax.f32 %v1240, 0.0
  %v1305 = vmax.f32 %v1241, 0.0
  %v1306 = vmax.f32 %v1242, 0.0
  %v1307 = vmax.f32 %v1243, 0.0
  %v1308 = vmax.f32 %v1244, 0.0
  %v1309 = vmax.f32 %v1245, 0.0
  %v1310 = vmax.f32 %v1246, 0.0
  %v1311 = vmax.f32 %v1247, 0.0
  %v1312 = vmax.f32 %v1248, 0.0
  %v1313 = vmax.f32 %v1249, 0.0
  %v1314 = vmax.f32 %v1250, 0.0
  %v1315 = vmax.f32 %v1251, 0.0
  %v1316 = vmax.f32 %v1252, 0.0
  %v1317 = vmax.f32 %v1253, 0.0
  %v1318 = vmax.f32 %v1254, 0.0
  %v1319 = vmax.f32 %v1255, 0.0
  %v1320 = vmax.f32 %v1256, 0.0
  %v1321 = vmax.f32 %v1257, 0.0
  %v1322 = vmax.f32 %v1258, 0.0
  %v1323 = vmax.f32 %v1259, 0.0
  %v1324 = vmax.f32 %v1260, 0.0
  %v1325 = vmax.f32 %v1261, 0.0
  %v1326 = vmax.f32 %v1262, 0.0
  %v1327 = vmax.f32 %v1263, 0.0
  %v1328 = vmax.f32 %v1264, 0.0
  %v1329 = vmax.f32 %v1265, 0.0
  %v1330 = vmax.f32 %v1266, 0.0
  %v1331 = vmax.f32 %v1267, 0.0
  %v1332 = vmax.f32 %v1268, 0.0
  %v1333 = vmax.f32 %v1269, 0.0
  %v1334 = vmax.f32 %v1270, 0.0
  %v1335 = vmax.f32 %v1271, 0.0
  %v1336 = vmax.f32 %v1272, 0.0
  %v1337 = vmax.f32 %v1273, 0.0
  %v1338 = vmax.f32 %v1274, 0.0
  %v1339 = vmax.f32 %v1275, 0.0
  %v1340 = vmax.f32 %v1276, 0.0
  %v1341 = vmax.f32 %v1277, 0.0
  %v1342 = vmax.f32 %v1278, 0.0
  %v1343 = vmax.f32 %v1279, 0.0
  %v1344 = vmax.f32 %v1280, 0.0
  %v1345 = vmax.f32 %v1281, 0.0
  %v1346 = vmax.f32 %v1282, 0.0
  %v1347 = vmax.f32 %v1283, 0.0
  %v1348 = vmax.f32 %v1284, 0.0
  %v1349 = vmax.f32 %v1285, 0.0
  %v1350 = vmax.f32 %v1286, 0.0
  %v1351 = vmax.f32 %v1287, 0.0
  %v1352 = vmax.f32 %v1288, 0.0
  %v1353 = vmax.f32 %v1289, 0.0
  %v1354 = vmax.f32 %v1290, 0.0
  %v1355 = vpack.c.bf16 %v1292, %v1291
  %v1356 = vpack.c.bf16 %v1294, %v1293
  %v1357 = vpack.c.bf16 %v1296, %v1295
  %v1358 = vpack.c.bf16 %v1298, %v1297
  %v1359 = vpack.c.bf16 %v1300, %v1299
  %v1360 = vpack.c.bf16 %v1302, %v1301
  %v1361 = vpack.c.bf16 %v1304, %v1303
  %v1362 = vpack.c.bf16 %v1306, %v1305
  %v1363 = vpack.c.bf16 %v1308, %v1307
  %v1364 = vpack.c.bf16 %v1310, %v1309
  %v1365 = vpack.c.bf16 %v1312, %v1311
  %v1366 = vpack.c.bf16 %v1314, %v1313
  %v1367 = vpack.c.bf16 %v1316, %v1315
  %v1368 = vpack.c.bf16 %v1318, %v1317
  %v1369 = vpack.c.bf16 %v1320, %v1319
  %v1370 = vpack.c.bf16 %v1322, %v1321
  %v1371 = vpack.c.bf16 %v1324, %v1323
  %v1372 = vpack.c.bf16 %v1326, %v1325
  %v1373 = vpack.c.bf16 %v1328, %v1327
  %v1374 = vpack.c.bf16 %v1330, %v1329
  %v1375 = vpack.c.bf16 %v1332, %v1331
  %v1376 = vpack.c.bf16 %v1334, %v1333
  %v1377 = vpack.c.bf16 %v1336, %v1335
  %v1378 = vpack.c.bf16 %v1338, %v1337
  %v1379 = vpack.c.bf16 %v1340, %v1339
  %v1380 = vpack.c.bf16 %v1342, %v1341
  %v1381 = vpack.c.bf16 %v1344, %v1343
  %v1382 = vpack.c.bf16 %v1346, %v1345
  %v1383 = vpack.c.bf16 %v1348, %v1347
  %v1384 = vpack.c.bf16 %v1350, %v1349
  %v1385 = vpack.c.bf16 %v1352, %v1351
  %v1386 = vpack.c.bf16 %v1354, %v1353
  %v1419 = vunpack.c.l.b16 %v1355
  %v1420 = vunpack.c.h.b16 %v1355
  %v1421 = vunpack.c.l.b16 %v1356
  %v1422 = vunpack.c.h.b16 %v1356
  %v1423 = vunpack.c.l.b16 %v1357
  %v1424 = vunpack.c.h.b16 %v1357
  %v1425 = vunpack.c.l.b16 %v1358
  %v1426 = vunpack.c.h.b16 %v1358
  %v1427 = vunpack.c.l.b16 %v1359
  %v1428 = vunpack.c.h.b16 %v1359
  %v1429 = vunpack.c.l.b16 %v1360
  %v1430 = vunpack.c.h.b16 %v1360
  %v1431 = vunpack.c.l.b16 %v1361
  %v1432 = vunpack.c.h.b16 %v1361
  %v1433 = vunpack.c.l.b16 %v1362
  %v1434 = vunpack.c.h.b16 %v1362
  %v1435 = vunpack.c.l.b16 %v1363
  %v1436 = vunpack.c.h.b16 %v1363
  %v1437 = vunpack.c.l.b16 %v1364
  %v1438 = vunpack.c.h.b16 %v1364
  %v1439 = vunpack.c.l.b16 %v1365
  %v1440 = vunpack.c.h.b16 %v1365
  %v1441 = vunpack.c.l.b16 %v1366
  %v1442 = vunpack.c.h.b16 %v1366
  %v1443 = vunpack.c.l.b16 %v1367
  %v1444 = vunpack.c.h.b16 %v1367
  %v1445 = vunpack.c.l.b16 %v1368
  %v1446 = vunpack.c.h.b16 %v1368
  %v1447 = vunpack.c.l.b16 %v1369
  %v1448 = vunpack.c.h.b16 %v1369
  %v1449 = vunpack.c.l.b16 %v1370
  %v1450 = vunpack.c.h.b16 %v1370
  %v1451 = vunpack.c.l.b16 %v1371
  %v1452 = vunpack.c.h.b16 %v1371
  %v1453 = vunpack.c.l.b16 %v1372
  %v1454 = vunpack.c.h.b16 %v1372
  %v1455 = vunpack.c.l.b16 %v1373
  %v1456 = vunpack.c.h.b16 %v1373
  %v1457 = vunpack.c.l.b16 %v1374
  %v1458 = vunpack.c.h.b16 %v1374
  %v1459 = vunpack.c.l.b16 %v1375
  %v1460 = vunpack.c.h.b16 %v1375
  %v1461 = vunpack.c.l.b16 %v1376
  %v1462 = vunpack.c.h.b16 %v1376
  %v1463 = vunpack.c.l.b16 %v1377
  %v1464 = vunpack.c.h.b16 %v1377
  %v1465 = vunpack.c.l.b16 %v1378
  %v1466 = vunpack.c.h.b16 %v1378
  %v1467 = vunpack.c.l.b16 %v1379
  %v1468 = vunpack.c.h.b16 %v1379
  %v1469 = vunpack.c.l.b16 %v1380
  %v1470 = vunpack.c.h.b16 %v1380
  %v1471 = vunpack.c.l.b16 %v1381
  %v1472 = vunpack.c.h.b16 %v1381
  %v1473 = vunpack.c.l.b16 %v1382
  %v1474 = vunpack.c.h.b16 %v1382
  %v1475 = vunpack.c.l.b16 %v1383
  %v1476 = vunpack.c.h.b16 %v1383
  %v1477 = vunpack.c.l.b16 %v1384
  %v1478 = vunpack.c.h.b16 %v1384
  %v1479 = vunpack.c.l.b16 %v1385
  %v1480 = vunpack.c.h.b16 %v1385
  %v1481 = vunpack.c.l.b16 %v1386
  %v1482 = vunpack.c.h.b16 %v1386
  %v1483 = vpack.c.b16 %v1419, %v1419
  %v1484 = vpack.c.b16 %v1420, %v1420
  %v1485 = vpack.c.b16 %v1421, %v1421
  %v1486 = vpack.c.b16 %v1422, %v1422
  %v1487 = vpack.c.b16 %v1423, %v1423
  %v1488 = vpack.c.b16 %v1424, %v1424
  %v1489 = vpack.c.b16 %v1425, %v1425
  %v1490 = vpack.c.b16 %v1426, %v1426
  %v1491 = vpack.c.b16 %v1427, %v1427
  %v1492 = vpack.c.b16 %v1428, %v1428
  %v1493 = vpack.c.b16 %v1429, %v1429
  %v1494 = vpack.c.b16 %v1430, %v1430
  %v1495 = vpack.c.b16 %v1431, %v1431
  %v1496 = vpack.c.b16 %v1432, %v1432
  %v1497 = vpack.c.b16 %v1433, %v1433
  %v1498 = vpack.c.b16 %v1434, %v1434
  %v1499 = vpack.c.b16 %v1435, %v1435
  %v1500 = vpack.c.b16 %v1436, %v1436
  %v1501 = vpack.c.b16 %v1437, %v1437
  %v1502 = vpack.c.b16 %v1438, %v1438
  %v1503 = vpack.c.b16 %v1439, %v1439
  %v1504 = vpack.c.b16 %v1440, %v1440
  %v1505 = vpack.c.b16 %v1441, %v1441
  %v1506 = vpack.c.b16 %v1442, %v1442
  %v1507 = vpack.c.b16 %v1443, %v1443
  %v1508 = vpack.c.b16 %v1444, %v1444
  %v1509 = vpack.c.b16 %v1445, %v1445
  %v1510 = vpack.c.b16 %v1446, %v1446
  %v1511 = vpack.c.b16 %v1447, %v1447
  %v1512 = vpack.c.b16 %v1448, %v1448
  %v1513 = vpack.c.b16 %v1449, %v1449
  %v1514 = vpack.c.b16 %v1450, %v1450
  %v1515 = vpack.c.b16 %v1451, %v1451
  %v1516 = vpack.c.b16 %v1452, %v1452
  %v1517 = vpack.c.b16 %v1453, %v1453
  %v1518 = vpack.c.b16 %v1454, %v1454
  %v1519 = vpack.c.b16 %v1455, %v1455
  %v1520 = vpack.c.b16 %v1456, %v1456
  %v1521 = vpack.c.b16 %v1457, %v1457
  %v1522 = vpack.c.b16 %v1458, %v1458
  %v1523 = vpack.c.b16 %v1459, %v1459
  %v1524 = vpack.c.b16 %v1460, %v1460
  %v1525 = vpack.c.b16 %v1461, %v1461
  %v1526 = vpack.c.b16 %v1462, %v1462
  %v1527 = vpack.c.b16 %v1463, %v1463
  %v1528 = vpack.c.b16 %v1464, %v1464
  %v1529 = vpack.c.b16 %v1465, %v1465
  %v1530 = vpack.c.b16 %v1466, %v1466
  %v1531 = vpack.c.b16 %v1467, %v1467
  %v1532 = vpack.c.b16 %v1468, %v1468
  %v1533 = vpack.c.b16 %v1469, %v1469
  %v1534 = vpack.c.b16 %v1470, %v1470
  %v1535 = vpack.c.b16 %v1471, %v1471
  %v1536 = vpack.c.b16 %v1472, %v1472
  %v1537 = vpack.c.b16 %v1473, %v1473
  %v1538 = vpack.c.b16 %v1474, %v1474
  %v1539 = vpack.c.b16 %v1475, %v1475
  %v1540 = vpack.c.b16 %v1476, %v1476
  %v1541 = vpack.c.b16 %v1477, %v1477
  %v1542 = vpack.c.b16 %v1478, %v1478
  %v1543 = vpack.c.b16 %v1479, %v1479
  %v1544 = vpack.c.b16 %v1480, %v1480
  %v1545 = vpack.c.b16 %v1481, %v1481
  %v1546 = vpack.c.b16 %v1482, %v1482
  %1611 = vst [vmem:[%s5] sm:$0xf] %v1483
  %1612 = vst [vmem:[%s5 + $0x4] sm:$0xf] %v1484
  %1613 = vst [vmem:[%s5 + $0x8] sm:$0xf] %v1485
  %1614 = vst [vmem:[%s5 + $0xc] sm:$0xf] %v1486
  %1615 = vst [vmem:[%s5 + $0x10] sm:$0xf] %v1487
  %1616 = vst [vmem:[%s5 + $0x14] sm:$0xf] %v1488
  %1617 = vst [vmem:[%s5 + $0x18] sm:$0xf] %v1489
  %1618 = vst [vmem:[%s5 + $0x1c] sm:$0xf] %v1490
  %1619 = vst [vmem:[%s5 + $0x20] sm:$0xf] %v1491
  %1620 = vst [vmem:[%s5 + $0x24] sm:$0xf] %v1492
  %1621 = vst [vmem:[%s5 + $0x28] sm:$0xf] %v1493
  %1622 = vst [vmem:[%s5 + $0x2c] sm:$0xf] %v1494
  %1623 = vst [vmem:[%s5 + $0x30] sm:$0xf] %v1495
  %1624 = vst [vmem:[%s5 + $0x34] sm:$0xf] %v1496
  %1625 = vst [vmem:[%s5 + $0x38] sm:$0xf] %v1497
  %1626 = vst [vmem:[%s5 + $0x3c] sm:$0xf] %v1498
  %1627 = vst [vmem:[%s5 + $0x40] sm:$0xf] %v1499
  %1628 = vst [vmem:[%s5 + $0x44] sm:$0xf] %v1500
  %1629 = vst [vmem:[%s5 + $0x48] sm:$0xf] %v1501
  %1630 = vst [vmem:[%s5 + $0x4c] sm:$0xf] %v1502
  %1631 = vst [vmem:[%s5 + $0x50] sm:$0xf] %v1503
  %1632 = vst [vmem:[%s5 + $0x54] sm:$0xf] %v1504
  %1633 = vst [vmem:[%s5 + $0x58] sm:$0xf] %v1505
  %1634 = vst [vmem:[%s5 + $0x5c] sm:$0xf] %v1506
  %1635 = vst [vmem:[%s5 + $0x60] sm:$0xf] %v1507
  %1636 = vst [vmem:[%s5 + $0x64] sm:$0xf] %v1508
  %1637 = vst [vmem:[%s5 + $0x68] sm:$0xf] %v1509
  %1638 = vst [vmem:[%s5 + $0x6c] sm:$0xf] %v1510
  %1639 = vst [vmem:[%s5 + $0x70] sm:$0xf] %v1511
  %1640 = vst [vmem:[%s5 + $0x74] sm:$0xf] %v1512
  %1641 = vst [vmem:[%s5 + $0x78] sm:$0xf] %v1513
  %1642 = vst [vmem:[%s5 + $0x7c] sm:$0xf] %v1514
  %1643 = vst [vmem:[%s5 + $0x80] sm:$0xf] %v1515
  %1644 = vst [vmem:[%s5 + $0x84] sm:$0xf] %v1516
  %1645 = vst [vmem:[%s5 + $0x88] sm:$0xf] %v1517
  %1646 = vst [vmem:[%s5 + $0x8c] sm:$0xf] %v1518
  %1647 = vst [vmem:[%s5 + $0x90] sm:$0xf] %v1519
  %1648 = vst [vmem:[%s5 + $0x94] sm:$0xf] %v1520
  %1649 = vst [vmem:[%s5 + $0x98] sm:$0xf] %v1521
  %1650 = vst [vmem:[%s5 + $0x9c] sm:$0xf] %v1522
  %1651 = vst [vmem:[%s5 + $0xa0] sm:$0xf] %v1523
  %1652 = vst [vmem:[%s5 + $0xa4] sm:$0xf] %v1524
  %1653 = vst [vmem:[%s5 + $0xa8] sm:$0xf] %v1525
  %1654 = vst [vmem:[%s5 + $0xac] sm:$0xf] %v1526
  %1655 = vst [vmem:[%s5 + $0xb0] sm:$0xf] %v1527
  %1656 = vst [vmem:[%s5 + $0xb4] sm:$0xf] %v1528
  %1657 = vst [vmem:[%s5 + $0xb8] sm:$0xf] %v1529
  %1658 = vst [vmem:[%s5 + $0xbc] sm:$0xf] %v1530
  %1659 = vst [vmem:[%s5 + $0xc0] sm:$0xf] %v1531
  %1660 = vst [vmem:[%s5 + $0xc4] sm:$0xf] %v1532
  %1661 = vst [vmem:[%s5 + $0xc8] sm:$0xf] %v1533
  %1662 = vst [vmem:[%s5 + $0xcc] sm:$0xf] %v1534
  %1663 = vst [vmem:[%s5 + $0xd0] sm:$0xf] %v1535
  %1664 = vst [vmem:[%s5 + $0xd4] sm:$0xf] %v1536
  %1665 = vst [vmem:[%s5 + $0xd8] sm:$0xf] %v1537
  %1666 = vst [vmem:[%s5 + $0xdc] sm:$0xf] %v1538
  %1667 = vst [vmem:[%s5 + $0xe0] sm:$0xf] %v1539
  %1668 = vst [vmem:[%s5 + $0xe4] sm:$0xf] %v1540
  %1669 = vst [vmem:[%s5 + $0xe8] sm:$0xf] %v1541
  %1670 = vst [vmem:[%s5 + $0xec] sm:$0xf] %v1542
  %1671 = vst [vmem:[%s5 + $0xf0] sm:$0xf] %v1543
  %1672 = vst [vmem:[%s5 + $0xf4] sm:$0xf] %v1544
  %1673 = vst [vmem:[%s5 + $0xf8] sm:$0xf] %v1545
  %1674 = vst [vmem:[%s5 + $0xfc] sm:$0xf] %v1546
  // Predicated region
  $region22: #{generator_forward.8} parent=0 // pred_check
    _
  $region23: #{generator_forward.8} parent=0 // pred_check_branch
    %1676 = sbr.rel (0) target = $region25
  $region24: #{generator_forward.8} parent=0 // pred_region
    _
  $region25: #{generator_forward.8} parent=0 // pred_fallthru
    _
  // Predicated region
  $region26: #{generator_forward.8} parent=0 // pred_check
    _
  $region27: #{generator_forward.8} parent=0 // pred_check_branch
    %1678 = sbr.rel (0) target = $region29
  $region28: #{generator_forward.8} parent=0 // pred_region
    _
  $region29: #{generator_forward.8} parent=0 // pred_fallthru
    _

// kernel: generator_forward.9
$region0: #{generator_forward.9}
  #allocation0 [shape = 'u32[]', space=smem, size = 0x4, offset = 0x4, fixed_abs, tag = 'smem constant byte address 0x4 - core index']
  #allocation1 [shape = 'u32[144,128]{1,0:T(1,128)}', space=vmem, size = 0x12000, scoped, tag = 'internal scratch']
  %s0 = inlined_call_operand.vmem [shape: bf16[2048,72], index: 0, kind: input, shape index: {}]
  %s1 = inlined_call_operand.vmem [shape: bf16[72,128], index: 1, kind: input, shape index: {}]
  %s2 = inlined_call_operand.vmem [shape: f32[2048,128], index: 2, kind: output, shape index: {}]
  %s3 = sld [smem:[#allocation0]]
  $region41: #{generator_forward.9} parent=0
    _
  %s5 = ssub.s32 1, %s3
  %s6 = scalar_select 0, %s5, %s3
  loop: start=0, step=1, limit=4
  $region2: #{generator_forward.9} parent=0 // loop_pre_header
    _
  $region3: #{generator_forward.9} parent=0 // loop_header
    %s8 = sphi 0, %s12
    %p9 = scmp.ge.s32.totalorder %s8, 4
    %s18 = sphi 0, %s20
    %s21 = sphi 0, %s18
    %s22 = sphi 0, %s21
    %s38 = sphi 0, %s22
    %s42 = sphi 0, %s42
    %s44 = sphi 0, %s42
    %s45 = sphi 0, %s44
    %s59 = sphi 0, %s45
    %s65 = sphi 0, %s67
    %s68 = sphi 0, %s65
    %s69 = sphi 0, %s68
    %s85 = sphi 0, %s69
  $region4: #{generator_forward.9} parent=0 // loop_header_branch
    %11 = sbr.rel (%p9) target = $region8
  $region5: #{generator_forward.9} parent=0 // loop_body
    %s13 = ssub.s32 %s8, 1
    %s14 = ssub.s32 %s8, 2
    %s15 = sadd.s32 %s8, 1
    %s16 = ssub.s32 %s8, %s15
    %p17 = scmp.eq.s32.totalorder %s16, 0
    %s19 = sadd.s32 %s18, 1
    %s20 = scalar_select %p17, %s18, %s19
    %p23 = pneg %p17
    %p24 = scmp.eq.s32.totalorder %s8, 1
    %p25 = por %p23, %p24
    %p26 = scmp.ne.s32.totalorder %s18, %s21
    %p27 = scmp.eq.s32.totalorder %s8, 0
    %p28 = por %p26, %p27
    %p29 = scmp.ne.s32.totalorder %s18, %s21
    %p30 = scmp.eq.s32.totalorder %s13, 1
    %p31 = por %p29, %p30
    %p32 = scmp.ne.s32.totalorder %s21, %s22
    %p33 = scmp.eq.s32.totalorder %s13, 0
    %p34 = por %p32, %p33
    %p35 = scmp.ne.s32.totalorder %s21, %s22
    %p36 = scmp.eq.s32.totalorder %s14, 1
    %p37 = por %p35, %p36
    %p39 = scmp.ne.s32.totalorder %s22, %s38
    %p40 = scmp.eq.s32.totalorder %s14, 0
    %p41 = por %p39, %p40
    %s43 = sadd.s32 %s42, 1
    %p46 = scmp.eq.s32.totalorder %s8, 1
    %p47 = scmp.ne.s32.totalorder %s42, %s44
    %p48 = scmp.eq.s32.totalorder %s8, 0
    %p49 = por %p47, %p48
    %p50 = scmp.ne.s32.totalorder %s42, %s44
    %p51 = scmp.eq.s32.totalorder %s13, 1
    %p52 = por %p50, %p51
    %p53 = scmp.ne.s32.totalorder %s44, %s45
    %p54 = scmp.eq.s32.totalorder %s13, 0
    %p55 = por %p53, %p54
    %p56 = scmp.ne.s32.totalorder %s44, %s45
    %p57 = scmp.eq.s32.totalorder %s14, 1
    %p58 = por %p56, %p57
    %p60 = scmp.ne.s32.totalorder %s45, %s59
    %p61 = scmp.eq.s32.totalorder %s14, 0
    %p62 = por %p60, %p61
    %s63 = ssub.s32 %s8, %s15
    %p64 = scmp.eq.s32.totalorder %s63, 0
    %s66 = sadd.s32 %s65, 1
    %s67 = scalar_select %p64, %s65, %s66
    %p70 = pneg %p64
    %p71 = scmp.eq.s32.totalorder %s8, 1
    %p72 = por %p70, %p71
    %p73 = scmp.ne.s32.totalorder %s65, %s68
    %p74 = scmp.eq.s32.totalorder %s8, 0
    %p75 = por %p73, %p74
    %p76 = scmp.ne.s32.totalorder %s65, %s68
    %p77 = scmp.eq.s32.totalorder %s13, 1
    %p78 = por %p76, %p77
    %p79 = scmp.ne.s32.totalorder %s68, %s69
    %p80 = scmp.eq.s32.totalorder %s13, 0
    %p81 = por %p79, %p80
    %p82 = scmp.ne.s32.totalorder %s68, %s69
    %p83 = scmp.eq.s32.totalorder %s14, 1
    %p84 = por %p82, %p83
    %p86 = scmp.ne.s32.totalorder %s69, %s85
    %p87 = scmp.eq.s32.totalorder %s14, 0
    %p88 = por %p86, %p87
    %p89 = scmp.le.s32.totalorder 1, %s8
    %p90 = scmp.lt.s32.totalorder %s8, 3
    %p91 = pnand %p89, %p90
    %p92 = pneg %p91
    // Predicated region
    $region9: #{generator_forward.9} parent=5 // pred_check
      _
    $region10: #{generator_forward.9} parent=5 // pred_check_branch
      %94 = sbr.rel (%p91) target = $region12
    $region11: #{generator_forward.9} parent=5 // pred_region
      %s95 = ssub.s32 %s8, 1
      // Predicated region
      $region13: #{generator_forward.9} parent=11 // pred_check
        %p96 = pneg %p55
      $region14: #{generator_forward.9} parent=11 // pred_check_branch
        %98 = sbr.rel (%p96) target = $region16
      $region15: #{generator_forward.9} parent=11 // pred_region
        _
      $region16: #{generator_forward.9} parent=11 // pred_fallthru
        _
    $region12: #{generator_forward.9} parent=5 // pred_fallthru
      _
    %p99 = scmp.lt.s32.totalorder %s8, 2
    // Predicated region
    $region17: #{generator_forward.9} parent=5 // pred_check
      %p100 = pneg %p99
    $region18: #{generator_forward.9} parent=5 // pred_check_branch
      %102 = sbr.rel (%p100) target = $region20
    $region19: #{generator_forward.9} parent=5 // pred_region
      // Predicated region
      $region21: #{generator_forward.9} parent=19 // pred_check
        %p103 = pneg %p28
      $region22: #{generator_forward.9} parent=19 // pred_check_branch
        %105 = sbr.rel (%p103) target = $region24
      $region23: #{generator_forward.9} parent=19 // pred_region
        %s106 = smul.u32 128, %s8
        %p107 = scmp.lt.s32.totalorder %s106, 255
        %s108 = scalar_select %p107, %s106, 255
        %s109 = smul.addr %s108, 4
        %s110 = scalar_lea.vmem %s0, %s109
        %s111 = smul.u32 128, %s8
      $region24: #{generator_forward.9} parent=19 // pred_fallthru
        _
    $region20: #{generator_forward.9} parent=5 // pred_fallthru
      _
    %p112 = scmp.le.s32.totalorder 1, %s8
    %p113 = scmp.lt.s32.totalorder %s8, 3
    %p114 = pnand %p112, %p113
    %p115 = pneg %p114
    // Predicated region
    $region25: #{generator_forward.9} parent=5 // pred_check
      _
    $region26: #{generator_forward.9} parent=5 // pred_check_branch
      %117 = sbr.rel (%p114) target = $region28
    $region27: #{generator_forward.9} parent=5 // pred_region
      %s118 = ssub.s32 %s8, 1
      %s119 = smul.u32 128, %s13
      %p120 = scmp.lt.s32.totalorder %s119, 255
      %s121 = scalar_select %p120, %s119, 255
      %s122 = smul.addr %s121, 4
      %s123 = scalar_lea.vmem %s0, %s122
      %p124 = pneg %p34
      %p125 = pneg %p31
      %p126 = pneg %p55
      %p127 = pneg %p52
      %p128 = pneg %p81
      %p129 = pneg %p78
      %s130 = smul.u32 128, %s13
      %p131 = scmp.lt.s32.totalorder %s130, 255
      %s132 = scalar_select %p131, %s130, 255
      %s133 = smul.addr %s132, 8
      %s134 = scalar_lea.vmem %s2, %s133
      %s135 = smul.u32 128, %s13
      %p136 = scmp.lt.s32.totalorder %s135, 255
      %s137 = scalar_select %p136, %s135, 255
      %s138 = smul.addr %s137, 4
      %s139 = scalar_lea.vmem %s0, %s138
      %s140 = smul.u32 128, %s13
      %s141 = smul.u32 128, %s13
      %p142 = scmp.lt.s32.totalorder %s141, 255
      %s143 = scalar_select %p142, %s141, 255
      %s144 = smul.addr %s143, 8
      %s145 = scalar_lea.vmem %s2, %s144
      %s146 = smul.u32 128, %s13
      %v148 = vld [vmem:[%s139] sm:$0xf]
      %v149 = vld [vmem:[%s139 + $0x4] sm:$0xf]
      %v150 = vld [vmem:[%s139 + $0x8] sm:$0xf]
      %v151 = vld [vmem:[%s139 + $0xc] sm:$0xf]
      %v152 = vld [vmem:[%s139 + $0x10] sm:$0xf]
      %v153 = vld [vmem:[%s139 + $0x14] sm:$0xf]
      %v154 = vld [vmem:[%s139 + $0x18] sm:$0xf]
      %v155 = vld [vmem:[%s139 + $0x1c] sm:$0xf]
      %v156 = vld [vmem:[%s139 + $0x20] sm:$0xf]
      %v157 = vld [vmem:[%s139 + $0x24] sm:$0xf]
      %v158 = vld [vmem:[%s139 + $0x28] sm:$0xf]
      %v159 = vld [vmem:[%s139 + $0x2c] sm:$0xf]
      %v160 = vld [vmem:[%s139 + $0x30] sm:$0xf]
      %v161 = vld [vmem:[%s139 + $0x34] sm:$0xf]
      %v162 = vld [vmem:[%s139 + $0x38] sm:$0xf]
      %v163 = vld [vmem:[%s139 + $0x3c] sm:$0xf]
      %v164 = vld [vmem:[%s139 + $0x40] sm:$0xf]
      %v165 = vld [vmem:[%s139 + $0x44] sm:$0xf]
      %v166 = vld [vmem:[%s139 + $0x48] sm:$0xf]
      %v167 = vld [vmem:[%s139 + $0x4c] sm:$0xf]
      %v168 = vld [vmem:[%s139 + $0x50] sm:$0xf]
      %v169 = vld [vmem:[%s139 + $0x54] sm:$0xf]
      %v170 = vld [vmem:[%s139 + $0x58] sm:$0xf]
      %v171 = vld [vmem:[%s139 + $0x5c] sm:$0xf]
      %v172 = vld [vmem:[%s139 + $0x60] sm:$0xf]
      %v173 = vld [vmem:[%s139 + $0x64] sm:$0xf]
      %v174 = vld [vmem:[%s139 + $0x68] sm:$0xf]
      %v175 = vld [vmem:[%s139 + $0x6c] sm:$0xf]
      %v176 = vld [vmem:[%s139 + $0x70] sm:$0xf]
      %v177 = vld [vmem:[%s139 + $0x74] sm:$0xf]
      %v178 = vld [vmem:[%s139 + $0x78] sm:$0xf]
      %v179 = vld [vmem:[%s139 + $0x7c] sm:$0xf]
      %v180 = vld [vmem:[%s139 + $0x80] sm:$0xf]
      %v181 = vld [vmem:[%s139 + $0x84] sm:$0xf]
      %v182 = vld [vmem:[%s139 + $0x88] sm:$0xf]
      %v183 = vld [vmem:[%s139 + $0x8c] sm:$0xf]
      %v184 = vld [vmem:[%s139 + $0x90] sm:$0xf]
      %v185 = vld [vmem:[%s139 + $0x94] sm:$0xf]
      %v186 = vld [vmem:[%s139 + $0x98] sm:$0xf]
      %v187 = vld [vmem:[%s139 + $0x9c] sm:$0xf]
      %v188 = vld [vmem:[%s139 + $0xa0] sm:$0xf]
      %v189 = vld [vmem:[%s139 + $0xa4] sm:$0xf]
      %v190 = vld [vmem:[%s139 + $0xa8] sm:$0xf]
      %v191 = vld [vmem:[%s139 + $0xac] sm:$0xf]
      %v192 = vld [vmem:[%s139 + $0xb0] sm:$0xf]
      %v193 = vld [vmem:[%s139 + $0xb4] sm:$0xf]
      %v194 = vld [vmem:[%s139 + $0xb8] sm:$0xf]
      %v195 = vld [vmem:[%s139 + $0xbc] sm:$0xf]
      %v196 = vld [vmem:[%s139 + $0xc0] sm:$0xf]
      %v197 = vld [vmem:[%s139 + $0xc4] sm:$0xf]
      %v198 = vld [vmem:[%s139 + $0xc8] sm:$0xf]
      %v199 = vld [vmem:[%s139 + $0xcc] sm:$0xf]
      %v200 = vld [vmem:[%s139 + $0xd0] sm:$0xf]
      %v201 = vld [vmem:[%s139 + $0xd4] sm:$0xf]
      %v202 = vld [vmem:[%s139 + $0xd8] sm:$0xf]
      %v203 = vld [vmem:[%s139 + $0xdc] sm:$0xf]
      %v204 = vld [vmem:[%s139 + $0xe0] sm:$0xf]
      %v205 = vld [vmem:[%s139 + $0xe4] sm:$0xf]
      %v206 = vld [vmem:[%s139 + $0xe8] sm:$0xf]
      %v207 = vld [vmem:[%s139 + $0xec] sm:$0xf]
      %v208 = vld [vmem:[%s139 + $0xf0] sm:$0xf]
      %v209 = vld [vmem:[%s139 + $0xf4] sm:$0xf]
      %v210 = vld [vmem:[%s139 + $0xf8] sm:$0xf]
      %v211 = vld [vmem:[%s139 + $0xfc] sm:$0xf]
      %v212 = vld [vmem:[%s139 + $0x100] sm:$0xf]
      %v213 = vld [vmem:[%s139 + $0x104] sm:$0xf]
      %v214 = vld [vmem:[%s139 + $0x108] sm:$0xf]
      %v215 = vld [vmem:[%s139 + $0x10c] sm:$0xf]
      %v216 = vld [vmem:[%s139 + $0x110] sm:$0xf]
      %v217 = vld [vmem:[%s139 + $0x114] sm:$0xf]
      %v218 = vld [vmem:[%s139 + $0x118] sm:$0xf]
      %v219 = vld [vmem:[%s139 + $0x11c] sm:$0xf]
      %v220 = vld [vmem:[%s139 + $0x120] sm:$0xf]
      %v221 = vld [vmem:[%s139 + $0x124] sm:$0xf]
      %v222 = vld [vmem:[%s139 + $0x128] sm:$0xf]
      %v223 = vld [vmem:[%s139 + $0x12c] sm:$0xf]
      %v224 = vld [vmem:[%s139 + $0x130] sm:$0xf]
      %v225 = vld [vmem:[%s139 + $0x134] sm:$0xf]
      %v226 = vld [vmem:[%s139 + $0x138] sm:$0xf]
      %v227 = vld [vmem:[%s139 + $0x13c] sm:$0xf]
      %v228 = vld [vmem:[%s139 + $0x140] sm:$0xf]
      %v229 = vld [vmem:[%s139 + $0x144] sm:$0xf]
      %v230 = vld [vmem:[%s139 + $0x148] sm:$0xf]
      %v231 = vld [vmem:[%s139 + $0x14c] sm:$0xf]
      %v232 = vld [vmem:[%s139 + $0x150] sm:$0xf]
      %v233 = vld [vmem:[%s139 + $0x154] sm:$0xf]
      %v234 = vld [vmem:[%s139 + $0x158] sm:$0xf]
      %v235 = vld [vmem:[%s139 + $0x15c] sm:$0xf]
      %v236 = vld [vmem:[%s139 + $0x160] sm:$0xf]
      %v237 = vld [vmem:[%s139 + $0x164] sm:$0xf]
      %v238 = vld [vmem:[%s139 + $0x168] sm:$0xf]
      %v239 = vld [vmem:[%s139 + $0x16c] sm:$0xf]
      %v240 = vld [vmem:[%s139 + $0x170] sm:$0xf]
      %v241 = vld [vmem:[%s139 + $0x174] sm:$0xf]
      %v242 = vld [vmem:[%s139 + $0x178] sm:$0xf]
      %v243 = vld [vmem:[%s139 + $0x17c] sm:$0xf]
      %v244 = vld [vmem:[%s139 + $0x180] sm:$0xf]
      %v245 = vld [vmem:[%s139 + $0x184] sm:$0xf]
      %v246 = vld [vmem:[%s139 + $0x188] sm:$0xf]
      %v247 = vld [vmem:[%s139 + $0x18c] sm:$0xf]
      %v248 = vld [vmem:[%s139 + $0x190] sm:$0xf]
      %v249 = vld [vmem:[%s139 + $0x194] sm:$0xf]
      %v250 = vld [vmem:[%s139 + $0x198] sm:$0xf]
      %v251 = vld [vmem:[%s139 + $0x19c] sm:$0xf]
      %v252 = vld [vmem:[%s139 + $0x1a0] sm:$0xf]
      %v253 = vld [vmem:[%s139 + $0x1a4] sm:$0xf]
      %v254 = vld [vmem:[%s139 + $0x1a8] sm:$0xf]
      %v255 = vld [vmem:[%s139 + $0x1ac] sm:$0xf]
      %v256 = vld [vmem:[%s139 + $0x1b0] sm:$0xf]
      %v257 = vld [vmem:[%s139 + $0x1b4] sm:$0xf]
      %v258 = vld [vmem:[%s139 + $0x1b8] sm:$0xf]
      %v259 = vld [vmem:[%s139 + $0x1bc] sm:$0xf]
      %v260 = vld [vmem:[%s139 + $0x1c0] sm:$0xf]
      %v261 = vld [vmem:[%s139 + $0x1c4] sm:$0xf]
      %v262 = vld [vmem:[%s139 + $0x1c8] sm:$0xf]
      %v263 = vld [vmem:[%s139 + $0x1cc] sm:$0xf]
      %v264 = vld [vmem:[%s139 + $0x1d0] sm:$0xf]
      %v265 = vld [vmem:[%s139 + $0x1d4] sm:$0xf]
      %v266 = vld [vmem:[%s139 + $0x1d8] sm:$0xf]
      %v267 = vld [vmem:[%s139 + $0x1dc] sm:$0xf]
      %v268 = vld [vmem:[%s139 + $0x1e0] sm:$0xf]
      %v269 = vld [vmem:[%s139 + $0x1e4] sm:$0xf]
      %v270 = vld [vmem:[%s139 + $0x1e8] sm:$0xf]
      %v271 = vld [vmem:[%s139 + $0x1ec] sm:$0xf]
      %v272 = vld [vmem:[%s139 + $0x1f0] sm:$0xf]
      %v273 = vld [vmem:[%s139 + $0x1f4] sm:$0xf]
      %v274 = vld [vmem:[%s139 + $0x1f8] sm:$0xf]
      %v275 = vld [vmem:[%s139 + $0x1fc] sm:$0xf]
      %v276 = vld [vmem:[%s1] sm:$0xf]
      %v277 = vld [vmem:[%s1 + $0x4] sm:$0xf]
      %v278 = vld [vmem:[%s1 + $0x8] sm:$0xf]
      %v279 = vld [vmem:[%s1 + $0xc] sm:$0xf]
      %v280 = vld [vmem:[%s1 + $0x10] sm:$0xf]
      %v281 = vld [vmem:[%s1 + $0x14] sm:$0xf]
      %v282 = vld [vmem:[%s1 + $0x18] sm:$0xf]
      %v283 = vld [vmem:[%s1 + $0x1c] sm:$0xf]
      %v284 = vld [vmem:[%s1 + $0x20] sm:$0xf]
      %v413 = vunpack.c.l.b16 %v148
      %v414 = vunpack.c.l.b16 %v149
      %v415 = vunpack.c.l.b16 %v150
      %v416 = vunpack.c.l.b16 %v151
      %v417 = vunpack.c.l.b16 %v152
      %v418 = vunpack.c.l.b16 %v153
      %v419 = vunpack.c.l.b16 %v154
      %v420 = vunpack.c.l.b16 %v155
      %v421 = vunpack.c.l.b16 %v156
      %v422 = vunpack.c.l.b16 %v157
      %v423 = vunpack.c.l.b16 %v158
      %v424 = vunpack.c.l.b16 %v159
      %v425 = vunpack.c.l.b16 %v160
      %v426 = vunpack.c.l.b16 %v161
      %v427 = vunpack.c.l.b16 %v162
      %v428 = vunpack.c.l.b16 %v163
      %v429 = vunpack.c.l.b16 %v164
      %v430 = vunpack.c.l.b16 %v165
      %v431 = vunpack.c.l.b16 %v166
      %v432 = vunpack.c.l.b16 %v167
      %v433 = vunpack.c.l.b16 %v168
      %v434 = vunpack.c.l.b16 %v169
      %v435 = vunpack.c.l.b16 %v170
      %v436 = vunpack.c.l.b16 %v171
      %v437 = vunpack.c.l.b16 %v172
      %v438 = vunpack.c.l.b16 %v173
      %v439 = vunpack.c.l.b16 %v174
      %v440 = vunpack.c.l.b16 %v175
      %v441 = vunpack.c.l.b16 %v176
      %v442 = vunpack.c.l.b16 %v177
      %v443 = vunpack.c.l.b16 %v178
      %v444 = vunpack.c.l.b16 %v179
      %v445 = vunpack.c.l.b16 %v180
      %v446 = vunpack.c.l.b16 %v181
      %v447 = vunpack.c.l.b16 %v182
      %v448 = vunpack.c.l.b16 %v183
      %v449 = vunpack.c.l.b16 %v184
      %v450 = vunpack.c.l.b16 %v185
      %v451 = vunpack.c.l.b16 %v186
      %v452 = vunpack.c.l.b16 %v187
      %v453 = vunpack.c.l.b16 %v188
      %v454 = vunpack.c.l.b16 %v189
      %v455 = vunpack.c.l.b16 %v190
      %v456 = vunpack.c.l.b16 %v191
      %v457 = vunpack.c.l.b16 %v192
      %v458 = vunpack.c.l.b16 %v193
      %v459 = vunpack.c.l.b16 %v194
      %v460 = vunpack.c.l.b16 %v195
      %v461 = vunpack.c.l.b16 %v196
      %v462 = vunpack.c.l.b16 %v197
      %v463 = vunpack.c.l.b16 %v198
      %v464 = vunpack.c.l.b16 %v199
      %v465 = vunpack.c.l.b16 %v200
      %v466 = vunpack.c.l.b16 %v201
      %v467 = vunpack.c.l.b16 %v202
      %v468 = vunpack.c.l.b16 %v203
      %v469 = vunpack.c.l.b16 %v204
      %v470 = vunpack.c.l.b16 %v205
      %v471 = vunpack.c.l.b16 %v206
      %v472 = vunpack.c.l.b16 %v207
      %v473 = vunpack.c.l.b16 %v208
      %v474 = vunpack.c.l.b16 %v209
      %v475 = vunpack.c.l.b16 %v210
      %v476 = vunpack.c.l.b16 %v211
      %v477 = vunpack.c.l.b16 %v212
      %v478 = vunpack.c.l.b16 %v213
      %v479 = vunpack.c.l.b16 %v214
      %v480 = vunpack.c.l.b16 %v215
      %v481 = vunpack.c.l.b16 %v216
      %v482 = vunpack.c.l.b16 %v217
      %v483 = vunpack.c.l.b16 %v218
      %v484 = vunpack.c.l.b16 %v219
      %v485 = vunpack.c.l.b16 %v220
      %v486 = vunpack.c.l.b16 %v221
      %v487 = vunpack.c.l.b16 %v222
      %v488 = vunpack.c.l.b16 %v223
      %v489 = vunpack.c.l.b16 %v224
      %v490 = vunpack.c.l.b16 %v225
      %v491 = vunpack.c.l.b16 %v226
      %v492 = vunpack.c.l.b16 %v227
      %v493 = vunpack.c.l.b16 %v228
      %v494 = vunpack.c.l.b16 %v229
      %v495 = vunpack.c.l.b16 %v230
      %v496 = vunpack.c.l.b16 %v231
      %v497 = vunpack.c.l.b16 %v232
      %v498 = vunpack.c.l.b16 %v233
      %v499 = vunpack.c.l.b16 %v234
      %v500 = vunpack.c.l.b16 %v235
      %v501 = vunpack.c.l.b16 %v236
      %v502 = vunpack.c.l.b16 %v237
      %v503 = vunpack.c.l.b16 %v238
      %v504 = vunpack.c.l.b16 %v239
      %v505 = vunpack.c.l.b16 %v240
      %v506 = vunpack.c.l.b16 %v241
      %v507 = vunpack.c.l.b16 %v242
      %v508 = vunpack.c.l.b16 %v243
      %v509 = vunpack.c.l.b16 %v244
      %v510 = vunpack.c.l.b16 %v245
      %v511 = vunpack.c.l.b16 %v246
      %v512 = vunpack.c.l.b16 %v247
      %v513 = vunpack.c.l.b16 %v248
      %v514 = vunpack.c.l.b16 %v249
      %v515 = vunpack.c.l.b16 %v250
      %v516 = vunpack.c.l.b16 %v251
      %v517 = vunpack.c.l.b16 %v252
      %v518 = vunpack.c.l.b16 %v253
      %v519 = vunpack.c.l.b16 %v254
      %v520 = vunpack.c.l.b16 %v255
      %v521 = vunpack.c.l.b16 %v256
      %v522 = vunpack.c.l.b16 %v257
      %v523 = vunpack.c.l.b16 %v258
      %v524 = vunpack.c.l.b16 %v259
      %v525 = vunpack.c.l.b16 %v260
      %v526 = vunpack.c.l.b16 %v261
      %v527 = vunpack.c.l.b16 %v262
      %v528 = vunpack.c.l.b16 %v263
      %v529 = vunpack.c.l.b16 %v264
      %v530 = vunpack.c.l.b16 %v265
      %v531 = vunpack.c.l.b16 %v266
      %v532 = vunpack.c.l.b16 %v267
      %v533 = vunpack.c.l.b16 %v268
      %v534 = vunpack.c.l.b16 %v269
      %v535 = vunpack.c.l.b16 %v270
      %v536 = vunpack.c.l.b16 %v271
      %v537 = vunpack.c.l.b16 %v272
      %v538 = vunpack.c.l.b16 %v273
      %v539 = vunpack.c.l.b16 %v274
      %v540 = vunpack.c.l.b16 %v275
      %v541 = vpack.c.b16 %v414, %v413
      %v542 = vpack.c.b16 %v416, %v415
      %v543 = vpack.c.b16 %v418, %v417
      %v544 = vpack.c.b16 %v420, %v419
      %v545 = vpack.c.b16 %v422, %v421
      %v546 = vpack.c.b16 %v424, %v423
      %v547 = vpack.c.b16 %v426, %v425
      %v548 = vpack.c.b16 %v428, %v427
      %v549 = vpack.c.b16 %v430, %v429
      %v550 = vpack.c.b16 %v432, %v431
      %v551 = vpack.c.b16 %v434, %v433
      %v552 = vpack.c.b16 %v436, %v435
      %v553 = vpack.c.b16 %v438, %v437
      %v554 = vpack.c.b16 %v440, %v439
      %v555 = vpack.c.b16 %v442, %v441
      %v556 = vpack.c.b16 %v444, %v443
      %v557 = vpack.c.b16 %v446, %v445
      %v558 = vpack.c.b16 %v448, %v447
      %v559 = vpack.c.b16 %v450, %v449
      %v560 = vpack.c.b16 %v452, %v451
      %v561 = vpack.c.b16 %v454, %v453
      %v562 = vpack.c.b16 %v456, %v455
      %v563 = vpack.c.b16 %v458, %v457
      %v564 = vpack.c.b16 %v460, %v459
      %v565 = vpack.c.b16 %v462, %v461
      %v566 = vpack.c.b16 %v464, %v463
      %v567 = vpack.c.b16 %v466, %v465
      %v568 = vpack.c.b16 %v468, %v467
      %v569 = vpack.c.b16 %v470, %v469
      %v570 = vpack.c.b16 %v472, %v471
      %v571 = vpack.c.b16 %v474, %v473
      %v572 = vpack.c.b16 %v476, %v475
      %v573 = vpack.c.b16 %v478, %v477
      %v574 = vpack.c.b16 %v480, %v479
      %v575 = vpack.c.b16 %v482, %v481
      %v576 = vpack.c.b16 %v484, %v483
      %v577 = vpack.c.b16 %v486, %v485
      %v578 = vpack.c.b16 %v488, %v487
      %v579 = vpack.c.b16 %v490, %v489
      %v580 = vpack.c.b16 %v492, %v491
      %v581 = vpack.c.b16 %v494, %v493
      %v582 = vpack.c.b16 %v496, %v495
      %v583 = vpack.c.b16 %v498, %v497
      %v584 = vpack.c.b16 %v500, %v499
      %v585 = vpack.c.b16 %v502, %v501
      %v586 = vpack.c.b16 %v504, %v503
      %v587 = vpack.c.b16 %v506, %v505
      %v588 = vpack.c.b16 %v508, %v507
      %v589 = vpack.c.b16 %v510, %v509
      %v590 = vpack.c.b16 %v512, %v511
      %v591 = vpack.c.b16 %v514, %v513
      %v592 = vpack.c.b16 %v516, %v515
      %v593 = vpack.c.b16 %v518, %v517
      %v594 = vpack.c.b16 %v520, %v519
      %v595 = vpack.c.b16 %v522, %v521
      %v596 = vpack.c.b16 %v524, %v523
      %v597 = vpack.c.b16 %v526, %v525
      %v598 = vpack.c.b16 %v528, %v527
      %v599 = vpack.c.b16 %v530, %v529
      %v600 = vpack.c.b16 %v532, %v531
      %v601 = vpack.c.b16 %v534, %v533
      %v602 = vpack.c.b16 %v536, %v535
      %v603 = vpack.c.b16 %v538, %v537
      %v604 = vpack.c.b16 %v540, %v539
      %v614 = vunpack.c.l.b16 %v276
      %v615 = vunpack.c.l.b16 %v277
      %v616 = vunpack.c.l.b16 %v278
      %v617 = vunpack.c.l.b16 %v279
      %v618 = vunpack.c.l.b16 %v280
      %v619 = vunpack.c.l.b16 %v281
      %v620 = vunpack.c.l.b16 %v282
      %v621 = vunpack.c.l.b16 %v283
      %v622 = vunpack.c.l.b16 %v284
      %v623 = vpack.c.b16 %v615, %v614
      %v624 = vpack.c.b16 %v617, %v616
      %v625 = vpack.c.b16 %v619, %v618
      %v626 = vpack.c.b16 %v621, %v620
      %v627 = vpack.c.b16 %v622, %v622
      %vm632 = vcmask 588800
      %v634 = vsel %vm632, %v541, 0
      %v637 = vsel %vm632, %v542, 0
      %v640 = vsel %vm632, %v543, 0
      %v643 = vsel %vm632, %v544, 0
      %v646 = vsel %vm632, %v545, 0
      %v649 = vsel %vm632, %v546, 0
      %v652 = vsel %vm632, %v547, 0
      %v655 = vsel %vm632, %v548, 0
      %v658 = vsel %vm632, %v549, 0
      %v661 = vsel %vm632, %v550, 0
      %v664 = vsel %vm632, %v551, 0
      %v667 = vsel %vm632, %v552, 0
      %v670 = vsel %vm632, %v553, 0
      %v673 = vsel %vm632, %v554, 0
      %v676 = vsel %vm632, %v555, 0
      %v679 = vsel %vm632, %v556, 0
      %v682 = vsel %vm632, %v557, 0
      %v685 = vsel %vm632, %v558, 0
      %v688 = vsel %vm632, %v559, 0
      %v691 = vsel %vm632, %v560, 0
      %v694 = vsel %vm632, %v561, 0
      %v697 = vsel %vm632, %v562, 0
      %v700 = vsel %vm632, %v563, 0
      %v703 = vsel %vm632, %v564, 0
      %v706 = vsel %vm632, %v565, 0
      %v709 = vsel %vm632, %v566, 0
      %v712 = vsel %vm632, %v567, 0
      %v715 = vsel %vm632, %v568, 0
      %v718 = vsel %vm632, %v569, 0
      %v721 = vsel %vm632, %v570, 0
      %v724 = vsel %vm632, %v571, 0
      %v727 = vsel %vm632, %v572, 0
      %v730 = vsel %vm632, %v573, 0
      %v733 = vsel %vm632, %v574, 0
      %v736 = vsel %vm632, %v575, 0
      %v739 = vsel %vm632, %v576, 0
      %v742 = vsel %vm632, %v577, 0
      %v745 = vsel %vm632, %v578, 0
      %v748 = vsel %vm632, %v579, 0
      %v751 = vsel %vm632, %v580, 0
      %v754 = vsel %vm632, %v581, 0
      %v757 = vsel %vm632, %v582, 0
      %v760 = vsel %vm632, %v583, 0
      %v763 = vsel %vm632, %v584, 0
      %v766 = vsel %vm632, %v585, 0
      %v769 = vsel %vm632, %v586, 0
      %v772 = vsel %vm632, %v587, 0
      %v775 = vsel %vm632, %v588, 0
      %v778 = vsel %vm632, %v589, 0
      %v781 = vsel %vm632, %v590, 0
      %v784 = vsel %vm632, %v591, 0
      %v787 = vsel %vm632, %v592, 0
      %v790 = vsel %vm632, %v593, 0
      %v793 = vsel %vm632, %v594, 0
      %v796 = vsel %vm632, %v595, 0
      %v799 = vsel %vm632, %v596, 0
      %v802 = vsel %vm632, %v597, 0
      %v805 = vsel %vm632, %v598, 0
      %v808 = vsel %vm632, %v599, 0
      %v811 = vsel %vm632, %v600, 0
      %v814 = vsel %vm632, %v601, 0
      %v817 = vsel %vm632, %v602, 0
      %v820 = vsel %vm632, %v603, 0
      %v823 = vsel %vm632, %v604, 0
      %vm825 = vcmask 1043456
      %v827 = vsel %vm825, %v627, 0
      %829 = vmatprep.subr.bf16.mxu0 0
      %830 = vmatpush1.bf16.msra.mxu0 0
      %831 = vmatprep.subr.bf16.mxu0 0
      %832 = vmatpush1.bf16.msra.mxu0 0
      %833 = vmatprep.subr.bf16.mxu0 0
      %834 = vmatpush1.bf16.msra.mxu0 0
      %835 = vmatprep.subr.bf16.mxu0 0
      %836 = vmatpush1.bf16.msra.mxu0 %v827
      %837 = vmatprep.subr.bf16.mxu0 0
      %838 = vmatpush1.bf16.msra.mxu0 %v626
      %839 = vmatprep.subr.bf16.mxu0 0
      %840 = vmatpush1.bf16.msra.mxu0 %v625
      %841 = vmatprep.subr.bf16.mxu0 0
      %842 = vmatpush1.bf16.msra.mxu0 %v624
      %843 = vmatprep.subr.bf16.mxu0 0
      %844 = vmatpush1.bf16.msra.mxu0 %v623
      %845 = vmatprep.subr.bf16.mxu0 0
      %846 = vmatpush2.bf16.msra.mxu0 0
      %847 = vmatprep.subr.bf16.mxu0 0
      %848 = vmatpush2.bf16.msra.mxu0 0
      %849 = vmatprep.subr.bf16.mxu0 0
      %850 = vmatpush2.bf16.msra.mxu0 0
      %851 = vmatprep.subr.bf16.mxu0 0
      %852 = vmatpush2.bf16.msra.mxu0 0
      %853 = vmatprep.subr.bf16.mxu0 0
      %854 = vmatpush2.bf16.msra.mxu0 0
      %855 = vmatprep.subr.bf16.mxu0 0
      %856 = vmatpush2.bf16.msra.mxu0 0
      %857 = vmatprep.subr.bf16.mxu0 0
      %858 = vmatpush2.bf16.msra.mxu0 0
      %859 = vmatprep.subr.bf16.mxu0 0
      %860 = vmatpush2.bf16.msra.mxu0 0
      %861 = vmatprep.mubr.bf16.mxu0 0
      %862 = vmatmul.mubr.bf16.gmra.mxu0 %v634
      %v863 = vpop.f32.mrf.mxu0
      %v864 = vadd.f32 0.0, %v863
      %v865 = vpop.f32.mrf.mxu0
      %v866 = vpop.f32.mrf.mxu0
      %v867 = vadd.f32 0.0, %v866
      %v868 = vpop.f32.mrf.mxu0
      %869 = vmatprep.mubr.bf16.mxu0 0
      %870 = vmatmul.mubr.bf16.gmra.mxu0 %v637
      %v871 = vpop.f32.mrf.mxu0
      %v872 = vadd.f32 0.0, %v871
      %v873 = vpop.f32.mrf.mxu0
      %v874 = vpop.f32.mrf.mxu0
      %v875 = vadd.f32 0.0, %v874
      %v876 = vpop.f32.mrf.mxu0
      %877 = vmatprep.mubr.bf16.mxu0 0
      %878 = vmatmul.mubr.bf16.gmra.mxu0 %v640
      %v879 = vpop.f32.mrf.mxu0
      %v880 = vadd.f32 0.0, %v879
      %v881 = vpop.f32.mrf.mxu0
      %v882 = vpop.f32.mrf.mxu0
      %v883 = vadd.f32 0.0, %v882
      %v884 = vpop.f32.mrf.mxu0
      %885 = vmatprep.mubr.bf16.mxu0 0
      %886 = vmatmul.mubr.bf16.gmra.mxu0 %v643
      %v887 = vpop.f32.mrf.mxu0
      %v888 = vadd.f32 0.0, %v887
      %v889 = vpop.f32.mrf.mxu0
      %v890 = vpop.f32.mrf.mxu0
      %v891 = vadd.f32 0.0, %v890
      %v892 = vpop.f32.mrf.mxu0
      %893 = vmatprep.mubr.bf16.mxu0 0
      %894 = vmatmul.mubr.bf16.gmra.mxu0 %v646
      %v895 = vpop.f32.mrf.mxu0
      %v896 = vadd.f32 0.0, %v895
      %v897 = vpop.f32.mrf.mxu0
      %v898 = vpop.f32.mrf.mxu0
      %v899 = vadd.f32 0.0, %v898
      %v900 = vpop.f32.mrf.mxu0
      %901 = vmatprep.mubr.bf16.mxu0 0
      %902 = vmatmul.mubr.bf16.gmra.mxu0 %v649
      %v903 = vpop.f32.mrf.mxu0
      %v904 = vadd.f32 0.0, %v903
      %v905 = vpop.f32.mrf.mxu0
      %v906 = vpop.f32.mrf.mxu0
      %v907 = vadd.f32 0.0, %v906
      %v908 = vpop.f32.mrf.mxu0
      %909 = vmatprep.mubr.bf16.mxu0 0
      %910 = vmatmul.mubr.bf16.gmra.mxu0 %v652
      %v911 = vpop.f32.mrf.mxu0
      %v912 = vadd.f32 0.0, %v911
      %v913 = vpop.f32.mrf.mxu0
      %v914 = vpop.f32.mrf.mxu0
      %v915 = vadd.f32 0.0, %v914
      %v916 = vpop.f32.mrf.mxu0
      %917 = vmatprep.mubr.bf16.mxu0 0
      %918 = vmatmul.mubr.bf16.gmra.mxu0 %v655
      %v919 = vpop.f32.mrf.mxu0
      %v920 = vadd.f32 0.0, %v919
      %v921 = vpop.f32.mrf.mxu0
      %v922 = vpop.f32.mrf.mxu0
      %v923 = vadd.f32 0.0, %v922
      %v924 = vpop.f32.mrf.mxu0
      %925 = vmatprep.mubr.bf16.mxu0 0
      %926 = vmatmul.mubr.bf16.gmra.mxu0 %v658
      %v927 = vpop.f32.mrf.mxu0
      %v928 = vadd.f32 0.0, %v927
      %v929 = vpop.f32.mrf.mxu0
      %v930 = vpop.f32.mrf.mxu0
      %v931 = vadd.f32 0.0, %v930
      %v932 = vpop.f32.mrf.mxu0
      %933 = vmatprep.mubr.bf16.mxu0 0
      %934 = vmatmul.mubr.bf16.gmra.mxu0 %v661
      %v935 = vpop.f32.mrf.mxu0
      %v936 = vadd.f32 0.0, %v935
      %v937 = vpop.f32.mrf.mxu0
      %v938 = vpop.f32.mrf.mxu0
      %v939 = vadd.f32 0.0, %v938
      %v940 = vpop.f32.mrf.mxu0
      %941 = vmatprep.mubr.bf16.mxu0 0
      %942 = vmatmul.mubr.bf16.gmra.mxu0 %v664
      %v943 = vpop.f32.mrf.mxu0
      %v944 = vadd.f32 0.0, %v943
      %v945 = vpop.f32.mrf.mxu0
      %v946 = vpop.f32.mrf.mxu0
      %v947 = vadd.f32 0.0, %v946
      %v948 = vpop.f32.mrf.mxu0
      %949 = vmatprep.mubr.bf16.mxu0 0
      %950 = vmatmul.mubr.bf16.gmra.mxu0 %v667
      %v951 = vpop.f32.mrf.mxu0
      %v952 = vadd.f32 0.0, %v951
      %v953 = vpop.f32.mrf.mxu0
      %v954 = vpop.f32.mrf.mxu0
      %v955 = vadd.f32 0.0, %v954
      %v956 = vpop.f32.mrf.mxu0
      %957 = vmatprep.mubr.bf16.mxu0 0
      %958 = vmatmul.mubr.bf16.gmra.mxu0 %v670
      %v959 = vpop.f32.mrf.mxu0
      %v960 = vadd.f32 0.0, %v959
      %v961 = vpop.f32.mrf.mxu0
      %v962 = vpop.f32.mrf.mxu0
      %v963 = vadd.f32 0.0, %v962
      %v964 = vpop.f32.mrf.mxu0
      %965 = vmatprep.mubr.bf16.mxu0 0
      %966 = vmatmul.mubr.bf16.gmra.mxu0 %v673
      %v967 = vpop.f32.mrf.mxu0
      %v968 = vadd.f32 0.0, %v967
      %v969 = vpop.f32.mrf.mxu0
      %v970 = vpop.f32.mrf.mxu0
      %v971 = vadd.f32 0.0, %v970
      %v972 = vpop.f32.mrf.mxu0
      %973 = vmatprep.mubr.bf16.mxu0 0
      %974 = vmatmul.mubr.bf16.gmra.mxu0 %v676
      %v975 = vpop.f32.mrf.mxu0
      %v976 = vadd.f32 0.0, %v975
      %v977 = vpop.f32.mrf.mxu0
      %v978 = vpop.f32.mrf.mxu0
      %v979 = vadd.f32 0.0, %v978
      %v980 = vpop.f32.mrf.mxu0
      %981 = vmatprep.mubr.bf16.mxu0 0
      %982 = vmatmul.mubr.bf16.gmra.mxu0 %v679
      %v983 = vpop.f32.mrf.mxu0
      %v984 = vadd.f32 0.0, %v983
      %v985 = vpop.f32.mrf.mxu0
      %v986 = vpop.f32.mrf.mxu0
      %v987 = vadd.f32 0.0, %v986
      %v988 = vpop.f32.mrf.mxu0
      %989 = vmatprep.mubr.bf16.mxu0 0
      %990 = vmatmul.mubr.bf16.gmra.mxu0 %v682
      %v991 = vpop.f32.mrf.mxu0
      %v992 = vadd.f32 0.0, %v991
      %v993 = vpop.f32.mrf.mxu0
      %v994 = vpop.f32.mrf.mxu0
      %v995 = vadd.f32 0.0, %v994
      %v996 = vpop.f32.mrf.mxu0
      %997 = vmatprep.mubr.bf16.mxu0 0
      %998 = vmatmul.mubr.bf16.gmra.mxu0 %v685
      %v999 = vpop.f32.mrf.mxu0
      %v1000 = vadd.f32 0.0, %v999
      %v1001 = vpop.f32.mrf.mxu0
      %v1002 = vpop.f32.mrf.mxu0
      %v1003 = vadd.f32 0.0, %v1002
      %v1004 = vpop.f32.mrf.mxu0
      %1005 = vmatprep.mubr.bf16.mxu0 0
      %1006 = vmatmul.mubr.bf16.gmra.mxu0 %v688
      %v1007 = vpop.f32.mrf.mxu0
      %v1008 = vadd.f32 0.0, %v1007
      %v1009 = vpop.f32.mrf.mxu0
      %v1010 = vpop.f32.mrf.mxu0
      %v1011 = vadd.f32 0.0, %v1010
      %v1012 = vpop.f32.mrf.mxu0
      %1013 = vmatprep.mubr.bf16.mxu0 0
      %1014 = vmatmul.mubr.bf16.gmra.mxu0 %v691
      %v1015 = vpop.f32.mrf.mxu0
      %v1016 = vadd.f32 0.0, %v1015
      %v1017 = vpop.f32.mrf.mxu0
      %v1018 = vpop.f32.mrf.mxu0
      %v1019 = vadd.f32 0.0, %v1018
      %v1020 = vpop.f32.mrf.mxu0
      %1021 = vmatprep.mubr.bf16.mxu0 0
      %1022 = vmatmul.mubr.bf16.gmra.mxu0 %v694
      %v1023 = vpop.f32.mrf.mxu0
      %v1024 = vadd.f32 0.0, %v1023
      %v1025 = vpop.f32.mrf.mxu0
      %v1026 = vpop.f32.mrf.mxu0
      %v1027 = vadd.f32 0.0, %v1026
      %v1028 = vpop.f32.mrf.mxu0
      %1029 = vmatprep.mubr.bf16.mxu0 0
      %1030 = vmatmul.mubr.bf16.gmra.mxu0 %v697
      %v1031 = vpop.f32.mrf.mxu0
      %v1032 = vadd.f32 0.0, %v1031
      %v1033 = vpop.f32.mrf.mxu0
      %v1034 = vpop.f32.mrf.mxu0
      %v1035 = vadd.f32 0.0, %v1034
      %v1036 = vpop.f32.mrf.mxu0
      %1037 = vmatprep.mubr.bf16.mxu0 0
      %1038 = vmatmul.mubr.bf16.gmra.mxu0 %v700
      %v1039 = vpop.f32.mrf.mxu0
      %v1040 = vadd.f32 0.0, %v1039
      %v1041 = vpop.f32.mrf.mxu0
      %v1042 = vpop.f32.mrf.mxu0
      %v1043 = vadd.f32 0.0, %v1042
      %v1044 = vpop.f32.mrf.mxu0
      %1045 = vmatprep.mubr.bf16.mxu0 0
      %1046 = vmatmul.mubr.bf16.gmra.mxu0 %v703
      %v1047 = vpop.f32.mrf.mxu0
      %v1048 = vadd.f32 0.0, %v1047
      %v1049 = vpop.f32.mrf.mxu0
      %v1050 = vpop.f32.mrf.mxu0
      %v1051 = vadd.f32 0.0, %v1050
      %v1052 = vpop.f32.mrf.mxu0
      %1053 = vmatprep.mubr.bf16.mxu0 0
      %1054 = vmatmul.mubr.bf16.gmra.mxu0 %v706
      %v1055 = vpop.f32.mrf.mxu0
      %v1056 = vadd.f32 0.0, %v1055
      %v1057 = vpop.f32.mrf.mxu0
      %v1058 = vpop.f32.mrf.mxu0
      %v1059 = vadd.f32 0.0, %v1058
      %v1060 = vpop.f32.mrf.mxu0
      %1061 = vmatprep.mubr.bf16.mxu0 0
      %1062 = vmatmul.mubr.bf16.gmra.mxu0 %v709
      %v1063 = vpop.f32.mrf.mxu0
      %v1064 = vadd.f32 0.0, %v1063
      %v1065 = vpop.f32.mrf.mxu0
      %v1066 = vpop.f32.mrf.mxu0
      %v1067 = vadd.f32 0.0, %v1066
      %v1068 = vpop.f32.mrf.mxu0
      %1069 = vmatprep.mubr.bf16.mxu0 0
      %1070 = vmatmul.mubr.bf16.gmra.mxu0 %v712
      %v1071 = vpop.f32.mrf.mxu0
      %v1072 = vadd.f32 0.0, %v1071
      %v1073 = vpop.f32.mrf.mxu0
      %v1074 = vpop.f32.mrf.mxu0
      %v1075 = vadd.f32 0.0, %v1074
      %v1076 = vpop.f32.mrf.mxu0
      %1077 = vmatprep.mubr.bf16.mxu0 0
      %1078 = vmatmul.mubr.bf16.gmra.mxu0 %v715
      %v1079 = vpop.f32.mrf.mxu0
      %v1080 = vadd.f32 0.0, %v1079
      %v1081 = vpop.f32.mrf.mxu0
      %v1082 = vpop.f32.mrf.mxu0
      %v1083 = vadd.f32 0.0, %v1082
      %v1084 = vpop.f32.mrf.mxu0
      %1085 = vmatprep.mubr.bf16.mxu0 0
      %1086 = vmatmul.mubr.bf16.gmra.mxu0 %v718
      %v1087 = vpop.f32.mrf.mxu0
      %v1088 = vadd.f32 0.0, %v1087
      %v1089 = vpop.f32.mrf.mxu0
      %v1090 = vpop.f32.mrf.mxu0
      %v1091 = vadd.f32 0.0, %v1090
      %v1092 = vpop.f32.mrf.mxu0
      %1093 = vmatprep.mubr.bf16.mxu0 0
      %1094 = vmatmul.mubr.bf16.gmra.mxu0 %v721
      %v1095 = vpop.f32.mrf.mxu0
      %v1096 = vadd.f32 0.0, %v1095
      %v1097 = vpop.f32.mrf.mxu0
      %v1098 = vpop.f32.mrf.mxu0
      %v1099 = vadd.f32 0.0, %v1098
      %v1100 = vpop.f32.mrf.mxu0
      %1101 = vmatprep.mubr.bf16.mxu0 0
      %1102 = vmatmul.mubr.bf16.gmra.mxu0 %v724
      %v1103 = vpop.f32.mrf.mxu0
      %v1104 = vadd.f32 0.0, %v1103
      %v1105 = vpop.f32.mrf.mxu0
      %v1106 = vpop.f32.mrf.mxu0
      %v1107 = vadd.f32 0.0, %v1106
      %v1108 = vpop.f32.mrf.mxu0
      %1109 = vmatprep.mubr.bf16.mxu0 0
      %1110 = vmatmul.mubr.bf16.gmra.mxu0 %v727
      %v1111 = vpop.f32.mrf.mxu0
      %v1112 = vadd.f32 0.0, %v1111
      %v1113 = vpop.f32.mrf.mxu0
      %v1114 = vpop.f32.mrf.mxu0
      %v1115 = vadd.f32 0.0, %v1114
      %v1116 = vpop.f32.mrf.mxu0
      %1117 = vmatprep.mubr.bf16.mxu0 0
      %1118 = vmatmul.mubr.bf16.gmra.mxu0 %v730
      %v1119 = vpop.f32.mrf.mxu0
      %v1120 = vadd.f32 0.0, %v1119
      %v1121 = vpop.f32.mrf.mxu0
      %v1122 = vpop.f32.mrf.mxu0
      %v1123 = vadd.f32 0.0, %v1122
      %v1124 = vpop.f32.mrf.mxu0
      %1125 = vmatprep.mubr.bf16.mxu0 0
      %1126 = vmatmul.mubr.bf16.gmra.mxu0 %v733
      %v1127 = vpop.f32.mrf.mxu0
      %v1128 = vadd.f32 0.0, %v1127
      %v1129 = vpop.f32.mrf.mxu0
      %v1130 = vpop.f32.mrf.mxu0
      %v1131 = vadd.f32 0.0, %v1130
      %v1132 = vpop.f32.mrf.mxu0
      %1133 = vmatprep.mubr.bf16.mxu0 0
      %1134 = vmatmul.mubr.bf16.gmra.mxu0 %v736
      %v1135 = vpop.f32.mrf.mxu0
      %v1136 = vadd.f32 0.0, %v1135
      %v1137 = vpop.f32.mrf.mxu0
      %v1138 = vpop.f32.mrf.mxu0
      %v1139 = vadd.f32 0.0, %v1138
      %v1140 = vpop.f32.mrf.mxu0
      %1141 = vmatprep.mubr.bf16.mxu0 0
      %1142 = vmatmul.mubr.bf16.gmra.mxu0 %v739
      %v1143 = vpop.f32.mrf.mxu0
      %v1144 = vadd.f32 0.0, %v1143
      %v1145 = vpop.f32.mrf.mxu0
      %v1146 = vpop.f32.mrf.mxu0
      %v1147 = vadd.f32 0.0, %v1146
      %v1148 = vpop.f32.mrf.mxu0
      %1149 = vmatprep.mubr.bf16.mxu0 0
      %1150 = vmatmul.mubr.bf16.gmra.mxu0 %v742
      %v1151 = vpop.f32.mrf.mxu0
      %v1152 = vadd.f32 0.0, %v1151
      %v1153 = vpop.f32.mrf.mxu0
      %v1154 = vpop.f32.mrf.mxu0
      %v1155 = vadd.f32 0.0, %v1154
      %v1156 = vpop.f32.mrf.mxu0
      %1157 = vmatprep.mubr.bf16.mxu0 0
      %1158 = vmatmul.mubr.bf16.gmra.mxu0 %v745
      %v1159 = vpop.f32.mrf.mxu0
      %v1160 = vadd.f32 0.0, %v1159
      %v1161 = vpop.f32.mrf.mxu0
      %v1162 = vpop.f32.mrf.mxu0
      %v1163 = vadd.f32 0.0, %v1162
      %v1164 = vpop.f32.mrf.mxu0
      %1165 = vmatprep.mubr.bf16.mxu0 0
      %1166 = vmatmul.mubr.bf16.gmra.mxu0 %v748
      %v1167 = vpop.f32.mrf.mxu0
      %v1168 = vadd.f32 0.0, %v1167
      %v1169 = vpop.f32.mrf.mxu0
      %v1170 = vpop.f32.mrf.mxu0
      %v1171 = vadd.f32 0.0, %v1170
      %v1172 = vpop.f32.mrf.mxu0
      %1173 = vmatprep.mubr.bf16.mxu0 0
      %1174 = vmatmul.mubr.bf16.gmra.mxu0 %v751
      %v1175 = vpop.f32.mrf.mxu0
      %v1176 = vadd.f32 0.0, %v1175
      %v1177 = vpop.f32.mrf.mxu0
      %v1178 = vpop.f32.mrf.mxu0
      %v1179 = vadd.f32 0.0, %v1178
      %v1180 = vpop.f32.mrf.mxu0
      %1181 = vmatprep.mubr.bf16.mxu0 0
      %1182 = vmatmul.mubr.bf16.gmra.mxu0 %v754
      %v1183 = vpop.f32.mrf.mxu0
      %v1184 = vadd.f32 0.0, %v1183
      %v1185 = vpop.f32.mrf.mxu0
      %v1186 = vpop.f32.mrf.mxu0
      %v1187 = vadd.f32 0.0, %v1186
      %v1188 = vpop.f32.mrf.mxu0
      %1189 = vmatprep.mubr.bf16.mxu0 0
      %1190 = vmatmul.mubr.bf16.gmra.mxu0 %v757
      %v1191 = vpop.f32.mrf.mxu0
      %v1192 = vadd.f32 0.0, %v1191
      %v1193 = vpop.f32.mrf.mxu0
      %v1194 = vpop.f32.mrf.mxu0
      %v1195 = vadd.f32 0.0, %v1194
      %v1196 = vpop.f32.mrf.mxu0
      %1197 = vmatprep.mubr.bf16.mxu0 0
      %1198 = vmatmul.mubr.bf16.gmra.mxu0 %v760
      %v1199 = vpop.f32.mrf.mxu0
      %v1200 = vadd.f32 0.0, %v1199
      %v1201 = vpop.f32.mrf.mxu0
      %v1202 = vpop.f32.mrf.mxu0
      %v1203 = vadd.f32 0.0, %v1202
      %v1204 = vpop.f32.mrf.mxu0
      %1205 = vmatprep.mubr.bf16.mxu0 0
      %1206 = vmatmul.mubr.bf16.gmra.mxu0 %v763
      %v1207 = vpop.f32.mrf.mxu0
      %v1208 = vadd.f32 0.0, %v1207
      %v1209 = vpop.f32.mrf.mxu0
      %v1210 = vpop.f32.mrf.mxu0
      %v1211 = vadd.f32 0.0, %v1210
      %v1212 = vpop.f32.mrf.mxu0
      %1213 = vmatprep.mubr.bf16.mxu0 0
      %1214 = vmatmul.mubr.bf16.gmra.mxu0 %v766
      %v1215 = vpop.f32.mrf.mxu0
      %v1216 = vadd.f32 0.0, %v1215
      %v1217 = vpop.f32.mrf.mxu0
      %v1218 = vpop.f32.mrf.mxu0
      %v1219 = vadd.f32 0.0, %v1218
      %v1220 = vpop.f32.mrf.mxu0
      %1221 = vmatprep.mubr.bf16.mxu0 0
      %1222 = vmatmul.mubr.bf16.gmra.mxu0 %v769
      %v1223 = vpop.f32.mrf.mxu0
      %v1224 = vadd.f32 0.0, %v1223
      %v1225 = vpop.f32.mrf.mxu0
      %v1226 = vpop.f32.mrf.mxu0
      %v1227 = vadd.f32 0.0, %v1226
      %v1228 = vpop.f32.mrf.mxu0
      %1229 = vmatprep.mubr.bf16.mxu0 0
      %1230 = vmatmul.mubr.bf16.gmra.mxu0 %v772
      %v1231 = vpop.f32.mrf.mxu0
      %v1232 = vadd.f32 0.0, %v1231
      %v1233 = vpop.f32.mrf.mxu0
      %v1234 = vpop.f32.mrf.mxu0
      %v1235 = vadd.f32 0.0, %v1234
      %v1236 = vpop.f32.mrf.mxu0
      %1237 = vmatprep.mubr.bf16.mxu0 0
      %1238 = vmatmul.mubr.bf16.gmra.mxu0 %v775
      %v1239 = vpop.f32.mrf.mxu0
      %v1240 = vadd.f32 0.0, %v1239
      %v1241 = vpop.f32.mrf.mxu0
      %v1242 = vpop.f32.mrf.mxu0
      %v1243 = vadd.f32 0.0, %v1242
      %v1244 = vpop.f32.mrf.mxu0
      %1245 = vmatprep.mubr.bf16.mxu0 0
      %1246 = vmatmul.mubr.bf16.gmra.mxu0 %v778
      %v1247 = vpop.f32.mrf.mxu0
      %v1248 = vadd.f32 0.0, %v1247
      %v1249 = vpop.f32.mrf.mxu0
      %v1250 = vpop.f32.mrf.mxu0
      %v1251 = vadd.f32 0.0, %v1250
      %v1252 = vpop.f32.mrf.mxu0
      %1253 = vmatprep.mubr.bf16.mxu0 0
      %1254 = vmatmul.mubr.bf16.gmra.mxu0 %v781
      %v1255 = vpop.f32.mrf.mxu0
      %v1256 = vadd.f32 0.0, %v1255
      %v1257 = vpop.f32.mrf.mxu0
      %v1258 = vpop.f32.mrf.mxu0
      %v1259 = vadd.f32 0.0, %v1258
      %v1260 = vpop.f32.mrf.mxu0
      %1261 = vmatprep.mubr.bf16.mxu0 0
      %1262 = vmatmul.mubr.bf16.gmra.mxu0 %v784
      %v1263 = vpop.f32.mrf.mxu0
      %v1264 = vadd.f32 0.0, %v1263
      %v1265 = vpop.f32.mrf.mxu0
      %v1266 = vpop.f32.mrf.mxu0
      %v1267 = vadd.f32 0.0, %v1266
      %v1268 = vpop.f32.mrf.mxu0
      %1269 = vmatprep.mubr.bf16.mxu0 0
      %1270 = vmatmul.mubr.bf16.gmra.mxu0 %v787
      %v1271 = vpop.f32.mrf.mxu0
      %v1272 = vadd.f32 0.0, %v1271
      %v1273 = vpop.f32.mrf.mxu0
      %v1274 = vpop.f32.mrf.mxu0
      %v1275 = vadd.f32 0.0, %v1274
      %v1276 = vpop.f32.mrf.mxu0
      %1277 = vmatprep.mubr.bf16.mxu0 0
      %1278 = vmatmul.mubr.bf16.gmra.mxu0 %v790
      %v1279 = vpop.f32.mrf.mxu0
      %v1280 = vadd.f32 0.0, %v1279
      %v1281 = vpop.f32.mrf.mxu0
      %v1282 = vpop.f32.mrf.mxu0
      %v1283 = vadd.f32 0.0, %v1282
      %v1284 = vpop.f32.mrf.mxu0
      %1285 = vmatprep.mubr.bf16.mxu0 0
      %1286 = vmatmul.mubr.bf16.gmra.mxu0 %v793
      %v1287 = vpop.f32.mrf.mxu0
      %v1288 = vadd.f32 0.0, %v1287
      %v1289 = vpop.f32.mrf.mxu0
      %v1290 = vpop.f32.mrf.mxu0
      %v1291 = vadd.f32 0.0, %v1290
      %v1292 = vpop.f32.mrf.mxu0
      %1293 = vmatprep.mubr.bf16.mxu0 0
      %1294 = vmatmul.mubr.bf16.gmra.mxu0 %v796
      %v1295 = vpop.f32.mrf.mxu0
      %v1296 = vadd.f32 0.0, %v1295
      %v1297 = vpop.f32.mrf.mxu0
      %v1298 = vpop.f32.mrf.mxu0
      %v1299 = vadd.f32 0.0, %v1298
      %v1300 = vpop.f32.mrf.mxu0
      %1301 = vmatprep.mubr.bf16.mxu0 0
      %1302 = vmatmul.mubr.bf16.gmra.mxu0 %v799
      %v1303 = vpop.f32.mrf.mxu0
      %v1304 = vadd.f32 0.0, %v1303
      %v1305 = vpop.f32.mrf.mxu0
      %v1306 = vpop.f32.mrf.mxu0
      %v1307 = vadd.f32 0.0, %v1306
      %v1308 = vpop.f32.mrf.mxu0
      %1309 = vmatprep.mubr.bf16.mxu0 0
      %1310 = vmatmul.mubr.bf16.gmra.mxu0 %v802
      %v1311 = vpop.f32.mrf.mxu0
      %v1312 = vadd.f32 0.0, %v1311
      %v1313 = vpop.f32.mrf.mxu0
      %v1314 = vpop.f32.mrf.mxu0
      %v1315 = vadd.f32 0.0, %v1314
      %v1316 = vpop.f32.mrf.mxu0
      %1317 = vmatprep.mubr.bf16.mxu0 0
      %1318 = vmatmul.mubr.bf16.gmra.mxu0 %v805
      %v1319 = vpop.f32.mrf.mxu0
      %v1320 = vadd.f32 0.0, %v1319
      %v1321 = vpop.f32.mrf.mxu0
      %v1322 = vpop.f32.mrf.mxu0
      %v1323 = vadd.f32 0.0, %v1322
      %v1324 = vpop.f32.mrf.mxu0
      %1325 = vmatprep.mubr.bf16.mxu0 0
      %1326 = vmatmul.mubr.bf16.gmra.mxu0 %v808
      %v1327 = vpop.f32.mrf.mxu0
      %v1328 = vadd.f32 0.0, %v1327
      %v1329 = vpop.f32.mrf.mxu0
      %v1330 = vpop.f32.mrf.mxu0
      %v1331 = vadd.f32 0.0, %v1330
      %v1332 = vpop.f32.mrf.mxu0
      %1333 = vmatprep.mubr.bf16.mxu0 0
      %1334 = vmatmul.mubr.bf16.gmra.mxu0 %v811
      %v1335 = vpop.f32.mrf.mxu0
      %v1336 = vadd.f32 0.0, %v1335
      %v1337 = vpop.f32.mrf.mxu0
      %v1338 = vpop.f32.mrf.mxu0
      %v1339 = vadd.f32 0.0, %v1338
      %v1340 = vpop.f32.mrf.mxu0
      %1341 = vmatprep.mubr.bf16.mxu0 0
      %1342 = vmatmul.mubr.bf16.gmra.mxu0 %v814
      %v1343 = vpop.f32.mrf.mxu0
      %v1344 = vadd.f32 0.0, %v1343
      %v1345 = vpop.f32.mrf.mxu0
      %v1346 = vpop.f32.mrf.mxu0
      %v1347 = vadd.f32 0.0, %v1346
      %v1348 = vpop.f32.mrf.mxu0
      %1349 = vmatprep.mubr.bf16.mxu0 0
      %1350 = vmatmul.mubr.bf16.gmra.mxu0 %v817
      %v1351 = vpop.f32.mrf.mxu0
      %v1352 = vadd.f32 0.0, %v1351
      %v1353 = vpop.f32.mrf.mxu0
      %v1354 = vpop.f32.mrf.mxu0
      %v1355 = vadd.f32 0.0, %v1354
      %v1356 = vpop.f32.mrf.mxu0
      %1357 = vmatprep.mubr.bf16.mxu0 0
      %1358 = vmatmul.mubr.bf16.gmra.mxu0 %v820
      %v1359 = vpop.f32.mrf.mxu0
      %v1360 = vadd.f32 0.0, %v1359
      %v1361 = vpop.f32.mrf.mxu0
      %v1362 = vpop.f32.mrf.mxu0
      %v1363 = vadd.f32 0.0, %v1362
      %v1364 = vpop.f32.mrf.mxu0
      %1365 = vmatprep.mubr.bf16.mxu0 0
      %1366 = vmatmul.mubr.bf16.gmra.mxu0 %v823
      %v1367 = vpop.f32.mrf.mxu0
      %v1368 = vadd.f32 0.0, %v1367
      %v1369 = vpop.f32.mrf.mxu0
      %v1370 = vpop.f32.mrf.mxu0
      %v1371 = vadd.f32 0.0, %v1370
      %v1372 = vpop.f32.mrf.mxu0
      %1373 = vdwg.mxu0
      %v1374 = vtanh.pop %v864
      %v1375 = vtanh.pop %v867
      %v1376 = vtanh.pop %v872
      %v1377 = vtanh.pop %v875
      %v1378 = vtanh.pop %v880
      %v1379 = vtanh.pop %v883
      %v1380 = vtanh.pop %v888
      %v1381 = vtanh.pop %v891
      %v1382 = vtanh.pop %v896
      %v1383 = vtanh.pop %v899
      %v1384 = vtanh.pop %v904
      %v1385 = vtanh.pop %v907
      %v1386 = vtanh.pop %v912
      %v1387 = vtanh.pop %v915
      %v1388 = vtanh.pop %v920
      %v1389 = vtanh.pop %v923
      %v1390 = vtanh.pop %v928
      %v1391 = vtanh.pop %v931
      %v1392 = vtanh.pop %v936
      %v1393 = vtanh.pop %v939
      %v1394 = vtanh.pop %v944
      %v1395 = vtanh.pop %v947
      %v1396 = vtanh.pop %v952
      %v1397 = vtanh.pop %v955
      %v1398 = vtanh.pop %v960
      %v1399 = vtanh.pop %v963
      %v1400 = vtanh.pop %v968
      %v1401 = vtanh.pop %v971
      %v1402 = vtanh.pop %v976
      %v1403 = vtanh.pop %v979
      %v1404 = vtanh.pop %v984
      %v1405 = vtanh.pop %v987
      %v1406 = vtanh.pop %v992
      %v1407 = vtanh.pop %v995
      %v1408 = vtanh.pop %v1000
      %v1409 = vtanh.pop %v1003
      %v1410 = vtanh.pop %v1008
      %v1411 = vtanh.pop %v1011
      %v1412 = vtanh.pop %v1016
      %v1413 = vtanh.pop %v1019
      %v1414 = vtanh.pop %v1024
      %v1415 = vtanh.pop %v1027
      %v1416 = vtanh.pop %v1032
      %v1417 = vtanh.pop %v1035
      %v1418 = vtanh.pop %v1040
      %v1419 = vtanh.pop %v1043
      %v1420 = vtanh.pop %v1048
      %v1421 = vtanh.pop %v1051
      %v1422 = vtanh.pop %v1056
      %v1423 = vtanh.pop %v1059
      %v1424 = vtanh.pop %v1064
      %v1425 = vtanh.pop %v1067
      %v1426 = vtanh.pop %v1072
      %v1427 = vtanh.pop %v1075
      %v1428 = vtanh.pop %v1080
      %v1429 = vtanh.pop %v1083
      %v1430 = vtanh.pop %v1088
      %v1431 = vtanh.pop %v1091
      %v1432 = vtanh.pop %v1096
      %v1433 = vtanh.pop %v1099
      %v1434 = vtanh.pop %v1104
      %v1435 = vtanh.pop %v1107
      %v1436 = vtanh.pop %v1112
      %v1437 = vtanh.pop %v1115
      %v1438 = vtanh.pop %v1120
      %v1439 = vtanh.pop %v1123
      %v1440 = vtanh.pop %v1128
      %v1441 = vtanh.pop %v1131
      %v1442 = vtanh.pop %v1136
      %v1443 = vtanh.pop %v1139
      %v1444 = vtanh.pop %v1144
      %v1445 = vtanh.pop %v1147
      %v1446 = vtanh.pop %v1152
      %v1447 = vtanh.pop %v1155
      %v1448 = vtanh.pop %v1160
      %v1449 = vtanh.pop %v1163
      %v1450 = vtanh.pop %v1168
      %v1451 = vtanh.pop %v1171
      %v1452 = vtanh.pop %v1176
      %v1453 = vtanh.pop %v1179
      %v1454 = vtanh.pop %v1184
      %v1455 = vtanh.pop %v1187
      %v1456 = vtanh.pop %v1192
      %v1457 = vtanh.pop %v1195
      %v1458 = vtanh.pop %v1200
      %v1459 = vtanh.pop %v1203
      %v1460 = vtanh.pop %v1208
      %v1461 = vtanh.pop %v1211
      %v1462 = vtanh.pop %v1216
      %v1463 = vtanh.pop %v1219
      %v1464 = vtanh.pop %v1224
      %v1465 = vtanh.pop %v1227
      %v1466 = vtanh.pop %v1232
      %v1467 = vtanh.pop %v1235
      %v1468 = vtanh.pop %v1240
      %v1469 = vtanh.pop %v1243
      %v1470 = vtanh.pop %v1248
      %v1471 = vtanh.pop %v1251
      %v1472 = vtanh.pop %v1256
      %v1473 = vtanh.pop %v1259
      %v1474 = vtanh.pop %v1264
      %v1475 = vtanh.pop %v1267
      %v1476 = vtanh.pop %v1272
      %v1477 = vtanh.pop %v1275
      %v1478 = vtanh.pop %v1280
      %v1479 = vtanh.pop %v1283
      %v1480 = vtanh.pop %v1288
      %v1481 = vtanh.pop %v1291
      %v1482 = vtanh.pop %v1296
      %v1483 = vtanh.pop %v1299
      %v1484 = vtanh.pop %v1304
      %v1485 = vtanh.pop %v1307
      %v1486 = vtanh.pop %v1312
      %v1487 = vtanh.pop %v1315
      %v1488 = vtanh.pop %v1320
      %v1489 = vtanh.pop %v1323
      %v1490 = vtanh.pop %v1328
      %v1491 = vtanh.pop %v1331
      %v1492 = vtanh.pop %v1336
      %v1493 = vtanh.pop %v1339
      %v1494 = vtanh.pop %v1344
      %v1495 = vtanh.pop %v1347
      %v1496 = vtanh.pop %v1352
      %v1497 = vtanh.pop %v1355
      %v1498 = vtanh.pop %v1360
      %v1499 = vtanh.pop %v1363
      %v1500 = vtanh.pop %v1368
      %v1501 = vtanh.pop %v1371
      %1502 = vst [vmem:[%s145] sm:$0xff] %v1374
      %1503 = vst [vmem:[%s145 + $0x8] sm:$0xff] %v1375
      %1504 = vst [vmem:[%s145 + $0x10] sm:$0xff] %v1376
      %1505 = vst [vmem:[%s145 + $0x18] sm:$0xff] %v1377
      %1506 = vst [vmem:[%s145 + $0x20] sm:$0xff] %v1378
      %1507 = vst [vmem:[%s145 + $0x28] sm:$0xff] %v1379
      %1508 = vst [vmem:[%s145 + $0x30] sm:$0xff] %v1380
      %1509 = vst [vmem:[%s145 + $0x38] sm:$0xff] %v1381
      %1510 = vst [vmem:[%s145 + $0x40] sm:$0xff] %v1382
      %1511 = vst [vmem:[%s145 + $0x48] sm:$0xff] %v1383
      %1512 = vst [vmem:[%s145 + $0x50] sm:$0xff] %v1384
      %1513 = vst [vmem:[%s145 + $0x58] sm:$0xff] %v1385
      %1514 = vst [vmem:[%s145 + $0x60] sm:$0xff] %v1386
      %1515 = vst [vmem:[%s145 + $0x68] sm:$0xff] %v1387
      %1516 = vst [vmem:[%s145 + $0x70] sm:$0xff] %v1388
      %1517 = vst [vmem:[%s145 + $0x78] sm:$0xff] %v1389
      %1518 = vst [vmem:[%s145 + $0x80] sm:$0xff] %v1390
      %1519 = vst [vmem:[%s145 + $0x88] sm:$0xff] %v1391
      %1520 = vst [vmem:[%s145 + $0x90] sm:$0xff] %v1392
      %1521 = vst [vmem:[%s145 + $0x98] sm:$0xff] %v1393
      %1522 = vst [vmem:[%s145 + $0xa0] sm:$0xff] %v1394
      %1523 = vst [vmem:[%s145 + $0xa8] sm:$0xff] %v1395
      %1524 = vst [vmem:[%s145 + $0xb0] sm:$0xff] %v1396
      %1525 = vst [vmem:[%s145 + $0xb8] sm:$0xff] %v1397
      %1526 = vst [vmem:[%s145 + $0xc0] sm:$0xff] %v1398
      %1527 = vst [vmem:[%s145 + $0xc8] sm:$0xff] %v1399
      %1528 = vst [vmem:[%s145 + $0xd0] sm:$0xff] %v1400
      %1529 = vst [vmem:[%s145 + $0xd8] sm:$0xff] %v1401
      %1530 = vst [vmem:[%s145 + $0xe0] sm:$0xff] %v1402
      %1531 = vst [vmem:[%s145 + $0xe8] sm:$0xff] %v1403
      %1532 = vst [vmem:[%s145 + $0xf0] sm:$0xff] %v1404
      %1533 = vst [vmem:[%s145 + $0xf8] sm:$0xff] %v1405
      %1534 = vst [vmem:[%s145 + $0x100] sm:$0xff] %v1406
      %1535 = vst [vmem:[%s145 + $0x108] sm:$0xff] %v1407
      %1536 = vst [vmem:[%s145 + $0x110] sm:$0xff] %v1408
      %1537 = vst [vmem:[%s145 + $0x118] sm:$0xff] %v1409
      %1538 = vst [vmem:[%s145 + $0x120] sm:$0xff] %v1410
      %1539 = vst [vmem:[%s145 + $0x128] sm:$0xff] %v1411
      %1540 = vst [vmem:[%s145 + $0x130] sm:$0xff] %v1412
      %1541 = vst [vmem:[%s145 + $0x138] sm:$0xff] %v1413
      %1542 = vst [vmem:[%s145 + $0x140] sm:$0xff] %v1414
      %1543 = vst [vmem:[%s145 + $0x148] sm:$0xff] %v1415
      %1544 = vst [vmem:[%s145 + $0x150] sm:$0xff] %v1416
      %1545 = vst [vmem:[%s145 + $0x158] sm:$0xff] %v1417
      %1546 = vst [vmem:[%s145 + $0x160] sm:$0xff] %v1418
      %1547 = vst [vmem:[%s145 + $0x168] sm:$0xff] %v1419
      %1548 = vst [vmem:[%s145 + $0x170] sm:$0xff] %v1420
      %1549 = vst [vmem:[%s145 + $0x178] sm:$0xff] %v1421
      %1550 = vst [vmem:[%s145 + $0x180] sm:$0xff] %v1422
      %1551 = vst [vmem:[%s145 + $0x188] sm:$0xff] %v1423
      %1552 = vst [vmem:[%s145 + $0x190] sm:$0xff] %v1424
      %1553 = vst [vmem:[%s145 + $0x198] sm:$0xff] %v1425
      %1554 = vst [vmem:[%s145 + $0x1a0] sm:$0xff] %v1426
      %1555 = vst [vmem:[%s145 + $0x1a8] sm:$0xff] %v1427
      %1556 = vst [vmem:[%s145 + $0x1b0] sm:$0xff] %v1428
      %1557 = vst [vmem:[%s145 + $0x1b8] sm:$0xff] %v1429
      %1558 = vst [vmem:[%s145 + $0x1c0] sm:$0xff] %v1430
      %1559 = vst [vmem:[%s145 + $0x1c8] sm:$0xff] %v1431
      %1560 = vst [vmem:[%s145 + $0x1d0] sm:$0xff] %v1432
      %1561 = vst [vmem:[%s145 + $0x1d8] sm:$0xff] %v1433
      %1562 = vst [vmem:[%s145 + $0x1e0] sm:$0xff] %v1434
      %1563 = vst [vmem:[%s145 + $0x1e8] sm:$0xff] %v1435
      %1564 = vst [vmem:[%s145 + $0x1f0] sm:$0xff] %v1436
      %1565 = vst [vmem:[%s145 + $0x1f8] sm:$0xff] %v1437
      %1566 = vst [vmem:[%s145 + $0x200] sm:$0xff] %v1438
      %1567 = vst [vmem:[%s145 + $0x208] sm:$0xff] %v1439
      %1568 = vst [vmem:[%s145 + $0x210] sm:$0xff] %v1440
      %1569 = vst [vmem:[%s145 + $0x218] sm:$0xff] %v1441
      %1570 = vst [vmem:[%s145 + $0x220] sm:$0xff] %v1442
      %1571 = vst [vmem:[%s145 + $0x228] sm:$0xff] %v1443
      %1572 = vst [vmem:[%s145 + $0x230] sm:$0xff] %v1444
      %1573 = vst [vmem:[%s145 + $0x238] sm:$0xff] %v1445
      %1574 = vst [vmem:[%s145 + $0x240] sm:$0xff] %v1446
      %1575 = vst [vmem:[%s145 + $0x248] sm:$0xff] %v1447
      %1576 = vst [vmem:[%s145 + $0x250] sm:$0xff] %v1448
      %1577 = vst [vmem:[%s145 + $0x258] sm:$0xff] %v1449
      %1578 = vst [vmem:[%s145 + $0x260] sm:$0xff] %v1450
      %1579 = vst [vmem:[%s145 + $0x268] sm:$0xff] %v1451
      %1580 = vst [vmem:[%s145 + $0x270] sm:$0xff] %v1452
      %1581 = vst [vmem:[%s145 + $0x278] sm:$0xff] %v1453
      %1582 = vst [vmem:[%s145 + $0x280] sm:$0xff] %v1454
      %1583 = vst [vmem:[%s145 + $0x288] sm:$0xff] %v1455
      %1584 = vst [vmem:[%s145 + $0x290] sm:$0xff] %v1456
      %1585 = vst [vmem:[%s145 + $0x298] sm:$0xff] %v1457
      %1586 = vst [vmem:[%s145 + $0x2a0] sm:$0xff] %v1458
      %1587 = vst [vmem:[%s145 + $0x2a8] sm:$0xff] %v1459
      %1588 = vst [vmem:[%s145 + $0x2b0] sm:$0xff] %v1460
      %1589 = vst [vmem:[%s145 + $0x2b8] sm:$0xff] %v1461
      %1590 = vst [vmem:[%s145 + $0x2c0] sm:$0xff] %v1462
      %1591 = vst [vmem:[%s145 + $0x2c8] sm:$0xff] %v1463
      %1592 = vst [vmem:[%s145 + $0x2d0] sm:$0xff] %v1464
      %1593 = vst [vmem:[%s145 + $0x2d8] sm:$0xff] %v1465
      %1594 = vst [vmem:[%s145 + $0x2e0] sm:$0xff] %v1466
      %1595 = vst [vmem:[%s145 + $0x2e8] sm:$0xff] %v1467
      %1596 = vst [vmem:[%s145 + $0x2f0] sm:$0xff] %v1468
      %1597 = vst [vmem:[%s145 + $0x2f8] sm:$0xff] %v1469
      %1598 = vst [vmem:[%s145 + $0x300] sm:$0xff] %v1470
      %1599 = vst [vmem:[%s145 + $0x308] sm:$0xff] %v1471
      %1600 = vst [vmem:[%s145 + $0x310] sm:$0xff] %v1472
      %1601 = vst [vmem:[%s145 + $0x318] sm:$0xff] %v1473
      %1602 = vst [vmem:[%s145 + $0x320] sm:$0xff] %v1474
      %1603 = vst [vmem:[%s145 + $0x328] sm:$0xff] %v1475
      %1604 = vst [vmem:[%s145 + $0x330] sm:$0xff] %v1476
      %1605 = vst [vmem:[%s145 + $0x338] sm:$0xff] %v1477
      %1606 = vst [vmem:[%s145 + $0x340] sm:$0xff] %v1478
      %1607 = vst [vmem:[%s145 + $0x348] sm:$0xff] %v1479
      %1608 = vst [vmem:[%s145 + $0x350] sm:$0xff] %v1480
      %1609 = vst [vmem:[%s145 + $0x358] sm:$0xff] %v1481
      %1610 = vst [vmem:[%s145 + $0x360] sm:$0xff] %v1482
      %1611 = vst [vmem:[%s145 + $0x368] sm:$0xff] %v1483
      %1612 = vst [vmem:[%s145 + $0x370] sm:$0xff] %v1484
      %1613 = vst [vmem:[%s145 + $0x378] sm:$0xff] %v1485
      %1614 = vst [vmem:[%s145 + $0x380] sm:$0xff] %v1486
      %1615 = vst [vmem:[%s145 + $0x388] sm:$0xff] %v1487
      %1616 = vst [vmem:[%s145 + $0x390] sm:$0xff] %v1488
      %1617 = vst [vmem:[%s145 + $0x398] sm:$0xff] %v1489
      %1618 = vst [vmem:[%s145 + $0x3a0] sm:$0xff] %v1490
      %1619 = vst [vmem:[%s145 + $0x3a8] sm:$0xff] %v1491
      %1620 = vst [vmem:[%s145 + $0x3b0] sm:$0xff] %v1492
      %1621 = vst [vmem:[%s145 + $0x3b8] sm:$0xff] %v1493
      %1622 = vst [vmem:[%s145 + $0x3c0] sm:$0xff] %v1494
      %1623 = vst [vmem:[%s145 + $0x3c8] sm:$0xff] %v1495
      %1624 = vst [vmem:[%s145 + $0x3d0] sm:$0xff] %v1496
      %1625 = vst [vmem:[%s145 + $0x3d8] sm:$0xff] %v1497
      %1626 = vst [vmem:[%s145 + $0x3e0] sm:$0xff] %v1498
      %1627 = vst [vmem:[%s145 + $0x3e8] sm:$0xff] %v1499
      %1628 = vst [vmem:[%s145 + $0x3f0] sm:$0xff] %v1500
      %1629 = vst [vmem:[%s145 + $0x3f8] sm:$0xff] %v1501
      %s1630 = smul.u32 128, %s13
      %p1631 = scmp.lt.s32.totalorder %s1630, 255
      %s1632 = scalar_select %p1631, %s1630, 255
      %s1633 = smul.addr %s1632, 8
      %s1634 = scalar_lea.vmem %s2, %s1633
      // Predicated region
      $region29: #{generator_forward.9} parent=27 // pred_check
        %p1635 = pneg %p78
      $region30: #{generator_forward.9} parent=27 // pred_check_branch
        %1637 = sbr.rel (%p1635) target = $region32
      $region31: #{generator_forward.9} parent=27 // pred_region
        %s1638 = smul.u32 128, %s13
      $region32: #{generator_forward.9} parent=27 // pred_fallthru
        _
    $region28: #{generator_forward.9} parent=5 // pred_fallthru
      _
    %p1639 = scmp.le.s32.totalorder 2, %s8
    // Predicated region
    $region33: #{generator_forward.9} parent=5 // pred_check
      %p1640 = pneg %p1639
    $region34: #{generator_forward.9} parent=5 // pred_check_branch
      %1642 = sbr.rel (%p1640) target = $region36
    $region35: #{generator_forward.9} parent=5 // pred_region
      %s1643 = ssub.s32 %s8, 2
      // Predicated region
      $region37: #{generator_forward.9} parent=35 // pred_check
        %p1644 = pneg %p84
      $region38: #{generator_forward.9} parent=35 // pred_check_branch
        %1646 = sbr.rel (%p1644) target = $region40
      $region39: #{generator_forward.9} parent=35 // pred_region
        %s1647 = smul.u32 128, %s14
        %p1648 = scmp.lt.s32.totalorder %s1647, 255
        %s1649 = scalar_select %p1648, %s1647, 255
        %s1650 = smul.addr %s1649, 8
        %s1651 = scalar_lea.vmem %s2, %s1650
      $region40: #{generator_forward.9} parent=35 // pred_fallthru
        _
    $region36: #{generator_forward.9} parent=5 // pred_fallthru
      _
  $region6: #{generator_forward.9} parent=0 // loop_footer
    %s12 = sadd.s32 1, %s8
  $region7: #{generator_forward.9} parent=0 // loop_footer_branch
    %7 = sbr.rel target = $region3
  $region8: #{generator_forward.9} parent=0 // loop_exit
    _

</llo_original>
